<compile_context>
chip_gen: v5e
topology: v5e:2x2
jax: 0.10.0
libtpu: 0.0.40
codegen_flags: <defaults>
</compile_context>

<pallas_src>
import numpy as np
import jax
import jax.numpy as jnp
from jax import lax
from jax.experimental import pallas as pl
from jax.experimental.pallas import tpu as pltpu

# ----------------------------- toy configuration ------------------------------
B = 2                      # batch
H = W = 16                 # input spatial size (stand-in for 224)
C0 = 3                     # RGB input channels
C0P = 8                    # conv1 contraction dim zero-padded to a sublane multiple
C1 = 32                    # stage-1 channels
C2 = 128                   # final channels == N (lane-dense; stand-in for 2048)

H1, W1 = H // 2, W // 2            # after maxpool 1
H2, W2 = H1 // 2, W1 // 2          # after maxpool 2 (then global avg pool -> 1x1)

HP1, WP1 = H + 2, W + 2            # conv1 zero-halo frame
HP2, WP2 = H1 + 2, W1 + 2          # conv2 zero-halo frame
NPAD1 = HP1 * WP1                  # 324
NPAD2 = HP2 * WP2                  # 100
SPAN1 = (H - 1) * WP1 + W          # 286: contiguous rows covering every valid conv1 output
SPAN2 = (H1 - 1) * WP2 + W1        # 78
NPOOL2 = H2 * W2                   # 16


# ------------------- host-side constant pooling selectors ---------------------
def _build_pool_select(h_in, w_in, pad_out):
    """0/1 matrices mapping conv-output rows (padded-frame span order) to the four
    corners of each 2x2/stride-2 pooling window.  If pad_out, the result rows are laid
    out in the NEXT layer's zero-halo frame (pad rows stay all-zero -> output 0)."""
    wp_in = w_in + 2
    h_out, w_out = h_in // 2, w_in // 2
    span = (h_in - 1) * wp_in + w_in
    n_out = (h_out + 2) * (w_out + 2) if pad_out else h_out * w_out
    sel = np.zeros((4, n_out, span), np.float32)
    for dh in range(2):
        for dw in range(2):
            k = dh * 2 + dw
            for ho in range(h_out):
                for wo in range(w_out):
                    hi, wi = 2 * ho + dh, 2 * wo + dw
                    src = (hi + 1) * wp_in + (wi + 1) - (wp_in + 1)
                    dst = ((ho + 1) * (w_out + 2) + (wo + 1)) if pad_out \
                        else (ho * w_out + wo)
                    sel[k, dst, src] = 1.0
    return sel


# ------------------------------- Pallas kernel ---------------------------------
def _backbone_kernel(x_ref, w1_ref, b1_ref, w2_ref, b2_ref, s1_ref, s2_ref, o_ref):
    # x_ref : [NPAD1, C0P]      zero-halo padded input frame (one image, channels-last)
    # w1_ref: [9*C0P, C1]       conv1 taps stacked (kh, kw)-major, each tap [C0P, C1]
    # b1_ref: [1, C1]
    # w2_ref: [9*C1, C2]        conv2 taps
    # b2_ref: [1, C2]
    # s1_ref: [4, NPAD2, SPAN1] pool-1 corner selectors (re-padded frame output)
    # s2_ref: [4, NPOOL2, SPAN2]pool-2 corner selectors (raster output)
    # o_ref : [1, C2]           pooled feature row for this batch element (lane-dense)

    def conv3x3_relu(src, w_ref, b_ref, wp, span, cin, cout):
        # In-kernel im2col: 9 accumulated MXU matmuls over shifted contiguous row-spans
        # of the zero-padded frame.  Rows at pad-column positions are garbage but are
        # never selected by the pooling matrices below.
        acc = jnp.zeros((span, cout), jnp.float32)
        for kh in range(3):
            for kw in range(3):
                tap = kh * 3 + kw
                off = kh * wp + kw
                acc = acc + jnp.dot(src[off:off + span, :],
                                    w_ref[tap * cin:(tap + 1) * cin, :],
                                    preferred_element_type=jnp.float32)
        return jnp.maximum(acc + b_ref[...], 0.0)

    def maxpool2(h, s_ref):
        # 2x2/stride-2 max pool via 4 tiny 0/1 selection matmuls (single activation
        # read, stays on the 2-D MXU path, no strided slices / relayout-heavy reshapes).
        c0 = jnp.dot(s_ref[0], h, preferred_element_type=jnp.float32)
        c1 = jnp.dot(s_ref[1], h, preferred_element_type=jnp.float32)
        c2 = jnp.dot(s_ref[2], h, preferred_element_type=jnp.float32)
        c3 = jnp.dot(s_ref[3], h, preferred_element_type=jnp.float32)
        return jnp.maximum(jnp.maximum(c0, c1), jnp.maximum(c2, c3))

    x = x_ref[...]                                                  # [NPAD1, C0P]
    h1 = conv3x3_relu(x, w1_ref, b1_ref, WP1, SPAN1, C0P, C1)       # [SPAN1, C1]
    p1 = maxpool2(h1, s1_ref)                                       # [NPAD2, C1]
    h2 = conv3x3_relu(p1, w2_ref, b2_ref, WP2, SPAN2, C1, C2)       # [SPAN2, C2]
    p2 = maxpool2(h2, s2_ref)                                       # [NPOOL2, C2]
    # Global AdaptiveAvgPool2d((1,1)) + Flatten  ->  one lane-dense [1, C2] store.
    o_ref[...] = (jnp.sum(p2, axis=0, keepdims=True) * (1.0 / NPOOL2)).astype(o_ref.dtype)


# ---------------------------------- wrapper -------------------------------------
@jax.jit
def backbone_forward(x_nchw, params):
    # NCHW -> channels-last, add the 1-pixel zero halo and pad Cin 3 -> 8, flatten the
    # spatial frame to 2-D rows (one tiny XLA prep op; everything else is in the kernel).
    x = jnp.transpose(x_nchw, (0, 2, 3, 1))
    x = jnp.pad(x, ((0, 0), (1, 1), (1, 1), (0, C0P - C0)))
    x = x.reshape(x.shape[0], NPAD1, C0P)
    b = x.shape[0]

    out = pl.pallas_call(
        _backbone_kernel,
        out_shape=jax.ShapeDtypeStruct((b, 1, C2), jnp.float32),
        grid_spec=pltpu.PrefetchScalarGridSpec(
            num_scalar_prefetch=0,
            grid=(b,),
            in_specs=[
                pl.BlockSpec((None, NPAD1, C0P), lambda i: (i, 0, 0)),     # per-image
                pl.BlockSpec((9 * C0P, C1), lambda i: (0, 0)),             # weight-stationary
                pl.BlockSpec((1, C1), lambda i: (0, 0)),
                pl.BlockSpec((9 * C1, C2), lambda i: (0, 0)),
                pl.BlockSpec((1, C2), lambda i: (0, 0)),
                pl.BlockSpec((4, NPAD2, SPAN1), lambda i: (0, 0, 0)),
                pl.BlockSpec((4, NPOOL2, SPAN2), lambda i: (0, 0, 0)),
            ],
            out_specs=pl.BlockSpec((None, 1, C2), lambda i: (i, 0, 0)),
        ),
        compiler_params=pltpu.CompilerParams(
            dimension_semantics=("parallel",)),      # batch axis -> megacore sharding
    )(x, params["w1p"], params["b1"], params["w2p"], params["b2"],
      params["s1"], params["s2"])
    return out.reshape(b, C2)


# ------------------------------ parameter setup ---------------------------------
def init_params(key):
    ks = jax.random.split(key, 4)
    w1 = jax.random.normal(ks[0], (3, 3, C0, C1), jnp.float32) * 0.1    # HWIO
    b1 = jax.random.normal(ks[1], (C1,), jnp.float32) * 0.05
    w2 = jax.random.normal(ks[2], (3, 3, C1, C2), jnp.float32) * 0.1
    b2 = jax.random.normal(ks[3], (C2,), jnp.float32) * 0.05

    # Kernel-side layouts: zero-pad conv1's Cin (K alignment), stack the 9 taps row-wise.
    w1p = jnp.pad(w1, ((0, 0), (0, 0), (0, C0P - C0), (0, 0))).reshape(9 * C0P, C1)
    w2p = w2.reshape(9 * C1, C2)
    s1 = jnp.asarray(_build_pool_select(H, W, pad_out=True))     # [4, NPAD2, SPAN1]
    s2 = jnp.asarray(_build_pool_select(H1, W1, pad_out=False))  # [4, NPOOL2, SPAN2]

    params = dict(w1p=w1p, b1=b1.reshape(1, C1), w2p=w2p, b2=b2.reshape(1, C2),
                  s1=s1, s2=s2)
    ref_params = dict(w1=w1, b1=b1, w2=w2, b2=b2)
    return params, ref_params


# --------------------------- pure-JAX reference check ----------------------------
def ref_forward(x_nchw, rp):
    dn = ("NHWC", "HWIO", "NHWC")
    x = jnp.transpose(x_nchw, (0, 2, 3, 1))
    x = jax.nn.relu(lax.conv_general_dilated(x, rp["w1"], (1, 1), "SAME",
                                             dimension_numbers=dn) + rp["b1"])
    x = lax.reduce_window(x, -jnp.inf, lax.max, (1, 2, 2, 1), (1, 2, 2, 1), "VALID")
    x = jax.nn.relu(lax.conv_general_dilated(x, rp["w2"], (1, 1), "SAME",
                                             dimension_numbers=dn) + rp["b2"])
    x = lax.reduce_window(x, -jnp.inf, lax.max, (1, 2, 2, 1), (1, 2, 2, 1), "VALID")
    return jnp.mean(x, axis=(1, 2))     # AdaptiveAvgPool2d((1,1)) + Flatten


# ------------------------------------- main --------------------------------------
if __name__ == "__main__":
    key = jax.random.PRNGKey(0)
    k_params, k_x = jax.random.split(key)
    params, ref_params = init_params(k_params)

    x = jax.random.normal(k_x, (B, C0, H, W), jnp.float32)     # NCHW, like the torch module

    out = jax.block_until_ready(backbone_forward(x, params))
    assert out.shape == (B, C2) and out.dtype == jnp.float32

    ref = jax.block_until_ready(ref_forward(x, ref_params))
    np.testing.assert_allclose(np.asarray(out), np.asarray(ref), rtol=2e-3, atol=2e-3)

    print("KERNEL_OK")
</pallas_src>

<mosaic_0001>
module attributes {stable_mosaic.version = 11 : i64} {
  func.func @_backbone_kernel(%arg0: i32, %arg1: memref<1x324x8xf32, #tpu.memory_space<vmem>>, %arg2: memref<72x32xf32, #tpu.memory_space<vmem>>, %arg3: memref<1x32xf32, #tpu.memory_space<vmem>>, %arg4: memref<288x128xf32, #tpu.memory_space<vmem>>, %arg5: memref<1x128xf32, #tpu.memory_space<vmem>>, %arg6: memref<4x100x286xf32, #tpu.memory_space<vmem>>, %arg7: memref<4x16x78xf32, #tpu.memory_space<vmem>>, %arg8: memref<1x1x128xf32, #tpu.memory_space<vmem>>) attributes {dimension_semantics = [#tpu.dimension_semantics<parallel>], iteration_bounds = array<i64: 2>, scalar_prefetch = 0 : i64, scratch_operands = 0 : i64, tpu.core_type = #tpu.core_type<tc>, window_params = [{transform_indices = @transform_0, window_bounds = array<i64: 1, 324, 8>}, {pipeline_mode = #tpu.pipeline_mode<synchronous>, transform_indices = @transform_1, window_bounds = array<i64: 72, 32>}, {pipeline_mode = #tpu.pipeline_mode<synchronous>, transform_indices = @transform_2, window_bounds = array<i64: 1, 32>}, {pipeline_mode = #tpu.pipeline_mode<synchronous>, transform_indices = @transform_3, window_bounds = array<i64: 288, 128>}, {pipeline_mode = #tpu.pipeline_mode<synchronous>, transform_indices = @transform_4, window_bounds = array<i64: 1, 128>}, {pipeline_mode = #tpu.pipeline_mode<synchronous>, transform_indices = @transform_5, window_bounds = array<i64: 4, 100, 286>}, {pipeline_mode = #tpu.pipeline_mode<synchronous>, transform_indices = @transform_6, window_bounds = array<i64: 4, 16, 78>}, {transform_indices = @transform_7, window_bounds = array<i64: 1, 1, 128>}]} {
    %c0 = arith.constant 0 : index
    %c0_0 = arith.constant 0 : index
    %c0_1 = arith.constant 0 : index
    %0 = vector.load %arg1[%c0, %c0_0, %c0_1] : memref<1x324x8xf32, #tpu.memory_space<vmem>>, vector<1x324x8xf32>
    %1 = vector.shape_cast %0 : vector<1x324x8xf32> to vector<324x8xf32>
    %cst = arith.constant 0.000000e+00 : f32
    %2 = vector.broadcast %cst : f32 to vector<286x32xf32>
    %3 = vector.extract_strided_slice %1 {offsets = [0, 0], sizes = [286, 8], strides = [1, 1]} : vector<324x8xf32> to vector<286x8xf32>
    %c0_2 = arith.constant 0 : index
    %c0_3 = arith.constant 0 : index
    %4 = vector.load %arg2[%c0_2, %c0_3] : memref<72x32xf32, #tpu.memory_space<vmem>>, vector<8x32xf32>
    %cst_4 = arith.constant dense<0.000000e+00> : vector<286x32xf32>
    %5 = tpu.matmul %3, %4, %cst_4 {dimension_numbers = #tpu.dot_dimension_numbers<[1], [0], [0], [1], [0, 0, 1, 1], [], []>} : vector<286x8xf32>, vector<8x32xf32>, vector<286x32xf32> -> vector<286x32xf32>
    %6 = arith.addf %2, %5 : vector<286x32xf32>
    %7 = vector.extract_strided_slice %1 {offsets = [1, 0], sizes = [286, 8], strides = [1, 1]} : vector<324x8xf32> to vector<286x8xf32>
    %c8 = arith.constant 8 : index
    %c0_5 = arith.constant 0 : index
    %8 = vector.load %arg2[%c8, %c0_5] : memref<72x32xf32, #tpu.memory_space<vmem>>, vector<8x32xf32>
    %cst_6 = arith.constant dense<0.000000e+00> : vector<286x32xf32>
    %9 = tpu.matmul %7, %8, %cst_6 {dimension_numbers = #tpu.dot_dimension_numbers<[1], [0], [0], [1], [0, 0, 1, 1], [], []>} : vector<286x8xf32>, vector<8x32xf32>, vector<286x32xf32> -> vector<286x32xf32>
    %10 = arith.addf %6, %9 : vector<286x32xf32>
    %11 = vector.extract_strided_slice %1 {offsets = [2, 0], sizes = [286, 8], strides = [1, 1]} : vector<324x8xf32> to vector<286x8xf32>
    %c16 = arith.constant 16 : index
    %c0_7 = arith.constant 0 : index
    %12 = vector.load %arg2[%c16, %c0_7] : memref<72x32xf32, #tpu.memory_space<vmem>>, vector<8x32xf32>
    %cst_8 = arith.constant dense<0.000000e+00> : vector<286x32xf32>
    %13 = tpu.matmul %11, %12, %cst_8 {dimension_numbers = #tpu.dot_dimension_numbers<[1], [0], [0], [1], [0, 0, 1, 1], [], []>} : vector<286x8xf32>, vector<8x32xf32>, vector<286x32xf32> -> vector<286x32xf32>
    %14 = arith.addf %10, %13 : vector<286x32xf32>
    %15 = vector.extract_strided_slice %1 {offsets = [18, 0], sizes = [286, 8], strides = [1, 1]} : vector<324x8xf32> to vector<286x8xf32>
    %c24 = arith.constant 24 : index
    %c0_9 = arith.constant 0 : index
    %16 = vector.load %arg2[%c24, %c0_9] : memref<72x32xf32, #tpu.memory_space<vmem>>, vector<8x32xf32>
    %cst_10 = arith.constant dense<0.000000e+00> : vector<286x32xf32>
    %17 = tpu.matmul %15, %16, %cst_10 {dimension_numbers = #tpu.dot_dimension_numbers<[1], [0], [0], [1], [0, 0, 1, 1], [], []>} : vector<286x8xf32>, vector<8x32xf32>, vector<286x32xf32> -> vector<286x32xf32>
    %18 = arith.addf %14, %17 : vector<286x32xf32>
    %19 = vector.extract_strided_slice %1 {offsets = [19, 0], sizes = [286, 8], strides = [1, 1]} : vector<324x8xf32> to vector<286x8xf32>
    %c32 = arith.constant 32 : index
    %c0_11 = arith.constant 0 : index
    %20 = vector.load %arg2[%c32, %c0_11] : memref<72x32xf32, #tpu.memory_space<vmem>>, vector<8x32xf32>
    %cst_12 = arith.constant dense<0.000000e+00> : vector<286x32xf32>
    %21 = tpu.matmul %19, %20, %cst_12 {dimension_numbers = #tpu.dot_dimension_numbers<[1], [0], [0], [1], [0, 0, 1, 1], [], []>} : vector<286x8xf32>, vector<8x32xf32>, vector<286x32xf32> -> vector<286x32xf32>
    %22 = arith.addf %18, %21 : vector<286x32xf32>
    %23 = vector.extract_strided_slice %1 {offsets = [20, 0], sizes = [286, 8], strides = [1, 1]} : vector<324x8xf32> to vector<286x8xf32>
    %c40 = arith.constant 40 : index
    %c0_13 = arith.constant 0 : index
    %24 = vector.load %arg2[%c40, %c0_13] : memref<72x32xf32, #tpu.memory_space<vmem>>, vector<8x32xf32>
    %cst_14 = arith.constant dense<0.000000e+00> : vector<286x32xf32>
    %25 = tpu.matmul %23, %24, %cst_14 {dimension_numbers = #tpu.dot_dimension_numbers<[1], [0], [0], [1], [0, 0, 1, 1], [], []>} : vector<286x8xf32>, vector<8x32xf32>, vector<286x32xf32> -> vector<286x32xf32>
    %26 = arith.addf %22, %25 : vector<286x32xf32>
    %27 = vector.extract_strided_slice %1 {offsets = [36, 0], sizes = [286, 8], strides = [1, 1]} : vector<324x8xf32> to vector<286x8xf32>
    %c48 = arith.constant 48 : index
    %c0_15 = arith.constant 0 : index
    %28 = vector.load %arg2[%c48, %c0_15] : memref<72x32xf32, #tpu.memory_space<vmem>>, vector<8x32xf32>
    %cst_16 = arith.constant dense<0.000000e+00> : vector<286x32xf32>
    %29 = tpu.matmul %27, %28, %cst_16 {dimension_numbers = #tpu.dot_dimension_numbers<[1], [0], [0], [1], [0, 0, 1, 1], [], []>} : vector<286x8xf32>, vector<8x32xf32>, vector<286x32xf32> -> vector<286x32xf32>
    %30 = arith.addf %26, %29 : vector<286x32xf32>
    %31 = vector.extract_strided_slice %1 {offsets = [37, 0], sizes = [286, 8], strides = [1, 1]} : vector<324x8xf32> to vector<286x8xf32>
    %c56 = arith.constant 56 : index
    %c0_17 = arith.constant 0 : index
    %32 = vector.load %arg2[%c56, %c0_17] : memref<72x32xf32, #tpu.memory_space<vmem>>, vector<8x32xf32>
    %cst_18 = arith.constant dense<0.000000e+00> : vector<286x32xf32>
    %33 = tpu.matmul %31, %32, %cst_18 {dimension_numbers = #tpu.dot_dimension_numbers<[1], [0], [0], [1], [0, 0, 1, 1], [], []>} : vector<286x8xf32>, vector<8x32xf32>, vector<286x32xf32> -> vector<286x32xf32>
    %34 = arith.addf %30, %33 : vector<286x32xf32>
    %35 = vector.extract_strided_slice %1 {offsets = [38, 0], sizes = [286, 8], strides = [1, 1]} : vector<324x8xf32> to vector<286x8xf32>
    %c64 = arith.constant 64 : index
    %c0_19 = arith.constant 0 : index
    %36 = vector.load %arg2[%c64, %c0_19] : memref<72x32xf32, #tpu.memory_space<vmem>>, vector<8x32xf32>
    %cst_20 = arith.constant dense<0.000000e+00> : vector<286x32xf32>
    %37 = tpu.matmul %35, %36, %cst_20 {dimension_numbers = #tpu.dot_dimension_numbers<[1], [0], [0], [1], [0, 0, 1, 1], [], []>} : vector<286x8xf32>, vector<8x32xf32>, vector<286x32xf32> -> vector<286x32xf32>
    %38 = arith.addf %34, %37 : vector<286x32xf32>
    %c0_21 = arith.constant 0 : index
    %c0_22 = arith.constant 0 : index
    %39 = vector.load %arg3[%c0_21, %c0_22] : memref<1x32xf32, #tpu.memory_space<vmem>>, vector<1x32xf32>
    %40 = vector.broadcast %39 : vector<1x32xf32> to vector<286x32xf32>
    %41 = arith.addf %38, %40 : vector<286x32xf32>
    %cst_23 = arith.constant 0.000000e+00 : f32
    %42 = vector.broadcast %cst_23 : f32 to vector<286x32xf32>
    %43 = arith.maximumf %41, %42 : vector<286x32xf32>
    %c0_24 = arith.constant 0 : index
    %c0_25 = arith.constant 0 : index
    %c0_26 = arith.constant 0 : index
    %44 = vector.load %arg6[%c0_24, %c0_25, %c0_26] : memref<4x100x286xf32, #tpu.memory_space<vmem>>, vector<1x100x286xf32>
    %45 = vector.shape_cast %44 : vector<1x100x286xf32> to vector<100x286xf32>
    %cst_27 = arith.constant dense<0.000000e+00> : vector<100x32xf32>
    %46 = tpu.matmul %45, %43, %cst_27 {dimension_numbers = #tpu.dot_dimension_numbers<[1], [0], [0], [1], [0, 0, 1, 1], [], []>} : vector<100x286xf32>, vector<286x32xf32>, vector<100x32xf32> -> vector<100x32xf32>
    %c1 = arith.constant 1 : index
    %c0_28 = arith.constant 0 : index
    %c0_29 = arith.constant 0 : index
    %47 = vector.load %arg6[%c1, %c0_28, %c0_29] : memref<4x100x286xf32, #tpu.memory_space<vmem>>, vector<1x100x286xf32>
    %48 = vector.shape_cast %47 : vector<1x100x286xf32> to vector<100x286xf32>
    %cst_30 = arith.constant dense<0.000000e+00> : vector<100x32xf32>
    %49 = tpu.matmul %48, %43, %cst_30 {dimension_numbers = #tpu.dot_dimension_numbers<[1], [0], [0], [1], [0, 0, 1, 1], [], []>} : vector<100x286xf32>, vector<286x32xf32>, vector<100x32xf32> -> vector<100x32xf32>
    %c2 = arith.constant 2 : index
    %c0_31 = arith.constant 0 : index
    %c0_32 = arith.constant 0 : index
    %50 = vector.load %arg6[%c2, %c0_31, %c0_32] : memref<4x100x286xf32, #tpu.memory_space<vmem>>, vector<1x100x286xf32>
    %51 = vector.shape_cast %50 : vector<1x100x286xf32> to vector<100x286xf32>
    %cst_33 = arith.constant dense<0.000000e+00> : vector<100x32xf32>
    %52 = tpu.matmul %51, %43, %cst_33 {dimension_numbers = #tpu.dot_dimension_numbers<[1], [0], [0], [1], [0, 0, 1, 1], [], []>} : vector<100x286xf32>, vector<286x32xf32>, vector<100x32xf32> -> vector<100x32xf32>
    %c3 = arith.constant 3 : index
    %c0_34 = arith.constant 0 : index
    %c0_35 = arith.constant 0 : index
    %53 = vector.load %arg6[%c3, %c0_34, %c0_35] : memref<4x100x286xf32, #tpu.memory_space<vmem>>, vector<1x100x286xf32>
    %54 = vector.shape_cast %53 : vector<1x100x286xf32> to vector<100x286xf32>
    %cst_36 = arith.constant dense<0.000000e+00> : vector<100x32xf32>
    %55 = tpu.matmul %54, %43, %cst_36 {dimension_numbers = #tpu.dot_dimension_numbers<[1], [0], [0], [1], [0, 0, 1, 1], [], []>} : vector<100x286xf32>, vector<286x32xf32>, vector<100x32xf32> -> vector<100x32xf32>
    %56 = arith.maximumf %46, %49 : vector<100x32xf32>
    %57 = arith.maximumf %52, %55 : vector<100x32xf32>
    %58 = arith.maximumf %56, %57 : vector<100x32xf32>
    %cst_37 = arith.constant 0.000000e+00 : f32
    %59 = vector.broadcast %cst_37 : f32 to vector<78x128xf32>
    %60 = vector.extract_strided_slice %58 {offsets = [0, 0], sizes = [78, 32], strides = [1, 1]} : vector<100x32xf32> to vector<78x32xf32>
    %c0_38 = arith.constant 0 : index
    %c0_39 = arith.constant 0 : index
    %61 = vector.load %arg4[%c0_38, %c0_39] : memref<288x128xf32, #tpu.memory_space<vmem>>, vector<32x128xf32>
    %cst_40 = arith.constant dense<0.000000e+00> : vector<78x128xf32>
    %62 = tpu.matmul %60, %61, %cst_40 {dimension_numbers = #tpu.dot_dimension_numbers<[1], [0], [0], [1], [0, 0, 1, 1], [], []>} : vector<78x32xf32>, vector<32x128xf32>, vector<78x128xf32> -> vector<78x128xf32>
    %63 = arith.addf %59, %62 : vector<78x128xf32>
    %64 = vector.extract_strided_slice %58 {offsets = [1, 0], sizes = [78, 32], strides = [1, 1]} : vector<100x32xf32> to vector<78x32xf32>
    %c32_41 = arith.constant 32 : index
    %c0_42 = arith.constant 0 : index
    %65 = vector.load %arg4[%c32_41, %c0_42] : memref<288x128xf32, #tpu.memory_space<vmem>>, vector<32x128xf32>
    %cst_43 = arith.constant dense<0.000000e+00> : vector<78x128xf32>
    %66 = tpu.matmul %64, %65, %cst_43 {dimension_numbers = #tpu.dot_dimension_numbers<[1], [0], [0], [1], [0, 0, 1, 1], [], []>} : vector<78x32xf32>, vector<32x128xf32>, vector<78x128xf32> -> vector<78x128xf32>
    %67 = arith.addf %63, %66 : vector<78x128xf32>
    %68 = vector.extract_strided_slice %58 {offsets = [2, 0], sizes = [78, 32], strides = [1, 1]} : vector<100x32xf32> to vector<78x32xf32>
    %c64_44 = arith.constant 64 : index
    %c0_45 = arith.constant 0 : index
    %69 = vector.load %arg4[%c64_44, %c0_45] : memref<288x128xf32, #tpu.memory_space<vmem>>, vector<32x128xf32>
    %cst_46 = arith.constant dense<0.000000e+00> : vector<78x128xf32>
    %70 = tpu.matmul %68, %69, %cst_46 {dimension_numbers = #tpu.dot_dimension_numbers<[1], [0], [0], [1], [0, 0, 1, 1], [], []>} : vector<78x32xf32>, vector<32x128xf32>, vector<78x128xf32> -> vector<78x128xf32>
    %71 = arith.addf %67, %70 : vector<78x128xf32>
    %72 = vector.extract_strided_slice %58 {offsets = [10, 0], sizes = [78, 32], strides = [1, 1]} : vector<100x32xf32> to vector<78x32xf32>
    %c96 = arith.constant 96 : index
    %c0_47 = arith.constant 0 : index
    %73 = vector.load %arg4[%c96, %c0_47] : memref<288x128xf32, #tpu.memory_space<vmem>>, vector<32x128xf32>
    %cst_48 = arith.constant dense<0.000000e+00> : vector<78x128xf32>
    %74 = tpu.matmul %72, %73, %cst_48 {dimension_numbers = #tpu.dot_dimension_numbers<[1], [0], [0], [1], [0, 0, 1, 1], [], []>} : vector<78x32xf32>, vector<32x128xf32>, vector<78x128xf32> -> vector<78x128xf32>
    %75 = arith.addf %71, %74 : vector<78x128xf32>
    %76 = vector.extract_strided_slice %58 {offsets = [11, 0], sizes = [78, 32], strides = [1, 1]} : vector<100x32xf32> to vector<78x32xf32>
    %c128 = arith.constant 128 : index
    %c0_49 = arith.constant 0 : index
    %77 = vector.load %arg4[%c128, %c0_49] : memref<288x128xf32, #tpu.memory_space<vmem>>, vector<32x128xf32>
    %cst_50 = arith.constant dense<0.000000e+00> : vector<78x128xf32>
    %78 = tpu.matmul %76, %77, %cst_50 {dimension_numbers = #tpu.dot_dimension_numbers<[1], [0], [0], [1], [0, 0, 1, 1], [], []>} : vector<78x32xf32>, vector<32x128xf32>, vector<78x128xf32> -> vector<78x128xf32>
    %79 = arith.addf %75, %78 : vector<78x128xf32>
    %80 = vector.extract_strided_slice %58 {offsets = [12, 0], sizes = [78, 32], strides = [1, 1]} : vector<100x32xf32> to vector<78x32xf32>
    %c160 = arith.constant 160 : index
    %c0_51 = arith.constant 0 : index
    %81 = vector.load %arg4[%c160, %c0_51] : memref<288x128xf32, #tpu.memory_space<vmem>>, vector<32x128xf32>
    %cst_52 = arith.constant dense<0.000000e+00> : vector<78x128xf32>
    %82 = tpu.matmul %80, %81, %cst_52 {dimension_numbers = #tpu.dot_dimension_numbers<[1], [0], [0], [1], [0, 0, 1, 1], [], []>} : vector<78x32xf32>, vector<32x128xf32>, vector<78x128xf32> -> vector<78x128xf32>
    %83 = arith.addf %79, %82 : vector<78x128xf32>
    %84 = vector.extract_strided_slice %58 {offsets = [20, 0], sizes = [78, 32], strides = [1, 1]} : vector<100x32xf32> to vector<78x32xf32>
    %c192 = arith.constant 192 : index
    %c0_53 = arith.constant 0 : index
    %85 = vector.load %arg4[%c192, %c0_53] : memref<288x128xf32, #tpu.memory_space<vmem>>, vector<32x128xf32>
    %cst_54 = arith.constant dense<0.000000e+00> : vector<78x128xf32>
    %86 = tpu.matmul %84, %85, %cst_54 {dimension_numbers = #tpu.dot_dimension_numbers<[1], [0], [0], [1], [0, 0, 1, 1], [], []>} : vector<78x32xf32>, vector<32x128xf32>, vector<78x128xf32> -> vector<78x128xf32>
    %87 = arith.addf %83, %86 : vector<78x128xf32>
    %88 = vector.extract_strided_slice %58 {offsets = [21, 0], sizes = [78, 32], strides = [1, 1]} : vector<100x32xf32> to vector<78x32xf32>
    %c224 = arith.constant 224 : index
    %c0_55 = arith.constant 0 : index
    %89 = vector.load %arg4[%c224, %c0_55] : memref<288x128xf32, #tpu.memory_space<vmem>>, vector<32x128xf32>
    %cst_56 = arith.constant dense<0.000000e+00> : vector<78x128xf32>
    %90 = tpu.matmul %88, %89, %cst_56 {dimension_numbers = #tpu.dot_dimension_numbers<[1], [0], [0], [1], [0, 0, 1, 1], [], []>} : vector<78x32xf32>, vector<32x128xf32>, vector<78x128xf32> -> vector<78x128xf32>
    %91 = arith.addf %87, %90 : vector<78x128xf32>
    %92 = vector.extract_strided_slice %58 {offsets = [22, 0], sizes = [78, 32], strides = [1, 1]} : vector<100x32xf32> to vector<78x32xf32>
    %c256 = arith.constant 256 : index
    %c0_57 = arith.constant 0 : index
    %93 = vector.load %arg4[%c256, %c0_57] : memref<288x128xf32, #tpu.memory_space<vmem>>, vector<32x128xf32>
    %cst_58 = arith.constant dense<0.000000e+00> : vector<78x128xf32>
    %94 = tpu.matmul %92, %93, %cst_58 {dimension_numbers = #tpu.dot_dimension_numbers<[1], [0], [0], [1], [0, 0, 1, 1], [], []>} : vector<78x32xf32>, vector<32x128xf32>, vector<78x128xf32> -> vector<78x128xf32>
    %95 = arith.addf %91, %94 : vector<78x128xf32>
    %c0_59 = arith.constant 0 : index
    %c0_60 = arith.constant 0 : index
    %96 = vector.load %arg5[%c0_59, %c0_60] : memref<1x128xf32, #tpu.memory_space<vmem>>, vector<1x128xf32>
    %97 = vector.broadcast %96 : vector<1x128xf32> to vector<78x128xf32>
    %98 = arith.addf %95, %97 : vector<78x128xf32>
    %cst_61 = arith.constant 0.000000e+00 : f32
    %99 = vector.broadcast %cst_61 : f32 to vector<78x128xf32>
    %100 = arith.maximumf %98, %99 : vector<78x128xf32>
    %c0_62 = arith.constant 0 : index
    %c0_63 = arith.constant 0 : index
    %c0_64 = arith.constant 0 : index
    %101 = vector.load %arg7[%c0_62, %c0_63, %c0_64] : memref<4x16x78xf32, #tpu.memory_space<vmem>>, vector<1x16x78xf32>
    %102 = vector.shape_cast %101 : vector<1x16x78xf32> to vector<16x78xf32>
    %cst_65 = arith.constant dense<0.000000e+00> : vector<16x128xf32>
    %103 = tpu.matmul %102, %100, %cst_65 {dimension_numbers = #tpu.dot_dimension_numbers<[1], [0], [0], [1], [0, 0, 1, 1], [], []>} : vector<16x78xf32>, vector<78x128xf32>, vector<16x128xf32> -> vector<16x128xf32>
    %c1_66 = arith.constant 1 : index
    %c0_67 = arith.constant 0 : index
    %c0_68 = arith.constant 0 : index
    %104 = vector.load %arg7[%c1_66, %c0_67, %c0_68] : memref<4x16x78xf32, #tpu.memory_space<vmem>>, vector<1x16x78xf32>
    %105 = vector.shape_cast %104 : vector<1x16x78xf32> to vector<16x78xf32>
    %cst_69 = arith.constant dense<0.000000e+00> : vector<16x128xf32>
    %106 = tpu.matmul %105, %100, %cst_69 {dimension_numbers = #tpu.dot_dimension_numbers<[1], [0], [0], [1], [0, 0, 1, 1], [], []>} : vector<16x78xf32>, vector<78x128xf32>, vector<16x128xf32> -> vector<16x128xf32>
    %c2_70 = arith.constant 2 : index
    %c0_71 = arith.constant 0 : index
    %c0_72 = arith.constant 0 : index
    %107 = vector.load %arg7[%c2_70, %c0_71, %c0_72] : memref<4x16x78xf32, #tpu.memory_space<vmem>>, vector<1x16x78xf32>
    %108 = vector.shape_cast %107 : vector<1x16x78xf32> to vector<16x78xf32>
    %cst_73 = arith.constant dense<0.000000e+00> : vector<16x128xf32>
    %109 = tpu.matmul %108, %100, %cst_73 {dimension_numbers = #tpu.dot_dimension_numbers<[1], [0], [0], [1], [0, 0, 1, 1], [], []>} : vector<16x78xf32>, vector<78x128xf32>, vector<16x128xf32> -> vector<16x128xf32>
    %c3_74 = arith.constant 3 : index
    %c0_75 = arith.constant 0 : index
    %c0_76 = arith.constant 0 : index
    %110 = vector.load %arg7[%c3_74, %c0_75, %c0_76] : memref<4x16x78xf32, #tpu.memory_space<vmem>>, vector<1x16x78xf32>
    %111 = vector.shape_cast %110 : vector<1x16x78xf32> to vector<16x78xf32>
    %cst_77 = arith.constant dense<0.000000e+00> : vector<16x128xf32>
    %112 = tpu.matmul %111, %100, %cst_77 {dimension_numbers = #tpu.dot_dimension_numbers<[1], [0], [0], [1], [0, 0, 1, 1], [], []>} : vector<16x78xf32>, vector<78x128xf32>, vector<16x128xf32> -> vector<16x128xf32>
    %113 = arith.maximumf %103, %106 : vector<16x128xf32>
    %114 = arith.maximumf %109, %112 : vector<16x128xf32>
    %115 = arith.maximumf %113, %114 : vector<16x128xf32>
    %cst_78 = arith.constant dense<0.000000e+00> : vector<128xf32>
    %116 = vector.multi_reduction <add>, %115, %cst_78 [0] : vector<16x128xf32> to vector<128xf32>
    %117 = vector.shape_cast %116 : vector<128xf32> to vector<1x128xf32>
    %cst_79 = arith.constant 6.250000e-02 : f32
    %118 = vector.broadcast %cst_79 : f32 to vector<1x128xf32>
    %119 = arith.mulf %117, %118 : vector<1x128xf32>
    %c0_80 = arith.constant 0 : index
    %c0_81 = arith.constant 0 : index
    %c0_82 = arith.constant 0 : index
    %120 = vector.load %arg8[%c0_80, %c0_81, %c0_82] : memref<1x1x128xf32, #tpu.memory_space<vmem>>, vector<1x1x128xf32>
    %121 = vector.shape_cast %120 : vector<1x1x128xf32> to vector<1x128xf32>
    %122 = vector.shape_cast %119 : vector<1x128xf32> to vector<1x1x128xf32>
    tpu.vector_store %arg8[%c0_80, %c0_81, %c0_82], %122 {strides = array<i32>} : memref<1x1x128xf32, #tpu.memory_space<vmem>>, vector<1x1x128xf32>,
    return
  }
  func.func @transform_0(%arg0: i32) -> (i32, i32, i32) {
    %c0_i32 = arith.constant 0 : i32
    %c0_i32_0 = arith.constant 0 : i32
    %c0_i32_1 = arith.constant 0 : i32
    return %arg0, %c0_i32, %c0_i32_0 : i32, i32, i32
  }
  func.func @transform_1(%arg0: i32) -> (i32, i32) {
    %c0_i32 = arith.constant 0 : i32
    %c0_i32_0 = arith.constant 0 : i32
    %c0_i32_1 = arith.constant 0 : i32
    return %c0_i32, %c0_i32_0 : i32, i32
  }
  func.func @transform_2(%arg0: i32) -> (i32, i32) {
    %c0_i32 = arith.constant 0 : i32
    %c0_i32_0 = arith.constant 0 : i32
    %c0_i32_1 = arith.constant 0 : i32
    return %c0_i32, %c0_i32_0 : i32, i32
  }
  func.func @transform_3(%arg0: i32) -> (i32, i32) {
    %c0_i32 = arith.constant 0 : i32
    %c0_i32_0 = arith.constant 0 : i32
    %c0_i32_1 = arith.constant 0 : i32
    return %c0_i32, %c0_i32_0 : i32, i32
  }
  func.func @transform_4(%arg0: i32) -> (i32, i32) {
    %c0_i32 = arith.constant 0 : i32
    %c0_i32_0 = arith.constant 0 : i32
    %c0_i32_1 = arith.constant 0 : i32
    return %c0_i32, %c0_i32_0 : i32, i32
  }
  func.func @transform_5(%arg0: i32) -> (i32, i32, i32) {
    %c0_i32 = arith.constant 0 : i32
    %c0_i32_0 = arith.constant 0 : i32
    %c0_i32_1 = arith.constant 0 : i32
    %c0_i32_2 = arith.constant 0 : i32
    return %c0_i32, %c0_i32_0, %c0_i32_1 : i32, i32, i32
  }
  func.func @transform_6(%arg0: i32) -> (i32, i32, i32) {
    %c0_i32 = arith.constant 0 : i32
    %c0_i32_0 = arith.constant 0 : i32
    %c0_i32_1 = arith.constant 0 : i32
    %c0_i32_2 = arith.constant 0 : i32
    return %c0_i32, %c0_i32_0, %c0_i32_1 : i32, i32, i32
  }
  func.func @transform_7(%arg0: i32) -> (i32, i32, i32) {
    %c0_i32 = arith.constant 0 : i32
    %c0_i32_0 = arith.constant 0 : i32
    %c0_i32_1 = arith.constant 0 : i32
    return %arg0, %c0_i32, %c0_i32_0 : i32, i32, i32
  }
}

</mosaic_0001>

<llo_original>
// kernel: backbone_forward.1
$region0: #{backbone_forward.1}
  #allocation0 [shape = 'u32[]', space=smem, size = 0x4, offset = 0x4, fixed_abs, tag = 'smem constant byte address 0x4 - core index']
  #allocation1 [shape = 'u32[72,128]{1,0:T(1,128)}', space=vmem, size = 0x9000, scoped, tag = 'internal scratch']
  %s0 = inlined_call_operand.vmem [shape: f32[2,324,8], index: 0, kind: input, shape index: {}]
  %s1 = inlined_call_operand.vmem [shape: f32[72,32], index: 1, kind: input, shape index: {}]
  %s2 = inlined_call_operand.vmem [shape: f32[1,32], index: 2, kind: input, shape index: {}]
  %s3 = inlined_call_operand.vmem [shape: f32[288,128], index: 3, kind: input, shape index: {}]
  %s4 = inlined_call_operand.vmem [shape: f32[1,128], index: 4, kind: input, shape index: {}]
  %s5 = inlined_call_operand.vmem [shape: f32[4,100,286], index: 5, kind: input, shape index: {}]
  %s6 = inlined_call_operand.vmem [shape: f32[4,16,78], index: 6, kind: input, shape index: {}]
  %s7 = inlined_call_operand.hbm [shape: f32[2,1,128], index: 7, kind: output, shape index: {}]
  %s8 = sld [smem:[#allocation0]]
  $region61: #{backbone_forward.1} parent=0
    _
  %s10 = ssub.s32 1, %s8
  %s11 = scalar_select 0, %s10, %s8
  $region1: #{backbone_forward.1} parent=0
    #allocation2 [shape = 'u8[1024]{0}', space=vmem, size = 0x400, scoped, tag = 'output window, operand 0']
    #allocation3 [shape = 's32[2]{0}', space=sflag, size = 0x8, scoped, tag = 'scoped memory for backbone_forward.1']
    %12 = vsyncpa [#allocation3], 0
    %s13 = scalar_lea.sflag [#allocation3], 1
    %14 = vsyncpa %s13, 0
    loop: start=0, step=1, limit=4
    $region2: #{backbone_forward.1} parent=1 // loop_pre_header
      _
    $region3: #{backbone_forward.1} parent=1 // loop_header
      %s16 = sphi 0, %s20
      %p17 = scmp.ge.s32.totalorder %s16, 4
      %s26 = sphi 0, %s28
      %s29 = sphi 0, %s26
      %s30 = sphi 0, %s29
      %s46 = sphi 0, %s30
      %s50 = sphi 0, %s50
      %s52 = sphi 0, %s50
      %s53 = sphi 0, %s52
      %s67 = sphi 0, %s53
      %s71 = sphi 0, %s71
      %s73 = sphi 0, %s71
      %s74 = sphi 0, %s73
      %s88 = sphi 0, %s74
      %s92 = sphi 0, %s92
      %s94 = sphi 0, %s92
      %s95 = sphi 0, %s94
      %s109 = sphi 0, %s95
      %s113 = sphi 0, %s113
      %s115 = sphi 0, %s113
      %s116 = sphi 0, %s115
      %s130 = sphi 0, %s116
      %s134 = sphi 0, %s134
      %s136 = sphi 0, %s134
      %s137 = sphi 0, %s136
      %s151 = sphi 0, %s137
      %s155 = sphi 0, %s155
      %s157 = sphi 0, %s155
      %s158 = sphi 0, %s157
      %s172 = sphi 0, %s158
      %s178 = sphi 0, %s180
      %s181 = sphi 0, %s178
      %s182 = sphi 0, %s181
      %s198 = sphi 0, %s182
    $region4: #{backbone_forward.1} parent=1 // loop_header_branch
      %19 = sbr.rel (%p17) target = $region8
    $region5: #{backbone_forward.1} parent=1 // loop_body
      %s21 = ssub.s32 %s16, 1
      %s22 = ssub.s32 %s16, 2
      %s23 = sadd.s32 %s16, 1
      %s24 = ssub.s32 %s16, %s23
      %p25 = scmp.eq.s32.totalorder %s24, 0
      %s27 = sadd.s32 %s26, 1
      %s28 = scalar_select %p25, %s26, %s27
      %p31 = pneg %p25
      %p32 = scmp.eq.s32.totalorder %s16, 1
      %p33 = por %p31, %p32
      %p34 = scmp.ne.s32.totalorder %s26, %s29
      %p35 = scmp.eq.s32.totalorder %s16, 0
      %p36 = por %p34, %p35
      %p37 = scmp.ne.s32.totalorder %s26, %s29
      %p38 = scmp.eq.s32.totalorder %s21, 1
      %p39 = por %p37, %p38
      %p40 = scmp.ne.s32.totalorder %s29, %s30
      %p41 = scmp.eq.s32.totalorder %s21, 0
      %p42 = por %p40, %p41
      %p43 = scmp.ne.s32.totalorder %s29, %s30
      %p44 = scmp.eq.s32.totalorder %s22, 1
      %p45 = por %p43, %p44
      %p47 = scmp.ne.s32.totalorder %s30, %s46
      %p48 = scmp.eq.s32.totalorder %s22, 0
      %p49 = por %p47, %p48
      %s51 = sadd.s32 %s50, 1
      %p54 = scmp.eq.s32.totalorder %s16, 1
      %p55 = scmp.ne.s32.totalorder %s50, %s52
      %p56 = scmp.eq.s32.totalorder %s16, 0
      %p57 = por %p55, %p56
      %p58 = scmp.ne.s32.totalorder %s50, %s52
      %p59 = scmp.eq.s32.totalorder %s21, 1
      %p60 = por %p58, %p59
      %p61 = scmp.ne.s32.totalorder %s52, %s53
      %p62 = scmp.eq.s32.totalorder %s21, 0
      %p63 = por %p61, %p62
      %p64 = scmp.ne.s32.totalorder %s52, %s53
      %p65 = scmp.eq.s32.totalorder %s22, 1
      %p66 = por %p64, %p65
      %p68 = scmp.ne.s32.totalorder %s53, %s67
      %p69 = scmp.eq.s32.totalorder %s22, 0
      %p70 = por %p68, %p69
      %s72 = sadd.s32 %s71, 1
      %p75 = scmp.eq.s32.totalorder %s16, 1
      %p76 = scmp.ne.s32.totalorder %s71, %s73
      %p77 = scmp.eq.s32.totalorder %s16, 0
      %p78 = por %p76, %p77
      %p79 = scmp.ne.s32.totalorder %s71, %s73
      %p80 = scmp.eq.s32.totalorder %s21, 1
      %p81 = por %p79, %p80
      %p82 = scmp.ne.s32.totalorder %s73, %s74
      %p83 = scmp.eq.s32.totalorder %s21, 0
      %p84 = por %p82, %p83
      %p85 = scmp.ne.s32.totalorder %s73, %s74
      %p86 = scmp.eq.s32.totalorder %s22, 1
      %p87 = por %p85, %p86
      %p89 = scmp.ne.s32.totalorder %s74, %s88
      %p90 = scmp.eq.s32.totalorder %s22, 0
      %p91 = por %p89, %p90
      %s93 = sadd.s32 %s92, 1
      %p96 = scmp.eq.s32.totalorder %s16, 1
      %p97 = scmp.ne.s32.totalorder %s92, %s94
      %p98 = scmp.eq.s32.totalorder %s16, 0
      %p99 = por %p97, %p98
      %p100 = scmp.ne.s32.totalorder %s92, %s94
      %p101 = scmp.eq.s32.totalorder %s21, 1
      %p102 = por %p100, %p101
      %p103 = scmp.ne.s32.totalorder %s94, %s95
      %p104 = scmp.eq.s32.totalorder %s21, 0
      %p105 = por %p103, %p104
      %p106 = scmp.ne.s32.totalorder %s94, %s95
      %p107 = scmp.eq.s32.totalorder %s22, 1
      %p108 = por %p106, %p107
      %p110 = scmp.ne.s32.totalorder %s95, %s109
      %p111 = scmp.eq.s32.totalorder %s22, 0
      %p112 = por %p110, %p111
      %s114 = sadd.s32 %s113, 1
      %p117 = scmp.eq.s32.totalorder %s16, 1
      %p118 = scmp.ne.s32.totalorder %s113, %s115
      %p119 = scmp.eq.s32.totalorder %s16, 0
      %p120 = por %p118, %p119
      %p121 = scmp.ne.s32.totalorder %s113, %s115
      %p122 = scmp.eq.s32.totalorder %s21, 1
      %p123 = por %p121, %p122
      %p124 = scmp.ne.s32.totalorder %s115, %s116
      %p125 = scmp.eq.s32.totalorder %s21, 0
      %p126 = por %p124, %p125
      %p127 = scmp.ne.s32.totalorder %s115, %s116
      %p128 = scmp.eq.s32.totalorder %s22, 1
      %p129 = por %p127, %p128
      %p131 = scmp.ne.s32.totalorder %s116, %s130
      %p132 = scmp.eq.s32.totalorder %s22, 0
      %p133 = por %p131, %p132
      %s135 = sadd.s32 %s134, 1
      %p138 = scmp.eq.s32.totalorder %s16, 1
      %p139 = scmp.ne.s32.totalorder %s134, %s136
      %p140 = scmp.eq.s32.totalorder %s16, 0
      %p141 = por %p139, %p140
      %p142 = scmp.ne.s32.totalorder %s134, %s136
      %p143 = scmp.eq.s32.totalorder %s21, 1
      %p144 = por %p142, %p143
      %p145 = scmp.ne.s32.totalorder %s136, %s137
      %p146 = scmp.eq.s32.totalorder %s21, 0
      %p147 = por %p145, %p146
      %p148 = scmp.ne.s32.totalorder %s136, %s137
      %p149 = scmp.eq.s32.totalorder %s22, 1
      %p150 = por %p148, %p149
      %p152 = scmp.ne.s32.totalorder %s137, %s151
      %p153 = scmp.eq.s32.totalorder %s22, 0
      %p154 = por %p152, %p153
      %s156 = sadd.s32 %s155, 1
      %p159 = scmp.eq.s32.totalorder %s16, 1
      %p160 = scmp.ne.s32.totalorder %s155, %s157
      %p161 = scmp.eq.s32.totalorder %s16, 0
      %p162 = por %p160, %p161
      %p163 = scmp.ne.s32.totalorder %s155, %s157
      %p164 = scmp.eq.s32.totalorder %s21, 1
      %p165 = por %p163, %p164
      %p166 = scmp.ne.s32.totalorder %s157, %s158
      %p167 = scmp.eq.s32.totalorder %s21, 0
      %p168 = por %p166, %p167
      %p169 = scmp.ne.s32.totalorder %s157, %s158
      %p170 = scmp.eq.s32.totalorder %s22, 1
      %p171 = por %p169, %p170
      %p173 = scmp.ne.s32.totalorder %s158, %s172
      %p174 = scmp.eq.s32.totalorder %s22, 0
      %p175 = por %p173, %p174
      %s176 = ssub.s32 %s16, %s23
      %p177 = scmp.eq.s32.totalorder %s176, 0
      %s179 = sadd.s32 %s178, 1
      %s180 = scalar_select %p177, %s178, %s179
      %p183 = pneg %p177
      %p184 = scmp.eq.s32.totalorder %s16, 1
      %p185 = por %p183, %p184
      %p186 = scmp.ne.s32.totalorder %s178, %s181
      %p187 = scmp.eq.s32.totalorder %s16, 0
      %p188 = por %p186, %p187
      %p189 = scmp.ne.s32.totalorder %s178, %s181
      %p190 = scmp.eq.s32.totalorder %s21, 1
      %p191 = por %p189, %p190
      %p192 = scmp.ne.s32.totalorder %s181, %s182
      %p193 = scmp.eq.s32.totalorder %s21, 0
      %p194 = por %p192, %p193
      %p195 = scmp.ne.s32.totalorder %s181, %s182
      %p196 = scmp.eq.s32.totalorder %s22, 1
      %p197 = por %p195, %p196
      %p199 = scmp.ne.s32.totalorder %s182, %s198
      %p200 = scmp.eq.s32.totalorder %s22, 0
      %p201 = por %p199, %p200
      %p202 = scmp.le.s32.totalorder 1, %s16
      %p203 = scmp.lt.s32.totalorder %s16, 3
      %p204 = pnand %p202, %p203
      %p205 = pneg %p204
      // Predicated region
      $region9: #{backbone_forward.1} parent=5 // pred_check
        _
      $region10: #{backbone_forward.1} parent=5 // pred_check_branch
        %207 = sbr.rel (%p204) target = $region12
      $region11: #{backbone_forward.1} parent=5 // pred_region
        %s208 = ssub.s32 %s16, 1
        // Predicated region
        $region13: #{backbone_forward.1} parent=11 // pred_check
          %p209 = pneg %p63
        $region14: #{backbone_forward.1} parent=11 // pred_check_branch
          %211 = sbr.rel (%p209) target = $region16
        $region15: #{backbone_forward.1} parent=11 // pred_region
          _
        $region16: #{backbone_forward.1} parent=11 // pred_fallthru
          _
        // Predicated region
        $region17: #{backbone_forward.1} parent=11 // pred_check
          %p212 = pneg %p84
        $region18: #{backbone_forward.1} parent=11 // pred_check_branch
          %214 = sbr.rel (%p212) target = $region20
        $region19: #{backbone_forward.1} parent=11 // pred_region
          _
        $region20: #{backbone_forward.1} parent=11 // pred_fallthru
          _
        // Predicated region
        $region21: #{backbone_forward.1} parent=11 // pred_check
          %p215 = pneg %p105
        $region22: #{backbone_forward.1} parent=11 // pred_check_branch
          %217 = sbr.rel (%p215) target = $region24
        $region23: #{backbone_forward.1} parent=11 // pred_region
          _
        $region24: #{backbone_forward.1} parent=11 // pred_fallthru
          _
        // Predicated region
        $region25: #{backbone_forward.1} parent=11 // pred_check
          %p218 = pneg %p126
        $region26: #{backbone_forward.1} parent=11 // pred_check_branch
          %220 = sbr.rel (%p218) target = $region28
        $region27: #{backbone_forward.1} parent=11 // pred_region
          _
        $region28: #{backbone_forward.1} parent=11 // pred_fallthru
          _
        // Predicated region
        $region29: #{backbone_forward.1} parent=11 // pred_check
          %p221 = pneg %p147
        $region30: #{backbone_forward.1} parent=11 // pred_check_branch
          %223 = sbr.rel (%p221) target = $region32
        $region31: #{backbone_forward.1} parent=11 // pred_region
          _
        $region32: #{backbone_forward.1} parent=11 // pred_fallthru
          _
        // Predicated region
        $region33: #{backbone_forward.1} parent=11 // pred_check
          %p224 = pneg %p168
        $region34: #{backbone_forward.1} parent=11 // pred_check_branch
          %226 = sbr.rel (%p224) target = $region36
        $region35: #{backbone_forward.1} parent=11 // pred_region
          _
        $region36: #{backbone_forward.1} parent=11 // pred_fallthru
          _
      $region12: #{backbone_forward.1} parent=5 // pred_fallthru
        _
      %p227 = scmp.lt.s32.totalorder %s16, 2
      // Predicated region
      $region37: #{backbone_forward.1} parent=5 // pred_check
        %p228 = pneg %p227
      $region38: #{backbone_forward.1} parent=5 // pred_check_branch
        %230 = sbr.rel (%p228) target = $region40
      $region39: #{backbone_forward.1} parent=5 // pred_region
        // Predicated region
        $region41: #{backbone_forward.1} parent=39 // pred_check
          %p231 = pneg %p36
        $region42: #{backbone_forward.1} parent=39 // pred_check_branch
          %233 = sbr.rel (%p231) target = $region44
        $region43: #{backbone_forward.1} parent=39 // pred_region
          %p234 = scmp.lt.s32.totalorder %s16, 1
          %s235 = scalar_select %p234, %s16, 1
          %s236 = smul.addr %s235, 41
          %s237 = smul.addr %s236, 8
          %s238 = scalar_lea.vmem %s0, %s237
        $region44: #{backbone_forward.1} parent=39 // pred_fallthru
          _
      $region40: #{backbone_forward.1} parent=5 // pred_fallthru
        _
      %p239 = scmp.le.s32.totalorder 1, %s16
      %p240 = scmp.lt.s32.totalorder %s16, 3
      %p241 = pnand %p239, %p240
      %p242 = pneg %p241
      // Predicated region
      $region45: #{backbone_forward.1} parent=5 // pred_check
        _
      $region46: #{backbone_forward.1} parent=5 // pred_check_branch
        %244 = sbr.rel (%p241) target = $region48
      $region47: #{backbone_forward.1} parent=5 // pred_region
        %s245 = ssub.s32 %s16, 1
        %p246 = scmp.lt.s32.totalorder %s21, 1
        %s247 = scalar_select %p246, %s21, 1
        %s248 = smul.addr %s247, 41
        %s249 = smul.addr %s248, 8
        %s250 = scalar_lea.vmem %s0, %s249
        %p251 = pneg %p42
        %p252 = pneg %p39
        %p253 = pneg %p63
        %p254 = pneg %p60
        %p255 = pneg %p84
        %p256 = pneg %p81
        %p257 = pneg %p105
        %p258 = pneg %p102
        %p259 = pneg %p126
        %p260 = pneg %p123
        %p261 = pneg %p147
        %p262 = pneg %p144
        %p263 = pneg %p168
        %p264 = pneg %p165
        %p265 = pneg %p194
        %p266 = pneg %p191
        %s267 = sand.u32 %s181, 1
        %s268 = scalar_lea.sflag [#allocation3], %s267
        %s269 = sand.u32 %s181, 1
        %s270 = scalar_lea.vmem [#allocation2], %s269
        %p271 = scmp.lt.s32.totalorder %s21, 1
        %s272 = scalar_select %p271, %s21, 1
        %s273 = smul.addr %s272, 41
        %s274 = smul.addr %s273, 8
        %s275 = scalar_lea.vmem %s0, %s274
        %v276 = vld [vmem:[%s275] sm:$0xff]
        %v277 = vld [vmem:[%s275 + $0x8] sm:$0xff]
        %v278 = vld [vmem:[%s275 + $0x10] sm:$0xff]
        %v279 = vld [vmem:[%s275 + $0x18] sm:$0xff]
        %v280 = vld [vmem:[%s275 + $0x20] sm:$0xff]
        %v281 = vld [vmem:[%s275 + $0x28] sm:$0xff]
        %v282 = vld [vmem:[%s275 + $0x30] sm:$0xff]
        %v283 = vld [vmem:[%s275 + $0x38] sm:$0xff]
        %v284 = vld [vmem:[%s275 + $0x40] sm:$0xff]
        %v285 = vld [vmem:[%s275 + $0x48] sm:$0xff]
        %v286 = vld [vmem:[%s275 + $0x50] sm:$0xff]
        %v287 = vld [vmem:[%s275 + $0x58] sm:$0xff]
        %v288 = vld [vmem:[%s275 + $0x60] sm:$0xff]
        %v289 = vld [vmem:[%s275 + $0x68] sm:$0xff]
        %v290 = vld [vmem:[%s275 + $0x70] sm:$0xff]
        %v291 = vld [vmem:[%s275 + $0x78] sm:$0xff]
        %v292 = vld [vmem:[%s275 + $0x80] sm:$0xff]
        %v293 = vld [vmem:[%s275 + $0x88] sm:$0xff]
        %v294 = vld [vmem:[%s275 + $0x90] sm:$0xff]
        %v295 = vld [vmem:[%s275 + $0x98] sm:$0xff]
        %v296 = vld [vmem:[%s275 + $0xa0] sm:$0xff]
        %v297 = vld [vmem:[%s275 + $0xa8] sm:$0xff]
        %v298 = vld [vmem:[%s275 + $0xb0] sm:$0xff]
        %v299 = vld [vmem:[%s275 + $0xb8] sm:$0xff]
        %v300 = vld [vmem:[%s275 + $0xc0] sm:$0xff]
        %v301 = vld [vmem:[%s275 + $0xc8] sm:$0xff]
        %v302 = vld [vmem:[%s275 + $0xd0] sm:$0xff]
        %v303 = vld [vmem:[%s275 + $0xd8] sm:$0xff]
        %v304 = vld [vmem:[%s275 + $0xe0] sm:$0xff]
        %v305 = vld [vmem:[%s275 + $0xe8] sm:$0xff]
        %v306 = vld [vmem:[%s275 + $0xf0] sm:$0xff]
        %v307 = vld [vmem:[%s275 + $0xf8] sm:$0xff]
        %v308 = vld [vmem:[%s275 + $0x100] sm:$0xff]
        %v309 = vld [vmem:[%s275 + $0x108] sm:$0xff]
        %v310 = vld [vmem:[%s275 + $0x110] sm:$0xff]
        %v311 = vld [vmem:[%s275 + $0x118] sm:$0xff]
        %v312 = vld [vmem:[%s275 + $0x120] sm:$0xff]
        %v313 = vld [vmem:[%s275 + $0x128] sm:$0xff]
        %v314 = vld [vmem:[%s275 + $0x130] sm:$0xff]
        %v315 = vld [vmem:[%s275 + $0x138] sm:$0xff]
        %v316 = vld [vmem:[%s275 + $0x140] sm:$0xf]
        %v317 = vld [vmem:[%s1] sm:$0xff]
        %v318 = vld [vmem:[%s1 + $0x8] sm:$0xff]
        %vm355 = vcmask 1046528
        %v356 = vrot.slane %v276, 1
        %v357 = vrot.slane %v277, 1
        %v358 = vsel %vm355, %v356, %v357
        %v359 = vrot.slane %v278, 1
        %v360 = vsel %vm355, %v357, %v359
        %v361 = vrot.slane %v279, 1
        %v362 = vsel %vm355, %v359, %v361
        %v363 = vrot.slane %v280, 1
        %v364 = vsel %vm355, %v361, %v363
        %v365 = vrot.slane %v281, 1
        %v366 = vsel %vm355, %v363, %v365
        %v367 = vrot.slane %v282, 1
        %v368 = vsel %vm355, %v365, %v367
        %v369 = vrot.slane %v283, 1
        %v370 = vsel %vm355, %v367, %v369
        %v371 = vrot.slane %v284, 1
        %v372 = vsel %vm355, %v369, %v371
        %v373 = vrot.slane %v285, 1
        %v374 = vsel %vm355, %v371, %v373
        %v375 = vrot.slane %v286, 1
        %v376 = vsel %vm355, %v373, %v375
        %v377 = vrot.slane %v287, 1
        %v378 = vsel %vm355, %v375, %v377
        %v379 = vrot.slane %v288, 1
        %v380 = vsel %vm355, %v377, %v379
        %v381 = vrot.slane %v289, 1
        %v382 = vsel %vm355, %v379, %v381
        %v383 = vrot.slane %v290, 1
        %v384 = vsel %vm355, %v381, %v383
        %v385 = vrot.slane %v291, 1
        %v386 = vsel %vm355, %v383, %v385
        %v387 = vrot.slane %v292, 1
        %v388 = vsel %vm355, %v385, %v387
        %v389 = vrot.slane %v293, 1
        %v390 = vsel %vm355, %v387, %v389
        %v391 = vrot.slane %v294, 1
        %v392 = vsel %vm355, %v389, %v391
        %v393 = vrot.slane %v295, 1
        %v394 = vsel %vm355, %v391, %v393
        %v395 = vrot.slane %v296, 1
        %v396 = vsel %vm355, %v393, %v395
        %v397 = vrot.slane %v297, 1
        %v398 = vsel %vm355, %v395, %v397
        %v399 = vrot.slane %v298, 1
        %v400 = vsel %vm355, %v397, %v399
        %v401 = vrot.slane %v299, 1
        %v402 = vsel %vm355, %v399, %v401
        %v403 = vrot.slane %v300, 1
        %v404 = vsel %vm355, %v401, %v403
        %v405 = vrot.slane %v301, 1
        %v406 = vsel %vm355, %v403, %v405
        %v407 = vrot.slane %v302, 1
        %v408 = vsel %vm355, %v405, %v407
        %v409 = vrot.slane %v303, 1
        %v410 = vsel %vm355, %v407, %v409
        %v411 = vrot.slane %v304, 1
        %v412 = vsel %vm355, %v409, %v411
        %v413 = vrot.slane %v305, 1
        %v414 = vsel %vm355, %v411, %v413
        %v415 = vrot.slane %v306, 1
        %v416 = vsel %vm355, %v413, %v415
        %v417 = vrot.slane %v307, 1
        %v418 = vsel %vm355, %v415, %v417
        %v419 = vrot.slane %v308, 1
        %v420 = vsel %vm355, %v417, %v419
        %v421 = vrot.slane %v309, 1
        %v422 = vsel %vm355, %v419, %v421
        %v423 = vrot.slane %v310, 1
        %v424 = vsel %vm355, %v421, %v423
        %v425 = vrot.slane %v311, 1
        %v426 = vsel %vm355, %v423, %v425
        %vm427 = vcmask 64512
        %v428 = vsel %vm427, %v358, 0
        %v430 = vsel %vm427, %v360, 0
        %v432 = vsel %vm427, %v362, 0
        %v434 = vsel %vm427, %v364, 0
        %v436 = vsel %vm427, %v366, 0
        %v438 = vsel %vm427, %v368, 0
        %v440 = vsel %vm427, %v370, 0
        %v442 = vsel %vm427, %v372, 0
        %v444 = vsel %vm427, %v374, 0
        %v446 = vsel %vm427, %v376, 0
        %v448 = vsel %vm427, %v378, 0
        %v450 = vsel %vm427, %v380, 0
        %v452 = vsel %vm427, %v382, 0
        %v454 = vsel %vm427, %v384, 0
        %v456 = vsel %vm427, %v386, 0
        %v458 = vsel %vm427, %v388, 0
        %v460 = vsel %vm427, %v390, 0
        %v462 = vsel %vm427, %v392, 0
        %v464 = vsel %vm427, %v394, 0
        %v466 = vsel %vm427, %v396, 0
        %v468 = vsel %vm427, %v398, 0
        %v470 = vsel %vm427, %v400, 0
        %v472 = vsel %vm427, %v402, 0
        %v474 = vsel %vm427, %v404, 0
        %v476 = vsel %vm427, %v406, 0
        %v478 = vsel %vm427, %v408, 0
        %v480 = vsel %vm427, %v410, 0
        %v482 = vsel %vm427, %v412, 0
        %v484 = vsel %vm427, %v414, 0
        %v486 = vsel %vm427, %v416, 0
        %v488 = vsel %vm427, %v418, 0
        %v490 = vsel %vm427, %v420, 0
        %v492 = vsel %vm427, %v422, 0
        %v494 = vsel %vm427, %v424, 0
        %v496 = vsel %vm427, %v426, 0
        %v498 = vsel %vm427, %v425, 0
        %500 = vmatpush.msra.mxu0 0.0
        %501 = vmatpush.msra.mxu0 0.0
        %502 = vmatpush.msra.mxu0 0.0
        %503 = vmatpush.msra.mxu0 0.0
        %504 = vmatpush.msra.mxu0 0.0
        %505 = vmatpush.msra.mxu0 0.0
        %506 = vmatpush.msra.mxu0 0.0
        %507 = vmatpush.msra.mxu0 0.0
        %508 = vmatpush.msra.mxu0 0.0
        %509 = vmatpush.msra.mxu0 0.0
        %510 = vmatpush.msra.mxu0 0.0
        %511 = vmatpush.msra.mxu0 0.0
        %512 = vmatpush.msra.mxu0 0.0
        %513 = vmatpush.msra.mxu0 0.0
        %514 = vmatpush.msra.mxu0 0.0
        %515 = vmatpush.msra.mxu0 %v318
        %516 = vmatmul.f32.gmra.mxu0 %v428
        %v517 = vpop.f32.mrf.mxu0
        %v518 = vadd.f32 0.0, %v517
        %519 = vmatmul.f32.gmra.mxu0 %v430
        %v520 = vpop.f32.mrf.mxu0
        %v521 = vadd.f32 0.0, %v520
        %522 = vmatmul.f32.gmra.mxu0 %v432
        %v523 = vpop.f32.mrf.mxu0
        %v524 = vadd.f32 0.0, %v523
        %525 = vmatmul.f32.gmra.mxu0 %v434
        %v526 = vpop.f32.mrf.mxu0
        %v527 = vadd.f32 0.0, %v526
        %528 = vmatmul.f32.gmra.mxu0 %v436
        %v529 = vpop.f32.mrf.mxu0
        %v530 = vadd.f32 0.0, %v529
        %531 = vmatmul.f32.gmra.mxu0 %v438
        %v532 = vpop.f32.mrf.mxu0
        %v533 = vadd.f32 0.0, %v532
        %534 = vmatmul.f32.gmra.mxu0 %v440
        %v535 = vpop.f32.mrf.mxu0
        %v536 = vadd.f32 0.0, %v535
        %537 = vmatmul.f32.gmra.mxu0 %v442
        %v538 = vpop.f32.mrf.mxu0
        %v539 = vadd.f32 0.0, %v538
        %540 = vmatmul.f32.gmra.mxu0 %v444
        %v541 = vpop.f32.mrf.mxu0
        %v542 = vadd.f32 0.0, %v541
        %543 = vmatmul.f32.gmra.mxu0 %v446
        %v544 = vpop.f32.mrf.mxu0
        %v545 = vadd.f32 0.0, %v544
        %546 = vmatmul.f32.gmra.mxu0 %v448
        %v547 = vpop.f32.mrf.mxu0
        %v548 = vadd.f32 0.0, %v547
        %549 = vmatmul.f32.gmra.mxu0 %v450
        %v550 = vpop.f32.mrf.mxu0
        %v551 = vadd.f32 0.0, %v550
        %552 = vmatmul.f32.gmra.mxu0 %v452
        %v553 = vpop.f32.mrf.mxu0
        %v554 = vadd.f32 0.0, %v553
        %555 = vmatmul.f32.gmra.mxu0 %v454
        %v556 = vpop.f32.mrf.mxu0
        %v557 = vadd.f32 0.0, %v556
        %558 = vmatmul.f32.gmra.mxu0 %v456
        %v559 = vpop.f32.mrf.mxu0
        %v560 = vadd.f32 0.0, %v559
        %561 = vmatmul.f32.gmra.mxu0 %v458
        %v562 = vpop.f32.mrf.mxu0
        %v563 = vadd.f32 0.0, %v562
        %564 = vmatmul.f32.gmra.mxu0 %v460
        %v565 = vpop.f32.mrf.mxu0
        %v566 = vadd.f32 0.0, %v565
        %567 = vmatmul.f32.gmra.mxu0 %v462
        %v568 = vpop.f32.mrf.mxu0
        %v569 = vadd.f32 0.0, %v568
        %570 = vmatmul.f32.gmra.mxu0 %v464
        %v571 = vpop.f32.mrf.mxu0
        %v572 = vadd.f32 0.0, %v571
        %573 = vmatmul.f32.gmra.mxu0 %v466
        %v574 = vpop.f32.mrf.mxu0
        %v575 = vadd.f32 0.0, %v574
        %576 = vmatmul.f32.gmra.mxu0 %v468
        %v577 = vpop.f32.mrf.mxu0
        %v578 = vadd.f32 0.0, %v577
        %579 = vmatmul.f32.gmra.mxu0 %v470
        %v580 = vpop.f32.mrf.mxu0
        %v581 = vadd.f32 0.0, %v580
        %582 = vmatmul.f32.gmra.mxu0 %v472
        %v583 = vpop.f32.mrf.mxu0
        %v584 = vadd.f32 0.0, %v583
        %585 = vmatmul.f32.gmra.mxu0 %v474
        %v586 = vpop.f32.mrf.mxu0
        %v587 = vadd.f32 0.0, %v586
        %588 = vmatmul.f32.gmra.mxu0 %v476
        %v589 = vpop.f32.mrf.mxu0
        %v590 = vadd.f32 0.0, %v589
        %591 = vmatmul.f32.gmra.mxu0 %v478
        %v592 = vpop.f32.mrf.mxu0
        %v593 = vadd.f32 0.0, %v592
        %594 = vmatmul.f32.gmra.mxu0 %v480
        %v595 = vpop.f32.mrf.mxu0
        %v596 = vadd.f32 0.0, %v595
        %597 = vmatmul.f32.gmra.mxu0 %v482
        %v598 = vpop.f32.mrf.mxu0
        %v599 = vadd.f32 0.0, %v598
        %600 = vmatmul.f32.gmra.mxu0 %v484
        %v601 = vpop.f32.mrf.mxu0
        %v602 = vadd.f32 0.0, %v601
        %603 = vmatmul.f32.gmra.mxu0 %v486
        %v604 = vpop.f32.mrf.mxu0
        %v605 = vadd.f32 0.0, %v604
        %606 = vmatmul.f32.gmra.mxu0 %v488
        %v607 = vpop.f32.mrf.mxu0
        %v608 = vadd.f32 0.0, %v607
        %609 = vmatmul.f32.gmra.mxu0 %v490
        %v610 = vpop.f32.mrf.mxu0
        %v611 = vadd.f32 0.0, %v610
        %612 = vmatmul.f32.gmra.mxu0 %v492
        %v613 = vpop.f32.mrf.mxu0
        %v614 = vadd.f32 0.0, %v613
        %615 = vmatmul.f32.gmra.mxu0 %v494
        %v616 = vpop.f32.mrf.mxu0
        %v617 = vadd.f32 0.0, %v616
        %618 = vmatmul.f32.gmra.mxu0 %v496
        %v619 = vpop.f32.mrf.mxu0
        %v620 = vadd.f32 0.0, %v619
        %621 = vmatmul.f32.gmra.mxu0 %v498
        %v622 = vpop.f32.mrf.mxu0
        %v623 = vadd.f32 0.0, %v622
        %624 = vdwg.mxu0
        %v625 = vsel %vm427, %v276, 0
        %v627 = vsel %vm427, %v277, 0
        %v629 = vsel %vm427, %v278, 0
        %v631 = vsel %vm427, %v279, 0
        %v633 = vsel %vm427, %v280, 0
        %v635 = vsel %vm427, %v281, 0
        %v637 = vsel %vm427, %v282, 0
        %v639 = vsel %vm427, %v283, 0
        %v641 = vsel %vm427, %v284, 0
        %v643 = vsel %vm427, %v285, 0
        %v645 = vsel %vm427, %v286, 0
        %v647 = vsel %vm427, %v287, 0
        %v649 = vsel %vm427, %v288, 0
        %v651 = vsel %vm427, %v289, 0
        %v653 = vsel %vm427, %v290, 0
        %v655 = vsel %vm427, %v291, 0
        %v657 = vsel %vm427, %v292, 0
        %v659 = vsel %vm427, %v293, 0
        %v661 = vsel %vm427, %v294, 0
        %v663 = vsel %vm427, %v295, 0
        %v665 = vsel %vm427, %v296, 0
        %v667 = vsel %vm427, %v297, 0
        %v669 = vsel %vm427, %v298, 0
        %v671 = vsel %vm427, %v299, 0
        %v673 = vsel %vm427, %v300, 0
        %v675 = vsel %vm427, %v301, 0
        %v677 = vsel %vm427, %v302, 0
        %v679 = vsel %vm427, %v303, 0
        %v681 = vsel %vm427, %v304, 0
        %v683 = vsel %vm427, %v305, 0
        %v685 = vsel %vm427, %v306, 0
        %v687 = vsel %vm427, %v307, 0
        %v689 = vsel %vm427, %v308, 0
        %v691 = vsel %vm427, %v309, 0
        %v693 = vsel %vm427, %v310, 0
        %v695 = vsel %vm427, %v311, 0
        %697 = vmatpush.msra.mxu0 0.0
        %698 = vmatpush.msra.mxu0 0.0
        %699 = vmatpush.msra.mxu0 0.0
        %700 = vmatpush.msra.mxu0 0.0
        %701 = vmatpush.msra.mxu0 0.0
        %702 = vmatpush.msra.mxu0 0.0
        %703 = vmatpush.msra.mxu0 0.0
        %704 = vmatpush.msra.mxu0 0.0
        %705 = vmatpush.msra.mxu0 0.0
        %706 = vmatpush.msra.mxu0 0.0
        %707 = vmatpush.msra.mxu0 0.0
        %708 = vmatpush.msra.mxu0 0.0
        %709 = vmatpush.msra.mxu0 0.0
        %710 = vmatpush.msra.mxu0 0.0
        %711 = vmatpush.msra.mxu0 0.0
        %712 = vmatpush.msra.mxu0 %v317
        %713 = vmatmul.f32.gmra.mxu0 %v625
        %v714 = vpop.f32.mrf.mxu0
        %v715 = vadd.f32 %v518, %v714
        %716 = vmatmul.f32.gmra.mxu0 %v627
        %v717 = vpop.f32.mrf.mxu0
        %v718 = vadd.f32 %v521, %v717
        %719 = vmatmul.f32.gmra.mxu0 %v629
        %v720 = vpop.f32.mrf.mxu0
        %v721 = vadd.f32 %v524, %v720
        %722 = vmatmul.f32.gmra.mxu0 %v631
        %v723 = vpop.f32.mrf.mxu0
        %v724 = vadd.f32 %v527, %v723
        %725 = vmatmul.f32.gmra.mxu0 %v633
        %v726 = vpop.f32.mrf.mxu0
        %v727 = vadd.f32 %v530, %v726
        %728 = vmatmul.f32.gmra.mxu0 %v635
        %v729 = vpop.f32.mrf.mxu0
        %v730 = vadd.f32 %v533, %v729
        %731 = vmatmul.f32.gmra.mxu0 %v637
        %v732 = vpop.f32.mrf.mxu0
        %v733 = vadd.f32 %v536, %v732
        %734 = vmatmul.f32.gmra.mxu0 %v639
        %v735 = vpop.f32.mrf.mxu0
        %v736 = vadd.f32 %v539, %v735
        %737 = vmatmul.f32.gmra.mxu0 %v641
        %v738 = vpop.f32.mrf.mxu0
        %v739 = vadd.f32 %v542, %v738
        %740 = vmatmul.f32.gmra.mxu0 %v643
        %v741 = vpop.f32.mrf.mxu0
        %v742 = vadd.f32 %v545, %v741
        %743 = vmatmul.f32.gmra.mxu0 %v645
        %v744 = vpop.f32.mrf.mxu0
        %v745 = vadd.f32 %v548, %v744
        %746 = vmatmul.f32.gmra.mxu0 %v647
        %v747 = vpop.f32.mrf.mxu0
        %v748 = vadd.f32 %v551, %v747
        %749 = vmatmul.f32.gmra.mxu0 %v649
        %v750 = vpop.f32.mrf.mxu0
        %v751 = vadd.f32 %v554, %v750
        %752 = vmatmul.f32.gmra.mxu0 %v651
        %v753 = vpop.f32.mrf.mxu0
        %v754 = vadd.f32 %v557, %v753
        %755 = vmatmul.f32.gmra.mxu0 %v653
        %v756 = vpop.f32.mrf.mxu0
        %v757 = vadd.f32 %v560, %v756
        %758 = vmatmul.f32.gmra.mxu0 %v655
        %v759 = vpop.f32.mrf.mxu0
        %v760 = vadd.f32 %v563, %v759
        %761 = vmatmul.f32.gmra.mxu0 %v657
        %v762 = vpop.f32.mrf.mxu0
        %v763 = vadd.f32 %v566, %v762
        %764 = vmatmul.f32.gmra.mxu0 %v659
        %v765 = vpop.f32.mrf.mxu0
        %v766 = vadd.f32 %v569, %v765
        %767 = vmatmul.f32.gmra.mxu0 %v661
        %v768 = vpop.f32.mrf.mxu0
        %v769 = vadd.f32 %v572, %v768
        %770 = vmatmul.f32.gmra.mxu0 %v663
        %v771 = vpop.f32.mrf.mxu0
        %v772 = vadd.f32 %v575, %v771
        %773 = vmatmul.f32.gmra.mxu0 %v665
        %v774 = vpop.f32.mrf.mxu0
        %v775 = vadd.f32 %v578, %v774
        %776 = vmatmul.f32.gmra.mxu0 %v667
        %v777 = vpop.f32.mrf.mxu0
        %v778 = vadd.f32 %v581, %v777
        %779 = vmatmul.f32.gmra.mxu0 %v669
        %v780 = vpop.f32.mrf.mxu0
        %v781 = vadd.f32 %v584, %v780
        %782 = vmatmul.f32.gmra.mxu0 %v671
        %v783 = vpop.f32.mrf.mxu0
        %v784 = vadd.f32 %v587, %v783
        %785 = vmatmul.f32.gmra.mxu0 %v673
        %v786 = vpop.f32.mrf.mxu0
        %v787 = vadd.f32 %v590, %v786
        %788 = vmatmul.f32.gmra.mxu0 %v675
        %v789 = vpop.f32.mrf.mxu0
        %v790 = vadd.f32 %v593, %v789
        %791 = vmatmul.f32.gmra.mxu0 %v677
        %v792 = vpop.f32.mrf.mxu0
        %v793 = vadd.f32 %v596, %v792
        %794 = vmatmul.f32.gmra.mxu0 %v679
        %v795 = vpop.f32.mrf.mxu0
        %v796 = vadd.f32 %v599, %v795
        %797 = vmatmul.f32.gmra.mxu0 %v681
        %v798 = vpop.f32.mrf.mxu0
        %v799 = vadd.f32 %v602, %v798
        %800 = vmatmul.f32.gmra.mxu0 %v683
        %v801 = vpop.f32.mrf.mxu0
        %v802 = vadd.f32 %v605, %v801
        %803 = vmatmul.f32.gmra.mxu0 %v685
        %v804 = vpop.f32.mrf.mxu0
        %v805 = vadd.f32 %v608, %v804
        %806 = vmatmul.f32.gmra.mxu0 %v687
        %v807 = vpop.f32.mrf.mxu0
        %v808 = vadd.f32 %v611, %v807
        %809 = vmatmul.f32.gmra.mxu0 %v689
        %v810 = vpop.f32.mrf.mxu0
        %v811 = vadd.f32 %v614, %v810
        %812 = vmatmul.f32.gmra.mxu0 %v691
        %v813 = vpop.f32.mrf.mxu0
        %v814 = vadd.f32 %v617, %v813
        %815 = vmatmul.f32.gmra.mxu0 %v693
        %v816 = vpop.f32.mrf.mxu0
        %v817 = vadd.f32 %v620, %v816
        %818 = vmatmul.f32.gmra.mxu0 %v695
        %v819 = vpop.f32.mrf.mxu0
        %v820 = vadd.f32 %v623, %v819
        %821 = vdwg.mxu0
        %v822 = vld [vmem:[%s1 + $0x10] sm:$0xff]
        %vm823 = vcmask 1045504
        %v824 = vrot.slane %v276, 2
        %v825 = vrot.slane %v277, 2
        %v826 = vsel %vm823, %v824, %v825
        %v827 = vrot.slane %v278, 2
        %v828 = vsel %vm823, %v825, %v827
        %v829 = vrot.slane %v279, 2
        %v830 = vsel %vm823, %v827, %v829
        %v831 = vrot.slane %v280, 2
        %v832 = vsel %vm823, %v829, %v831
        %v833 = vrot.slane %v281, 2
        %v834 = vsel %vm823, %v831, %v833
        %v835 = vrot.slane %v282, 2
        %v836 = vsel %vm823, %v833, %v835
        %v837 = vrot.slane %v283, 2
        %v838 = vsel %vm823, %v835, %v837
        %v839 = vrot.slane %v284, 2
        %v840 = vsel %vm823, %v837, %v839
        %v841 = vrot.slane %v285, 2
        %v842 = vsel %vm823, %v839, %v841
        %v843 = vrot.slane %v286, 2
        %v844 = vsel %vm823, %v841, %v843
        %v845 = vrot.slane %v287, 2
        %v846 = vsel %vm823, %v843, %v845
        %v847 = vrot.slane %v288, 2
        %v848 = vsel %vm823, %v845, %v847
        %v849 = vrot.slane %v289, 2
        %v850 = vsel %vm823, %v847, %v849
        %v851 = vrot.slane %v290, 2
        %v852 = vsel %vm823, %v849, %v851
        %v853 = vrot.slane %v291, 2
        %v854 = vsel %vm823, %v851, %v853
        %v855 = vrot.slane %v292, 2
        %v856 = vsel %vm823, %v853, %v855
        %v857 = vrot.slane %v293, 2
        %v858 = vsel %vm823, %v855, %v857
        %v859 = vrot.slane %v294, 2
        %v860 = vsel %vm823, %v857, %v859
        %v861 = vrot.slane %v295, 2
        %v862 = vsel %vm823, %v859, %v861
        %v863 = vrot.slane %v296, 2
        %v864 = vsel %vm823, %v861, %v863
        %v865 = vrot.slane %v297, 2
        %v866 = vsel %vm823, %v863, %v865
        %v867 = vrot.slane %v298, 2
        %v868 = vsel %vm823, %v865, %v867
        %v869 = vrot.slane %v299, 2
        %v870 = vsel %vm823, %v867, %v869
        %v871 = vrot.slane %v300, 2
        %v872 = vsel %vm823, %v869, %v871
        %v873 = vrot.slane %v301, 2
        %v874 = vsel %vm823, %v871, %v873
        %v875 = vrot.slane %v302, 2
        %v876 = vsel %vm823, %v873, %v875
        %v877 = vrot.slane %v303, 2
        %v878 = vsel %vm823, %v875, %v877
        %v879 = vrot.slane %v304, 2
        %v880 = vsel %vm823, %v877, %v879
        %v881 = vrot.slane %v305, 2
        %v882 = vsel %vm823, %v879, %v881
        %v883 = vrot.slane %v306, 2
        %v884 = vsel %vm823, %v881, %v883
        %v885 = vrot.slane %v307, 2
        %v886 = vsel %vm823, %v883, %v885
        %v887 = vrot.slane %v308, 2
        %v888 = vsel %vm823, %v885, %v887
        %v889 = vrot.slane %v309, 2
        %v890 = vsel %vm823, %v887, %v889
        %v891 = vrot.slane %v310, 2
        %v892 = vsel %vm823, %v889, %v891
        %v893 = vrot.slane %v311, 2
        %v894 = vsel %vm823, %v891, %v893
        %v895 = vsel %vm427, %v826, 0
        %v897 = vsel %vm427, %v828, 0
        %v899 = vsel %vm427, %v830, 0
        %v901 = vsel %vm427, %v832, 0
        %v903 = vsel %vm427, %v834, 0
        %v905 = vsel %vm427, %v836, 0
        %v907 = vsel %vm427, %v838, 0
        %v909 = vsel %vm427, %v840, 0
        %v911 = vsel %vm427, %v842, 0
        %v913 = vsel %vm427, %v844, 0
        %v915 = vsel %vm427, %v846, 0
        %v917 = vsel %vm427, %v848, 0
        %v919 = vsel %vm427, %v850, 0
        %v921 = vsel %vm427, %v852, 0
        %v923 = vsel %vm427, %v854, 0
        %v925 = vsel %vm427, %v856, 0
        %v927 = vsel %vm427, %v858, 0
        %v929 = vsel %vm427, %v860, 0
        %v931 = vsel %vm427, %v862, 0
        %v933 = vsel %vm427, %v864, 0
        %v935 = vsel %vm427, %v866, 0
        %v937 = vsel %vm427, %v868, 0
        %v939 = vsel %vm427, %v870, 0
        %v941 = vsel %vm427, %v872, 0
        %v943 = vsel %vm427, %v874, 0
        %v945 = vsel %vm427, %v876, 0
        %v947 = vsel %vm427, %v878, 0
        %v949 = vsel %vm427, %v880, 0
        %v951 = vsel %vm427, %v882, 0
        %v953 = vsel %vm427, %v884, 0
        %v955 = vsel %vm427, %v886, 0
        %v957 = vsel %vm427, %v888, 0
        %v959 = vsel %vm427, %v890, 0
        %v961 = vsel %vm427, %v892, 0
        %v963 = vsel %vm427, %v894, 0
        %v965 = vsel %vm427, %v893, 0
        %967 = vmatpush.msra.mxu0 0.0
        %968 = vmatpush.msra.mxu0 0.0
        %969 = vmatpush.msra.mxu0 0.0
        %970 = vmatpush.msra.mxu0 0.0
        %971 = vmatpush.msra.mxu0 0.0
        %972 = vmatpush.msra.mxu0 0.0
        %973 = vmatpush.msra.mxu0 0.0
        %974 = vmatpush.msra.mxu0 0.0
        %975 = vmatpush.msra.mxu0 0.0
        %976 = vmatpush.msra.mxu0 0.0
        %977 = vmatpush.msra.mxu0 0.0
        %978 = vmatpush.msra.mxu0 0.0
        %979 = vmatpush.msra.mxu0 0.0
        %980 = vmatpush.msra.mxu0 0.0
        %981 = vmatpush.msra.mxu0 0.0
        %982 = vmatpush.msra.mxu0 %v822
        %983 = vmatmul.f32.gmra.mxu0 %v895
        %v984 = vpop.f32.mrf.mxu0
        %v985 = vadd.f32 0.0, %v984
        %986 = vmatmul.f32.gmra.mxu0 %v897
        %v987 = vpop.f32.mrf.mxu0
        %v988 = vadd.f32 0.0, %v987
        %989 = vmatmul.f32.gmra.mxu0 %v899
        %v990 = vpop.f32.mrf.mxu0
        %v991 = vadd.f32 0.0, %v990
        %992 = vmatmul.f32.gmra.mxu0 %v901
        %v993 = vpop.f32.mrf.mxu0
        %v994 = vadd.f32 0.0, %v993
        %995 = vmatmul.f32.gmra.mxu0 %v903
        %v996 = vpop.f32.mrf.mxu0
        %v997 = vadd.f32 0.0, %v996
        %998 = vmatmul.f32.gmra.mxu0 %v905
        %v999 = vpop.f32.mrf.mxu0
        %v1000 = vadd.f32 0.0, %v999
        %1001 = vmatmul.f32.gmra.mxu0 %v907
        %v1002 = vpop.f32.mrf.mxu0
        %v1003 = vadd.f32 0.0, %v1002
        %1004 = vmatmul.f32.gmra.mxu0 %v909
        %v1005 = vpop.f32.mrf.mxu0
        %v1006 = vadd.f32 0.0, %v1005
        %1007 = vmatmul.f32.gmra.mxu0 %v911
        %v1008 = vpop.f32.mrf.mxu0
        %v1009 = vadd.f32 0.0, %v1008
        %1010 = vmatmul.f32.gmra.mxu0 %v913
        %v1011 = vpop.f32.mrf.mxu0
        %v1012 = vadd.f32 0.0, %v1011
        %1013 = vmatmul.f32.gmra.mxu0 %v915
        %v1014 = vpop.f32.mrf.mxu0
        %v1015 = vadd.f32 0.0, %v1014
        %1016 = vmatmul.f32.gmra.mxu0 %v917
        %v1017 = vpop.f32.mrf.mxu0
        %v1018 = vadd.f32 0.0, %v1017
        %1019 = vmatmul.f32.gmra.mxu0 %v919
        %v1020 = vpop.f32.mrf.mxu0
        %v1021 = vadd.f32 0.0, %v1020
        %1022 = vmatmul.f32.gmra.mxu0 %v921
        %v1023 = vpop.f32.mrf.mxu0
        %v1024 = vadd.f32 0.0, %v1023
        %1025 = vmatmul.f32.gmra.mxu0 %v923
        %v1026 = vpop.f32.mrf.mxu0
        %v1027 = vadd.f32 0.0, %v1026
        %1028 = vmatmul.f32.gmra.mxu0 %v925
        %v1029 = vpop.f32.mrf.mxu0
        %v1030 = vadd.f32 0.0, %v1029
        %1031 = vmatmul.f32.gmra.mxu0 %v927
        %v1032 = vpop.f32.mrf.mxu0
        %v1033 = vadd.f32 0.0, %v1032
        %1034 = vmatmul.f32.gmra.mxu0 %v929
        %v1035 = vpop.f32.mrf.mxu0
        %v1036 = vadd.f32 0.0, %v1035
        %1037 = vmatmul.f32.gmra.mxu0 %v931
        %v1038 = vpop.f32.mrf.mxu0
        %v1039 = vadd.f32 0.0, %v1038
        %1040 = vmatmul.f32.gmra.mxu0 %v933
        %v1041 = vpop.f32.mrf.mxu0
        %v1042 = vadd.f32 0.0, %v1041
        %1043 = vmatmul.f32.gmra.mxu0 %v935
        %v1044 = vpop.f32.mrf.mxu0
        %v1045 = vadd.f32 0.0, %v1044
        %1046 = vmatmul.f32.gmra.mxu0 %v937
        %v1047 = vpop.f32.mrf.mxu0
        %v1048 = vadd.f32 0.0, %v1047
        %1049 = vmatmul.f32.gmra.mxu0 %v939
        %v1050 = vpop.f32.mrf.mxu0
        %v1051 = vadd.f32 0.0, %v1050
        %1052 = vmatmul.f32.gmra.mxu0 %v941
        %v1053 = vpop.f32.mrf.mxu0
        %v1054 = vadd.f32 0.0, %v1053
        %1055 = vmatmul.f32.gmra.mxu0 %v943
        %v1056 = vpop.f32.mrf.mxu0
        %v1057 = vadd.f32 0.0, %v1056
        %1058 = vmatmul.f32.gmra.mxu0 %v945
        %v1059 = vpop.f32.mrf.mxu0
        %v1060 = vadd.f32 0.0, %v1059
        %1061 = vmatmul.f32.gmra.mxu0 %v947
        %v1062 = vpop.f32.mrf.mxu0
        %v1063 = vadd.f32 0.0, %v1062
        %1064 = vmatmul.f32.gmra.mxu0 %v949
        %v1065 = vpop.f32.mrf.mxu0
        %v1066 = vadd.f32 0.0, %v1065
        %1067 = vmatmul.f32.gmra.mxu0 %v951
        %v1068 = vpop.f32.mrf.mxu0
        %v1069 = vadd.f32 0.0, %v1068
        %1070 = vmatmul.f32.gmra.mxu0 %v953
        %v1071 = vpop.f32.mrf.mxu0
        %v1072 = vadd.f32 0.0, %v1071
        %1073 = vmatmul.f32.gmra.mxu0 %v955
        %v1074 = vpop.f32.mrf.mxu0
        %v1075 = vadd.f32 0.0, %v1074
        %1076 = vmatmul.f32.gmra.mxu0 %v957
        %v1077 = vpop.f32.mrf.mxu0
        %v1078 = vadd.f32 0.0, %v1077
        %1079 = vmatmul.f32.gmra.mxu0 %v959
        %v1080 = vpop.f32.mrf.mxu0
        %v1081 = vadd.f32 0.0, %v1080
        %1082 = vmatmul.f32.gmra.mxu0 %v961
        %v1083 = vpop.f32.mrf.mxu0
        %v1084 = vadd.f32 0.0, %v1083
        %1085 = vmatmul.f32.gmra.mxu0 %v963
        %v1086 = vpop.f32.mrf.mxu0
        %v1087 = vadd.f32 0.0, %v1086
        %1088 = vmatmul.f32.gmra.mxu0 %v965
        %v1089 = vpop.f32.mrf.mxu0
        %v1090 = vadd.f32 0.0, %v1089
        %1091 = vdwg.mxu0
        %v1092 = vadd.f32 %v715, %v985
        %v1093 = vadd.f32 %v718, %v988
        %v1094 = vadd.f32 %v721, %v991
        %v1095 = vadd.f32 %v724, %v994
        %v1096 = vadd.f32 %v727, %v997
        %v1097 = vadd.f32 %v730, %v1000
        %v1098 = vadd.f32 %v733, %v1003
        %v1099 = vadd.f32 %v736, %v1006
        %v1100 = vadd.f32 %v739, %v1009
        %v1101 = vadd.f32 %v742, %v1012
        %v1102 = vadd.f32 %v745, %v1015
        %v1103 = vadd.f32 %v748, %v1018
        %v1104 = vadd.f32 %v751, %v1021
        %v1105 = vadd.f32 %v754, %v1024
        %v1106 = vadd.f32 %v757, %v1027
        %v1107 = vadd.f32 %v760, %v1030
        %v1108 = vadd.f32 %v763, %v1033
        %v1109 = vadd.f32 %v766, %v1036
        %v1110 = vadd.f32 %v769, %v1039
        %v1111 = vadd.f32 %v772, %v1042
        %v1112 = vadd.f32 %v775, %v1045
        %v1113 = vadd.f32 %v778, %v1048
        %v1114 = vadd.f32 %v781, %v1051
        %v1115 = vadd.f32 %v784, %v1054
        %v1116 = vadd.f32 %v787, %v1057
        %v1117 = vadd.f32 %v790, %v1060
        %v1118 = vadd.f32 %v793, %v1063
        %v1119 = vadd.f32 %v796, %v1066
        %v1120 = vadd.f32 %v799, %v1069
        %v1121 = vadd.f32 %v802, %v1072
        %v1122 = vadd.f32 %v805, %v1075
        %v1123 = vadd.f32 %v808, %v1078
        %v1124 = vadd.f32 %v811, %v1081
        %v1125 = vadd.f32 %v814, %v1084
        %v1126 = vadd.f32 %v817, %v1087
        %v1127 = vadd.f32 %v820, %v1090
        %v1128 = vld [vmem:[%s1 + $0x18] sm:$0xff]
        %v1131 = vrot.slane %v312, 2
        %v1132 = vsel %vm823, %v893, %v1131
        %v1133 = vrot.slane %v313, 2
        %v1134 = vsel %vm823, %v1131, %v1133
        %v1135 = vsel %vm427, %v1132, 0
        %v1137 = vsel %vm427, %v1134, 0
        %v1139 = vsel %vm427, %v1133, 0
        %1141 = vmatpush.msra.mxu0 0.0
        %1142 = vmatpush.msra.mxu0 0.0
        %1143 = vmatpush.msra.mxu0 0.0
        %1144 = vmatpush.msra.mxu0 0.0
        %1145 = vmatpush.msra.mxu0 0.0
        %1146 = vmatpush.msra.mxu0 0.0
        %1147 = vmatpush.msra.mxu0 0.0
        %1148 = vmatpush.msra.mxu0 0.0
        %1149 = vmatpush.msra.mxu0 0.0
        %1150 = vmatpush.msra.mxu0 0.0
        %1151 = vmatpush.msra.mxu0 0.0
        %1152 = vmatpush.msra.mxu0 0.0
        %1153 = vmatpush.msra.mxu0 0.0
        %1154 = vmatpush.msra.mxu0 0.0
        %1155 = vmatpush.msra.mxu0 0.0
        %1156 = vmatpush.msra.mxu0 %v1128
        %1157 = vmatmul.f32.gmra.mxu0 %v899
        %v1158 = vpop.f32.mrf.mxu0
        %v1159 = vadd.f32 0.0, %v1158
        %1160 = vmatmul.f32.gmra.mxu0 %v901
        %v1161 = vpop.f32.mrf.mxu0
        %v1162 = vadd.f32 0.0, %v1161
        %1163 = vmatmul.f32.gmra.mxu0 %v903
        %v1164 = vpop.f32.mrf.mxu0
        %v1165 = vadd.f32 0.0, %v1164
        %1166 = vmatmul.f32.gmra.mxu0 %v905
        %v1167 = vpop.f32.mrf.mxu0
        %v1168 = vadd.f32 0.0, %v1167
        %1169 = vmatmul.f32.gmra.mxu0 %v907
        %v1170 = vpop.f32.mrf.mxu0
        %v1171 = vadd.f32 0.0, %v1170
        %1172 = vmatmul.f32.gmra.mxu0 %v909
        %v1173 = vpop.f32.mrf.mxu0
        %v1174 = vadd.f32 0.0, %v1173
        %1175 = vmatmul.f32.gmra.mxu0 %v911
        %v1176 = vpop.f32.mrf.mxu0
        %v1177 = vadd.f32 0.0, %v1176
        %1178 = vmatmul.f32.gmra.mxu0 %v913
        %v1179 = vpop.f32.mrf.mxu0
        %v1180 = vadd.f32 0.0, %v1179
        %1181 = vmatmul.f32.gmra.mxu0 %v915
        %v1182 = vpop.f32.mrf.mxu0
        %v1183 = vadd.f32 0.0, %v1182
        %1184 = vmatmul.f32.gmra.mxu0 %v917
        %v1185 = vpop.f32.mrf.mxu0
        %v1186 = vadd.f32 0.0, %v1185
        %1187 = vmatmul.f32.gmra.mxu0 %v919
        %v1188 = vpop.f32.mrf.mxu0
        %v1189 = vadd.f32 0.0, %v1188
        %1190 = vmatmul.f32.gmra.mxu0 %v921
        %v1191 = vpop.f32.mrf.mxu0
        %v1192 = vadd.f32 0.0, %v1191
        %1193 = vmatmul.f32.gmra.mxu0 %v923
        %v1194 = vpop.f32.mrf.mxu0
        %v1195 = vadd.f32 0.0, %v1194
        %1196 = vmatmul.f32.gmra.mxu0 %v925
        %v1197 = vpop.f32.mrf.mxu0
        %v1198 = vadd.f32 0.0, %v1197
        %1199 = vmatmul.f32.gmra.mxu0 %v927
        %v1200 = vpop.f32.mrf.mxu0
        %v1201 = vadd.f32 0.0, %v1200
        %1202 = vmatmul.f32.gmra.mxu0 %v929
        %v1203 = vpop.f32.mrf.mxu0
        %v1204 = vadd.f32 0.0, %v1203
        %1205 = vmatmul.f32.gmra.mxu0 %v931
        %v1206 = vpop.f32.mrf.mxu0
        %v1207 = vadd.f32 0.0, %v1206
        %1208 = vmatmul.f32.gmra.mxu0 %v933
        %v1209 = vpop.f32.mrf.mxu0
        %v1210 = vadd.f32 0.0, %v1209
        %1211 = vmatmul.f32.gmra.mxu0 %v935
        %v1212 = vpop.f32.mrf.mxu0
        %v1213 = vadd.f32 0.0, %v1212
        %1214 = vmatmul.f32.gmra.mxu0 %v937
        %v1215 = vpop.f32.mrf.mxu0
        %v1216 = vadd.f32 0.0, %v1215
        %1217 = vmatmul.f32.gmra.mxu0 %v939
        %v1218 = vpop.f32.mrf.mxu0
        %v1219 = vadd.f32 0.0, %v1218
        %1220 = vmatmul.f32.gmra.mxu0 %v941
        %v1221 = vpop.f32.mrf.mxu0
        %v1222 = vadd.f32 0.0, %v1221
        %1223 = vmatmul.f32.gmra.mxu0 %v943
        %v1224 = vpop.f32.mrf.mxu0
        %v1225 = vadd.f32 0.0, %v1224
        %1226 = vmatmul.f32.gmra.mxu0 %v945
        %v1227 = vpop.f32.mrf.mxu0
        %v1228 = vadd.f32 0.0, %v1227
        %1229 = vmatmul.f32.gmra.mxu0 %v947
        %v1230 = vpop.f32.mrf.mxu0
        %v1231 = vadd.f32 0.0, %v1230
        %1232 = vmatmul.f32.gmra.mxu0 %v949
        %v1233 = vpop.f32.mrf.mxu0
        %v1234 = vadd.f32 0.0, %v1233
        %1235 = vmatmul.f32.gmra.mxu0 %v951
        %v1236 = vpop.f32.mrf.mxu0
        %v1237 = vadd.f32 0.0, %v1236
        %1238 = vmatmul.f32.gmra.mxu0 %v953
        %v1239 = vpop.f32.mrf.mxu0
        %v1240 = vadd.f32 0.0, %v1239
        %1241 = vmatmul.f32.gmra.mxu0 %v955
        %v1242 = vpop.f32.mrf.mxu0
        %v1243 = vadd.f32 0.0, %v1242
        %1244 = vmatmul.f32.gmra.mxu0 %v957
        %v1245 = vpop.f32.mrf.mxu0
        %v1246 = vadd.f32 0.0, %v1245
        %1247 = vmatmul.f32.gmra.mxu0 %v959
        %v1248 = vpop.f32.mrf.mxu0
        %v1249 = vadd.f32 0.0, %v1248
        %1250 = vmatmul.f32.gmra.mxu0 %v961
        %v1251 = vpop.f32.mrf.mxu0
        %v1252 = vadd.f32 0.0, %v1251
        %1253 = vmatmul.f32.gmra.mxu0 %v963
        %v1254 = vpop.f32.mrf.mxu0
        %v1255 = vadd.f32 0.0, %v1254
        %1256 = vmatmul.f32.gmra.mxu0 %v1135
        %v1257 = vpop.f32.mrf.mxu0
        %v1258 = vadd.f32 0.0, %v1257
        %1259 = vmatmul.f32.gmra.mxu0 %v1137
        %v1260 = vpop.f32.mrf.mxu0
        %v1261 = vadd.f32 0.0, %v1260
        %1262 = vmatmul.f32.gmra.mxu0 %v1139
        %v1263 = vpop.f32.mrf.mxu0
        %v1264 = vadd.f32 0.0, %v1263
        %1265 = vdwg.mxu0
        %v1266 = vadd.f32 %v1092, %v1159
        %v1267 = vadd.f32 %v1093, %v1162
        %v1268 = vadd.f32 %v1094, %v1165
        %v1269 = vadd.f32 %v1095, %v1168
        %v1270 = vadd.f32 %v1096, %v1171
        %v1271 = vadd.f32 %v1097, %v1174
        %v1272 = vadd.f32 %v1098, %v1177
        %v1273 = vadd.f32 %v1099, %v1180
        %v1274 = vadd.f32 %v1100, %v1183
        %v1275 = vadd.f32 %v1101, %v1186
        %v1276 = vadd.f32 %v1102, %v1189
        %v1277 = vadd.f32 %v1103, %v1192
        %v1278 = vadd.f32 %v1104, %v1195
        %v1279 = vadd.f32 %v1105, %v1198
        %v1280 = vadd.f32 %v1106, %v1201
        %v1281 = vadd.f32 %v1107, %v1204
        %v1282 = vadd.f32 %v1108, %v1207
        %v1283 = vadd.f32 %v1109, %v1210
        %v1284 = vadd.f32 %v1110, %v1213
        %v1285 = vadd.f32 %v1111, %v1216
        %v1286 = vadd.f32 %v1112, %v1219
        %v1287 = vadd.f32 %v1113, %v1222
        %v1288 = vadd.f32 %v1114, %v1225
        %v1289 = vadd.f32 %v1115, %v1228
        %v1290 = vadd.f32 %v1116, %v1231
        %v1291 = vadd.f32 %v1117, %v1234
        %v1292 = vadd.f32 %v1118, %v1237
        %v1293 = vadd.f32 %v1119, %v1240
        %v1294 = vadd.f32 %v1120, %v1243
        %v1295 = vadd.f32 %v1121, %v1246
        %v1296 = vadd.f32 %v1122, %v1249
        %v1297 = vadd.f32 %v1123, %v1252
        %v1298 = vadd.f32 %v1124, %v1255
        %v1299 = vadd.f32 %v1125, %v1258
        %v1300 = vadd.f32 %v1126, %v1261
        %v1301 = vadd.f32 %v1127, %v1264
        %v1302 = vld [vmem:[%s1 + $0x20] sm:$0xff]
        %vm1304 = vcmask 1044480
        %v1305 = vrot.slane %v278, 3
        %v1306 = vrot.slane %v279, 3
        %v1307 = vsel %vm1304, %v1305, %v1306
        %v1308 = vrot.slane %v280, 3
        %v1309 = vsel %vm1304, %v1306, %v1308
        %v1310 = vrot.slane %v281, 3
        %v1311 = vsel %vm1304, %v1308, %v1310
        %v1312 = vrot.slane %v282, 3
        %v1313 = vsel %vm1304, %v1310, %v1312
        %v1314 = vrot.slane %v283, 3
        %v1315 = vsel %vm1304, %v1312, %v1314
        %v1316 = vrot.slane %v284, 3
        %v1317 = vsel %vm1304, %v1314, %v1316
        %v1318 = vrot.slane %v285, 3
        %v1319 = vsel %vm1304, %v1316, %v1318
        %v1320 = vrot.slane %v286, 3
        %v1321 = vsel %vm1304, %v1318, %v1320
        %v1322 = vrot.slane %v287, 3
        %v1323 = vsel %vm1304, %v1320, %v1322
        %v1324 = vrot.slane %v288, 3
        %v1325 = vsel %vm1304, %v1322, %v1324
        %v1326 = vrot.slane %v289, 3
        %v1327 = vsel %vm1304, %v1324, %v1326
        %v1328 = vrot.slane %v290, 3
        %v1329 = vsel %vm1304, %v1326, %v1328
        %v1330 = vrot.slane %v291, 3
        %v1331 = vsel %vm1304, %v1328, %v1330
        %v1332 = vrot.slane %v292, 3
        %v1333 = vsel %vm1304, %v1330, %v1332
        %v1334 = vrot.slane %v293, 3
        %v1335 = vsel %vm1304, %v1332, %v1334
        %v1336 = vrot.slane %v294, 3
        %v1337 = vsel %vm1304, %v1334, %v1336
        %v1338 = vrot.slane %v295, 3
        %v1339 = vsel %vm1304, %v1336, %v1338
        %v1340 = vrot.slane %v296, 3
        %v1341 = vsel %vm1304, %v1338, %v1340
        %v1342 = vrot.slane %v297, 3
        %v1343 = vsel %vm1304, %v1340, %v1342
        %v1344 = vrot.slane %v298, 3
        %v1345 = vsel %vm1304, %v1342, %v1344
        %v1346 = vrot.slane %v299, 3
        %v1347 = vsel %vm1304, %v1344, %v1346
        %v1348 = vrot.slane %v300, 3
        %v1349 = vsel %vm1304, %v1346, %v1348
        %v1350 = vrot.slane %v301, 3
        %v1351 = vsel %vm1304, %v1348, %v1350
        %v1352 = vrot.slane %v302, 3
        %v1353 = vsel %vm1304, %v1350, %v1352
        %v1354 = vrot.slane %v303, 3
        %v1355 = vsel %vm1304, %v1352, %v1354
        %v1356 = vrot.slane %v304, 3
        %v1357 = vsel %vm1304, %v1354, %v1356
        %v1358 = vrot.slane %v305, 3
        %v1359 = vsel %vm1304, %v1356, %v1358
        %v1360 = vrot.slane %v306, 3
        %v1361 = vsel %vm1304, %v1358, %v1360
        %v1362 = vrot.slane %v307, 3
        %v1363 = vsel %vm1304, %v1360, %v1362
        %v1364 = vrot.slane %v308, 3
        %v1365 = vsel %vm1304, %v1362, %v1364
        %v1366 = vrot.slane %v309, 3
        %v1367 = vsel %vm1304, %v1364, %v1366
        %v1368 = vrot.slane %v310, 3
        %v1369 = vsel %vm1304, %v1366, %v1368
        %v1370 = vrot.slane %v311, 3
        %v1371 = vsel %vm1304, %v1368, %v1370
        %v1372 = vrot.slane %v312, 3
        %v1373 = vsel %vm1304, %v1370, %v1372
        %v1374 = vrot.slane %v313, 3
        %v1375 = vsel %vm1304, %v1372, %v1374
        %v1376 = vrot.slane %v314, 3
        %v1377 = vsel %vm1304, %v1374, %v1376
        %v1378 = vsel %vm427, %v1307, 0
        %v1380 = vsel %vm427, %v1309, 0
        %v1382 = vsel %vm427, %v1311, 0
        %v1384 = vsel %vm427, %v1313, 0
        %v1386 = vsel %vm427, %v1315, 0
        %v1388 = vsel %vm427, %v1317, 0
        %v1390 = vsel %vm427, %v1319, 0
        %v1392 = vsel %vm427, %v1321, 0
        %v1394 = vsel %vm427, %v1323, 0
        %v1396 = vsel %vm427, %v1325, 0
        %v1398 = vsel %vm427, %v1327, 0
        %v1400 = vsel %vm427, %v1329, 0
        %v1402 = vsel %vm427, %v1331, 0
        %v1404 = vsel %vm427, %v1333, 0
        %v1406 = vsel %vm427, %v1335, 0
        %v1408 = vsel %vm427, %v1337, 0
        %v1410 = vsel %vm427, %v1339, 0
        %v1412 = vsel %vm427, %v1341, 0
        %v1414 = vsel %vm427, %v1343, 0
        %v1416 = vsel %vm427, %v1345, 0
        %v1418 = vsel %vm427, %v1347, 0
        %v1420 = vsel %vm427, %v1349, 0
        %v1422 = vsel %vm427, %v1351, 0
        %v1424 = vsel %vm427, %v1353, 0
        %v1426 = vsel %vm427, %v1355, 0
        %v1428 = vsel %vm427, %v1357, 0
        %v1430 = vsel %vm427, %v1359, 0
        %v1432 = vsel %vm427, %v1361, 0
        %v1434 = vsel %vm427, %v1363, 0
        %v1436 = vsel %vm427, %v1365, 0
        %v1438 = vsel %vm427, %v1367, 0
        %v1440 = vsel %vm427, %v1369, 0
        %v1442 = vsel %vm427, %v1371, 0
        %v1444 = vsel %vm427, %v1373, 0
        %v1446 = vsel %vm427, %v1375, 0
        %v1448 = vsel %vm427, %v1377, 0
        %1450 = vmatpush.msra.mxu0 0.0
        %1451 = vmatpush.msra.mxu0 0.0
        %1452 = vmatpush.msra.mxu0 0.0
        %1453 = vmatpush.msra.mxu0 0.0
        %1454 = vmatpush.msra.mxu0 0.0
        %1455 = vmatpush.msra.mxu0 0.0
        %1456 = vmatpush.msra.mxu0 0.0
        %1457 = vmatpush.msra.mxu0 0.0
        %1458 = vmatpush.msra.mxu0 0.0
        %1459 = vmatpush.msra.mxu0 0.0
        %1460 = vmatpush.msra.mxu0 0.0
        %1461 = vmatpush.msra.mxu0 0.0
        %1462 = vmatpush.msra.mxu0 0.0
        %1463 = vmatpush.msra.mxu0 0.0
        %1464 = vmatpush.msra.mxu0 0.0
        %1465 = vmatpush.msra.mxu0 %v1302
        %1466 = vmatmul.f32.gmra.mxu0 %v1378
        %v1467 = vpop.f32.mrf.mxu0
        %v1468 = vadd.f32 0.0, %v1467
        %1469 = vmatmul.f32.gmra.mxu0 %v1380
        %v1470 = vpop.f32.mrf.mxu0
        %v1471 = vadd.f32 0.0, %v1470
        %1472 = vmatmul.f32.gmra.mxu0 %v1382
        %v1473 = vpop.f32.mrf.mxu0
        %v1474 = vadd.f32 0.0, %v1473
        %1475 = vmatmul.f32.gmra.mxu0 %v1384
        %v1476 = vpop.f32.mrf.mxu0
        %v1477 = vadd.f32 0.0, %v1476
        %1478 = vmatmul.f32.gmra.mxu0 %v1386
        %v1479 = vpop.f32.mrf.mxu0
        %v1480 = vadd.f32 0.0, %v1479
        %1481 = vmatmul.f32.gmra.mxu0 %v1388
        %v1482 = vpop.f32.mrf.mxu0
        %v1483 = vadd.f32 0.0, %v1482
        %1484 = vmatmul.f32.gmra.mxu0 %v1390
        %v1485 = vpop.f32.mrf.mxu0
        %v1486 = vadd.f32 0.0, %v1485
        %1487 = vmatmul.f32.gmra.mxu0 %v1392
        %v1488 = vpop.f32.mrf.mxu0
        %v1489 = vadd.f32 0.0, %v1488
        %1490 = vmatmul.f32.gmra.mxu0 %v1394
        %v1491 = vpop.f32.mrf.mxu0
        %v1492 = vadd.f32 0.0, %v1491
        %1493 = vmatmul.f32.gmra.mxu0 %v1396
        %v1494 = vpop.f32.mrf.mxu0
        %v1495 = vadd.f32 0.0, %v1494
        %1496 = vmatmul.f32.gmra.mxu0 %v1398
        %v1497 = vpop.f32.mrf.mxu0
        %v1498 = vadd.f32 0.0, %v1497
        %1499 = vmatmul.f32.gmra.mxu0 %v1400
        %v1500 = vpop.f32.mrf.mxu0
        %v1501 = vadd.f32 0.0, %v1500
        %1502 = vmatmul.f32.gmra.mxu0 %v1402
        %v1503 = vpop.f32.mrf.mxu0
        %v1504 = vadd.f32 0.0, %v1503
        %1505 = vmatmul.f32.gmra.mxu0 %v1404
        %v1506 = vpop.f32.mrf.mxu0
        %v1507 = vadd.f32 0.0, %v1506
        %1508 = vmatmul.f32.gmra.mxu0 %v1406
        %v1509 = vpop.f32.mrf.mxu0
        %v1510 = vadd.f32 0.0, %v1509
        %1511 = vmatmul.f32.gmra.mxu0 %v1408
        %v1512 = vpop.f32.mrf.mxu0
        %v1513 = vadd.f32 0.0, %v1512
        %1514 = vmatmul.f32.gmra.mxu0 %v1410
        %v1515 = vpop.f32.mrf.mxu0
        %v1516 = vadd.f32 0.0, %v1515
        %1517 = vmatmul.f32.gmra.mxu0 %v1412
        %v1518 = vpop.f32.mrf.mxu0
        %v1519 = vadd.f32 0.0, %v1518
        %1520 = vmatmul.f32.gmra.mxu0 %v1414
        %v1521 = vpop.f32.mrf.mxu0
        %v1522 = vadd.f32 0.0, %v1521
        %1523 = vmatmul.f32.gmra.mxu0 %v1416
        %v1524 = vpop.f32.mrf.mxu0
        %v1525 = vadd.f32 0.0, %v1524
        %1526 = vmatmul.f32.gmra.mxu0 %v1418
        %v1527 = vpop.f32.mrf.mxu0
        %v1528 = vadd.f32 0.0, %v1527
        %1529 = vmatmul.f32.gmra.mxu0 %v1420
        %v1530 = vpop.f32.mrf.mxu0
        %v1531 = vadd.f32 0.0, %v1530
        %1532 = vmatmul.f32.gmra.mxu0 %v1422
        %v1533 = vpop.f32.mrf.mxu0
        %v1534 = vadd.f32 0.0, %v1533
        %1535 = vmatmul.f32.gmra.mxu0 %v1424
        %v1536 = vpop.f32.mrf.mxu0
        %v1537 = vadd.f32 0.0, %v1536
        %1538 = vmatmul.f32.gmra.mxu0 %v1426
        %v1539 = vpop.f32.mrf.mxu0
        %v1540 = vadd.f32 0.0, %v1539
        %1541 = vmatmul.f32.gmra.mxu0 %v1428
        %v1542 = vpop.f32.mrf.mxu0
        %v1543 = vadd.f32 0.0, %v1542
        %1544 = vmatmul.f32.gmra.mxu0 %v1430
        %v1545 = vpop.f32.mrf.mxu0
        %v1546 = vadd.f32 0.0, %v1545
        %1547 = vmatmul.f32.gmra.mxu0 %v1432
        %v1548 = vpop.f32.mrf.mxu0
        %v1549 = vadd.f32 0.0, %v1548
        %1550 = vmatmul.f32.gmra.mxu0 %v1434
        %v1551 = vpop.f32.mrf.mxu0
        %v1552 = vadd.f32 0.0, %v1551
        %1553 = vmatmul.f32.gmra.mxu0 %v1436
        %v1554 = vpop.f32.mrf.mxu0
        %v1555 = vadd.f32 0.0, %v1554
        %1556 = vmatmul.f32.gmra.mxu0 %v1438
        %v1557 = vpop.f32.mrf.mxu0
        %v1558 = vadd.f32 0.0, %v1557
        %1559 = vmatmul.f32.gmra.mxu0 %v1440
        %v1560 = vpop.f32.mrf.mxu0
        %v1561 = vadd.f32 0.0, %v1560
        %1562 = vmatmul.f32.gmra.mxu0 %v1442
        %v1563 = vpop.f32.mrf.mxu0
        %v1564 = vadd.f32 0.0, %v1563
        %1565 = vmatmul.f32.gmra.mxu0 %v1444
        %v1566 = vpop.f32.mrf.mxu0
        %v1567 = vadd.f32 0.0, %v1566
        %1568 = vmatmul.f32.gmra.mxu0 %v1446
        %v1569 = vpop.f32.mrf.mxu0
        %v1570 = vadd.f32 0.0, %v1569
        %1571 = vmatmul.f32.gmra.mxu0 %v1448
        %v1572 = vpop.f32.mrf.mxu0
        %v1573 = vadd.f32 0.0, %v1572
        %1574 = vdwg.mxu0
        %v1575 = vadd.f32 %v1266, %v1468
        %v1576 = vadd.f32 %v1267, %v1471
        %v1577 = vadd.f32 %v1268, %v1474
        %v1578 = vadd.f32 %v1269, %v1477
        %v1579 = vadd.f32 %v1270, %v1480
        %v1580 = vadd.f32 %v1271, %v1483
        %v1581 = vadd.f32 %v1272, %v1486
        %v1582 = vadd.f32 %v1273, %v1489
        %v1583 = vadd.f32 %v1274, %v1492
        %v1584 = vadd.f32 %v1275, %v1495
        %v1585 = vadd.f32 %v1276, %v1498
        %v1586 = vadd.f32 %v1277, %v1501
        %v1587 = vadd.f32 %v1278, %v1504
        %v1588 = vadd.f32 %v1279, %v1507
        %v1589 = vadd.f32 %v1280, %v1510
        %v1590 = vadd.f32 %v1281, %v1513
        %v1591 = vadd.f32 %v1282, %v1516
        %v1592 = vadd.f32 %v1283, %v1519
        %v1593 = vadd.f32 %v1284, %v1522
        %v1594 = vadd.f32 %v1285, %v1525
        %v1595 = vadd.f32 %v1286, %v1528
        %v1596 = vadd.f32 %v1287, %v1531
        %v1597 = vadd.f32 %v1288, %v1534
        %v1598 = vadd.f32 %v1289, %v1537
        %v1599 = vadd.f32 %v1290, %v1540
        %v1600 = vadd.f32 %v1291, %v1543
        %v1601 = vadd.f32 %v1292, %v1546
        %v1602 = vadd.f32 %v1293, %v1549
        %v1603 = vadd.f32 %v1294, %v1552
        %v1604 = vadd.f32 %v1295, %v1555
        %v1605 = vadd.f32 %v1296, %v1558
        %v1606 = vadd.f32 %v1297, %v1561
        %v1607 = vadd.f32 %v1298, %v1564
        %v1608 = vadd.f32 %v1299, %v1567
        %v1609 = vadd.f32 %v1300, %v1570
        %v1610 = vadd.f32 %v1301, %v1573
        %v1611 = vld [vmem:[%s1 + $0x28] sm:$0xff]
        %vm1612 = vcmask 1043456
        %v1613 = vrot.slane %v278, 4
        %v1614 = vrot.slane %v279, 4
        %v1615 = vsel %vm1612, %v1613, %v1614
        %v1616 = vrot.slane %v280, 4
        %v1617 = vsel %vm1612, %v1614, %v1616
        %v1618 = vrot.slane %v281, 4
        %v1619 = vsel %vm1612, %v1616, %v1618
        %v1620 = vrot.slane %v282, 4
        %v1621 = vsel %vm1612, %v1618, %v1620
        %v1622 = vrot.slane %v283, 4
        %v1623 = vsel %vm1612, %v1620, %v1622
        %v1624 = vrot.slane %v284, 4
        %v1625 = vsel %vm1612, %v1622, %v1624
        %v1626 = vrot.slane %v285, 4
        %v1627 = vsel %vm1612, %v1624, %v1626
        %v1628 = vrot.slane %v286, 4
        %v1629 = vsel %vm1612, %v1626, %v1628
        %v1630 = vrot.slane %v287, 4
        %v1631 = vsel %vm1612, %v1628, %v1630
        %v1632 = vrot.slane %v288, 4
        %v1633 = vsel %vm1612, %v1630, %v1632
        %v1634 = vrot.slane %v289, 4
        %v1635 = vsel %vm1612, %v1632, %v1634
        %v1636 = vrot.slane %v290, 4
        %v1637 = vsel %vm1612, %v1634, %v1636
        %v1638 = vrot.slane %v291, 4
        %v1639 = vsel %vm1612, %v1636, %v1638
        %v1640 = vrot.slane %v292, 4
        %v1641 = vsel %vm1612, %v1638, %v1640
        %v1642 = vrot.slane %v293, 4
        %v1643 = vsel %vm1612, %v1640, %v1642
        %v1644 = vrot.slane %v294, 4
        %v1645 = vsel %vm1612, %v1642, %v1644
        %v1646 = vrot.slane %v295, 4
        %v1647 = vsel %vm1612, %v1644, %v1646
        %v1648 = vrot.slane %v296, 4
        %v1649 = vsel %vm1612, %v1646, %v1648
        %v1650 = vrot.slane %v297, 4
        %v1651 = vsel %vm1612, %v1648, %v1650
        %v1652 = vrot.slane %v298, 4
        %v1653 = vsel %vm1612, %v1650, %v1652
        %v1654 = vrot.slane %v299, 4
        %v1655 = vsel %vm1612, %v1652, %v1654
        %v1656 = vrot.slane %v300, 4
        %v1657 = vsel %vm1612, %v1654, %v1656
        %v1658 = vrot.slane %v301, 4
        %v1659 = vsel %vm1612, %v1656, %v1658
        %v1660 = vrot.slane %v302, 4
        %v1661 = vsel %vm1612, %v1658, %v1660
        %v1662 = vrot.slane %v303, 4
        %v1663 = vsel %vm1612, %v1660, %v1662
        %v1664 = vrot.slane %v304, 4
        %v1665 = vsel %vm1612, %v1662, %v1664
        %v1666 = vrot.slane %v305, 4
        %v1667 = vsel %vm1612, %v1664, %v1666
        %v1668 = vrot.slane %v306, 4
        %v1669 = vsel %vm1612, %v1666, %v1668
        %v1670 = vrot.slane %v307, 4
        %v1671 = vsel %vm1612, %v1668, %v1670
        %v1672 = vrot.slane %v308, 4
        %v1673 = vsel %vm1612, %v1670, %v1672
        %v1674 = vrot.slane %v309, 4
        %v1675 = vsel %vm1612, %v1672, %v1674
        %v1676 = vrot.slane %v310, 4
        %v1677 = vsel %vm1612, %v1674, %v1676
        %v1678 = vrot.slane %v311, 4
        %v1679 = vsel %vm1612, %v1676, %v1678
        %v1680 = vrot.slane %v312, 4
        %v1681 = vsel %vm1612, %v1678, %v1680
        %v1682 = vrot.slane %v313, 4
        %v1683 = vsel %vm1612, %v1680, %v1682
        %v1684 = vrot.slane %v314, 4
        %v1685 = vsel %vm1612, %v1682, %v1684
        %v1686 = vsel %vm427, %v1615, 0
        %v1688 = vsel %vm427, %v1617, 0
        %v1690 = vsel %vm427, %v1619, 0
        %v1692 = vsel %vm427, %v1621, 0
        %v1694 = vsel %vm427, %v1623, 0
        %v1696 = vsel %vm427, %v1625, 0
        %v1698 = vsel %vm427, %v1627, 0
        %v1700 = vsel %vm427, %v1629, 0
        %v1702 = vsel %vm427, %v1631, 0
        %v1704 = vsel %vm427, %v1633, 0
        %v1706 = vsel %vm427, %v1635, 0
        %v1708 = vsel %vm427, %v1637, 0
        %v1710 = vsel %vm427, %v1639, 0
        %v1712 = vsel %vm427, %v1641, 0
        %v1714 = vsel %vm427, %v1643, 0
        %v1716 = vsel %vm427, %v1645, 0
        %v1718 = vsel %vm427, %v1647, 0
        %v1720 = vsel %vm427, %v1649, 0
        %v1722 = vsel %vm427, %v1651, 0
        %v1724 = vsel %vm427, %v1653, 0
        %v1726 = vsel %vm427, %v1655, 0
        %v1728 = vsel %vm427, %v1657, 0
        %v1730 = vsel %vm427, %v1659, 0
        %v1732 = vsel %vm427, %v1661, 0
        %v1734 = vsel %vm427, %v1663, 0
        %v1736 = vsel %vm427, %v1665, 0
        %v1738 = vsel %vm427, %v1667, 0
        %v1740 = vsel %vm427, %v1669, 0
        %v1742 = vsel %vm427, %v1671, 0
        %v1744 = vsel %vm427, %v1673, 0
        %v1746 = vsel %vm427, %v1675, 0
        %v1748 = vsel %vm427, %v1677, 0
        %v1750 = vsel %vm427, %v1679, 0
        %v1752 = vsel %vm427, %v1681, 0
        %v1754 = vsel %vm427, %v1683, 0
        %v1756 = vsel %vm427, %v1685, 0
        %1758 = vmatpush.msra.mxu0 0.0
        %1759 = vmatpush.msra.mxu0 0.0
        %1760 = vmatpush.msra.mxu0 0.0
        %1761 = vmatpush.msra.mxu0 0.0
        %1762 = vmatpush.msra.mxu0 0.0
        %1763 = vmatpush.msra.mxu0 0.0
        %1764 = vmatpush.msra.mxu0 0.0
        %1765 = vmatpush.msra.mxu0 0.0
        %1766 = vmatpush.msra.mxu0 0.0
        %1767 = vmatpush.msra.mxu0 0.0
        %1768 = vmatpush.msra.mxu0 0.0
        %1769 = vmatpush.msra.mxu0 0.0
        %1770 = vmatpush.msra.mxu0 0.0
        %1771 = vmatpush.msra.mxu0 0.0
        %1772 = vmatpush.msra.mxu0 0.0
        %1773 = vmatpush.msra.mxu0 %v1611
        %1774 = vmatmul.f32.gmra.mxu0 %v1686
        %v1775 = vpop.f32.mrf.mxu0
        %v1776 = vadd.f32 0.0, %v1775
        %1777 = vmatmul.f32.gmra.mxu0 %v1688
        %v1778 = vpop.f32.mrf.mxu0
        %v1779 = vadd.f32 0.0, %v1778
        %1780 = vmatmul.f32.gmra.mxu0 %v1690
        %v1781 = vpop.f32.mrf.mxu0
        %v1782 = vadd.f32 0.0, %v1781
        %1783 = vmatmul.f32.gmra.mxu0 %v1692
        %v1784 = vpop.f32.mrf.mxu0
        %v1785 = vadd.f32 0.0, %v1784
        %1786 = vmatmul.f32.gmra.mxu0 %v1694
        %v1787 = vpop.f32.mrf.mxu0
        %v1788 = vadd.f32 0.0, %v1787
        %1789 = vmatmul.f32.gmra.mxu0 %v1696
        %v1790 = vpop.f32.mrf.mxu0
        %v1791 = vadd.f32 0.0, %v1790
        %1792 = vmatmul.f32.gmra.mxu0 %v1698
        %v1793 = vpop.f32.mrf.mxu0
        %v1794 = vadd.f32 0.0, %v1793
        %1795 = vmatmul.f32.gmra.mxu0 %v1700
        %v1796 = vpop.f32.mrf.mxu0
        %v1797 = vadd.f32 0.0, %v1796
        %1798 = vmatmul.f32.gmra.mxu0 %v1702
        %v1799 = vpop.f32.mrf.mxu0
        %v1800 = vadd.f32 0.0, %v1799
        %1801 = vmatmul.f32.gmra.mxu0 %v1704
        %v1802 = vpop.f32.mrf.mxu0
        %v1803 = vadd.f32 0.0, %v1802
        %1804 = vmatmul.f32.gmra.mxu0 %v1706
        %v1805 = vpop.f32.mrf.mxu0
        %v1806 = vadd.f32 0.0, %v1805
        %1807 = vmatmul.f32.gmra.mxu0 %v1708
        %v1808 = vpop.f32.mrf.mxu0
        %v1809 = vadd.f32 0.0, %v1808
        %1810 = vmatmul.f32.gmra.mxu0 %v1710
        %v1811 = vpop.f32.mrf.mxu0
        %v1812 = vadd.f32 0.0, %v1811
        %1813 = vmatmul.f32.gmra.mxu0 %v1712
        %v1814 = vpop.f32.mrf.mxu0
        %v1815 = vadd.f32 0.0, %v1814
        %1816 = vmatmul.f32.gmra.mxu0 %v1714
        %v1817 = vpop.f32.mrf.mxu0
        %v1818 = vadd.f32 0.0, %v1817
        %1819 = vmatmul.f32.gmra.mxu0 %v1716
        %v1820 = vpop.f32.mrf.mxu0
        %v1821 = vadd.f32 0.0, %v1820
        %1822 = vmatmul.f32.gmra.mxu0 %v1718
        %v1823 = vpop.f32.mrf.mxu0
        %v1824 = vadd.f32 0.0, %v1823
        %1825 = vmatmul.f32.gmra.mxu0 %v1720
        %v1826 = vpop.f32.mrf.mxu0
        %v1827 = vadd.f32 0.0, %v1826
        %1828 = vmatmul.f32.gmra.mxu0 %v1722
        %v1829 = vpop.f32.mrf.mxu0
        %v1830 = vadd.f32 0.0, %v1829
        %1831 = vmatmul.f32.gmra.mxu0 %v1724
        %v1832 = vpop.f32.mrf.mxu0
        %v1833 = vadd.f32 0.0, %v1832
        %1834 = vmatmul.f32.gmra.mxu0 %v1726
        %v1835 = vpop.f32.mrf.mxu0
        %v1836 = vadd.f32 0.0, %v1835
        %1837 = vmatmul.f32.gmra.mxu0 %v1728
        %v1838 = vpop.f32.mrf.mxu0
        %v1839 = vadd.f32 0.0, %v1838
        %1840 = vmatmul.f32.gmra.mxu0 %v1730
        %v1841 = vpop.f32.mrf.mxu0
        %v1842 = vadd.f32 0.0, %v1841
        %1843 = vmatmul.f32.gmra.mxu0 %v1732
        %v1844 = vpop.f32.mrf.mxu0
        %v1845 = vadd.f32 0.0, %v1844
        %1846 = vmatmul.f32.gmra.mxu0 %v1734
        %v1847 = vpop.f32.mrf.mxu0
        %v1848 = vadd.f32 0.0, %v1847
        %1849 = vmatmul.f32.gmra.mxu0 %v1736
        %v1850 = vpop.f32.mrf.mxu0
        %v1851 = vadd.f32 0.0, %v1850
        %1852 = vmatmul.f32.gmra.mxu0 %v1738
        %v1853 = vpop.f32.mrf.mxu0
        %v1854 = vadd.f32 0.0, %v1853
        %1855 = vmatmul.f32.gmra.mxu0 %v1740
        %v1856 = vpop.f32.mrf.mxu0
        %v1857 = vadd.f32 0.0, %v1856
        %1858 = vmatmul.f32.gmra.mxu0 %v1742
        %v1859 = vpop.f32.mrf.mxu0
        %v1860 = vadd.f32 0.0, %v1859
        %1861 = vmatmul.f32.gmra.mxu0 %v1744
        %v1862 = vpop.f32.mrf.mxu0
        %v1863 = vadd.f32 0.0, %v1862
        %1864 = vmatmul.f32.gmra.mxu0 %v1746
        %v1865 = vpop.f32.mrf.mxu0
        %v1866 = vadd.f32 0.0, %v1865
        %1867 = vmatmul.f32.gmra.mxu0 %v1748
        %v1868 = vpop.f32.mrf.mxu0
        %v1869 = vadd.f32 0.0, %v1868
        %1870 = vmatmul.f32.gmra.mxu0 %v1750
        %v1871 = vpop.f32.mrf.mxu0
        %v1872 = vadd.f32 0.0, %v1871
        %1873 = vmatmul.f32.gmra.mxu0 %v1752
        %v1874 = vpop.f32.mrf.mxu0
        %v1875 = vadd.f32 0.0, %v1874
        %1876 = vmatmul.f32.gmra.mxu0 %v1754
        %v1877 = vpop.f32.mrf.mxu0
        %v1878 = vadd.f32 0.0, %v1877
        %1879 = vmatmul.f32.gmra.mxu0 %v1756
        %v1880 = vpop.f32.mrf.mxu0
        %v1881 = vadd.f32 0.0, %v1880
        %1882 = vdwg.mxu0
        %v1883 = vadd.f32 %v1575, %v1776
        %v1884 = vadd.f32 %v1576, %v1779
        %v1885 = vadd.f32 %v1577, %v1782
        %v1886 = vadd.f32 %v1578, %v1785
        %v1887 = vadd.f32 %v1579, %v1788
        %v1888 = vadd.f32 %v1580, %v1791
        %v1889 = vadd.f32 %v1581, %v1794
        %v1890 = vadd.f32 %v1582, %v1797
        %v1891 = vadd.f32 %v1583, %v1800
        %v1892 = vadd.f32 %v1584, %v1803
        %v1893 = vadd.f32 %v1585, %v1806
        %v1894 = vadd.f32 %v1586, %v1809
        %v1895 = vadd.f32 %v1587, %v1812
        %v1896 = vadd.f32 %v1588, %v1815
        %v1897 = vadd.f32 %v1589, %v1818
        %v1898 = vadd.f32 %v1590, %v1821
        %v1899 = vadd.f32 %v1591, %v1824
        %v1900 = vadd.f32 %v1592, %v1827
        %v1901 = vadd.f32 %v1593, %v1830
        %v1902 = vadd.f32 %v1594, %v1833
        %v1903 = vadd.f32 %v1595, %v1836
        %v1904 = vadd.f32 %v1596, %v1839
        %v1905 = vadd.f32 %v1597, %v1842
        %v1906 = vadd.f32 %v1598, %v1845
        %v1907 = vadd.f32 %v1599, %v1848
        %v1908 = vadd.f32 %v1600, %v1851
        %v1909 = vadd.f32 %v1601, %v1854
        %v1910 = vadd.f32 %v1602, %v1857
        %v1911 = vadd.f32 %v1603, %v1860
        %v1912 = vadd.f32 %v1604, %v1863
        %v1913 = vadd.f32 %v1605, %v1866
        %v1914 = vadd.f32 %v1606, %v1869
        %v1915 = vadd.f32 %v1607, %v1872
        %v1916 = vadd.f32 %v1608, %v1875
        %v1917 = vadd.f32 %v1609, %v1878
        %v1918 = vadd.f32 %v1610, %v1881
        %v1919 = vld [vmem:[%s1 + $0x30] sm:$0xff]
        %v1922 = vrot.slane %v315, 4
        %v1923 = vsel %vm1612, %v1684, %v1922
        %v1924 = vrot.slane %v316, 4
        %v1925 = vsel %vm1612, %v1922, %v1924
        %v1926 = vsel %vm427, %v1923, 0
        %v1928 = vsel %vm427, %v1925, 0
        %1930 = vmatpush.msra.mxu0 0.0
        %1931 = vmatpush.msra.mxu0 0.0
        %1932 = vmatpush.msra.mxu0 0.0
        %1933 = vmatpush.msra.mxu0 0.0
        %1934 = vmatpush.msra.mxu0 0.0
        %1935 = vmatpush.msra.mxu0 0.0
        %1936 = vmatpush.msra.mxu0 0.0
        %1937 = vmatpush.msra.mxu0 0.0
        %1938 = vmatpush.msra.mxu0 0.0
        %1939 = vmatpush.msra.mxu0 0.0
        %1940 = vmatpush.msra.mxu0 0.0
        %1941 = vmatpush.msra.mxu0 0.0
        %1942 = vmatpush.msra.mxu0 0.0
        %1943 = vmatpush.msra.mxu0 0.0
        %1944 = vmatpush.msra.mxu0 0.0
        %1945 = vmatpush.msra.mxu0 %v1919
        %1946 = vmatmul.f32.gmra.mxu0 %v1690
        %v1947 = vpop.f32.mrf.mxu0
        %v1948 = vadd.f32 0.0, %v1947
        %1949 = vmatmul.f32.gmra.mxu0 %v1692
        %v1950 = vpop.f32.mrf.mxu0
        %v1951 = vadd.f32 0.0, %v1950
        %1952 = vmatmul.f32.gmra.mxu0 %v1694
        %v1953 = vpop.f32.mrf.mxu0
        %v1954 = vadd.f32 0.0, %v1953
        %1955 = vmatmul.f32.gmra.mxu0 %v1696
        %v1956 = vpop.f32.mrf.mxu0
        %v1957 = vadd.f32 0.0, %v1956
        %1958 = vmatmul.f32.gmra.mxu0 %v1698
        %v1959 = vpop.f32.mrf.mxu0
        %v1960 = vadd.f32 0.0, %v1959
        %1961 = vmatmul.f32.gmra.mxu0 %v1700
        %v1962 = vpop.f32.mrf.mxu0
        %v1963 = vadd.f32 0.0, %v1962
        %1964 = vmatmul.f32.gmra.mxu0 %v1702
        %v1965 = vpop.f32.mrf.mxu0
        %v1966 = vadd.f32 0.0, %v1965
        %1967 = vmatmul.f32.gmra.mxu0 %v1704
        %v1968 = vpop.f32.mrf.mxu0
        %v1969 = vadd.f32 0.0, %v1968
        %1970 = vmatmul.f32.gmra.mxu0 %v1706
        %v1971 = vpop.f32.mrf.mxu0
        %v1972 = vadd.f32 0.0, %v1971
        %1973 = vmatmul.f32.gmra.mxu0 %v1708
        %v1974 = vpop.f32.mrf.mxu0
        %v1975 = vadd.f32 0.0, %v1974
        %1976 = vmatmul.f32.gmra.mxu0 %v1710
        %v1977 = vpop.f32.mrf.mxu0
        %v1978 = vadd.f32 0.0, %v1977
        %1979 = vmatmul.f32.gmra.mxu0 %v1712
        %v1980 = vpop.f32.mrf.mxu0
        %v1981 = vadd.f32 0.0, %v1980
        %1982 = vmatmul.f32.gmra.mxu0 %v1714
        %v1983 = vpop.f32.mrf.mxu0
        %v1984 = vadd.f32 0.0, %v1983
        %1985 = vmatmul.f32.gmra.mxu0 %v1716
        %v1986 = vpop.f32.mrf.mxu0
        %v1987 = vadd.f32 0.0, %v1986
        %1988 = vmatmul.f32.gmra.mxu0 %v1718
        %v1989 = vpop.f32.mrf.mxu0
        %v1990 = vadd.f32 0.0, %v1989
        %1991 = vmatmul.f32.gmra.mxu0 %v1720
        %v1992 = vpop.f32.mrf.mxu0
        %v1993 = vadd.f32 0.0, %v1992
        %1994 = vmatmul.f32.gmra.mxu0 %v1722
        %v1995 = vpop.f32.mrf.mxu0
        %v1996 = vadd.f32 0.0, %v1995
        %1997 = vmatmul.f32.gmra.mxu0 %v1724
        %v1998 = vpop.f32.mrf.mxu0
        %v1999 = vadd.f32 0.0, %v1998
        %2000 = vmatmul.f32.gmra.mxu0 %v1726
        %v2001 = vpop.f32.mrf.mxu0
        %v2002 = vadd.f32 0.0, %v2001
        %2003 = vmatmul.f32.gmra.mxu0 %v1728
        %v2004 = vpop.f32.mrf.mxu0
        %v2005 = vadd.f32 0.0, %v2004
        %2006 = vmatmul.f32.gmra.mxu0 %v1730
        %v2007 = vpop.f32.mrf.mxu0
        %v2008 = vadd.f32 0.0, %v2007
        %2009 = vmatmul.f32.gmra.mxu0 %v1732
        %v2010 = vpop.f32.mrf.mxu0
        %v2011 = vadd.f32 0.0, %v2010
        %2012 = vmatmul.f32.gmra.mxu0 %v1734
        %v2013 = vpop.f32.mrf.mxu0
        %v2014 = vadd.f32 0.0, %v2013
        %2015 = vmatmul.f32.gmra.mxu0 %v1736
        %v2016 = vpop.f32.mrf.mxu0
        %v2017 = vadd.f32 0.0, %v2016
        %2018 = vmatmul.f32.gmra.mxu0 %v1738
        %v2019 = vpop.f32.mrf.mxu0
        %v2020 = vadd.f32 0.0, %v2019
        %2021 = vmatmul.f32.gmra.mxu0 %v1740
        %v2022 = vpop.f32.mrf.mxu0
        %v2023 = vadd.f32 0.0, %v2022
        %2024 = vmatmul.f32.gmra.mxu0 %v1742
        %v2025 = vpop.f32.mrf.mxu0
        %v2026 = vadd.f32 0.0, %v2025
        %2027 = vmatmul.f32.gmra.mxu0 %v1744
        %v2028 = vpop.f32.mrf.mxu0
        %v2029 = vadd.f32 0.0, %v2028
        %2030 = vmatmul.f32.gmra.mxu0 %v1746
        %v2031 = vpop.f32.mrf.mxu0
        %v2032 = vadd.f32 0.0, %v2031
        %2033 = vmatmul.f32.gmra.mxu0 %v1748
        %v2034 = vpop.f32.mrf.mxu0
        %v2035 = vadd.f32 0.0, %v2034
        %2036 = vmatmul.f32.gmra.mxu0 %v1750
        %v2037 = vpop.f32.mrf.mxu0
        %v2038 = vadd.f32 0.0, %v2037
        %2039 = vmatmul.f32.gmra.mxu0 %v1752
        %v2040 = vpop.f32.mrf.mxu0
        %v2041 = vadd.f32 0.0, %v2040
        %2042 = vmatmul.f32.gmra.mxu0 %v1754
        %v2043 = vpop.f32.mrf.mxu0
        %v2044 = vadd.f32 0.0, %v2043
        %2045 = vmatmul.f32.gmra.mxu0 %v1756
        %v2046 = vpop.f32.mrf.mxu0
        %v2047 = vadd.f32 0.0, %v2046
        %2048 = vmatmul.f32.gmra.mxu0 %v1926
        %v2049 = vpop.f32.mrf.mxu0
        %v2050 = vadd.f32 0.0, %v2049
        %2051 = vmatmul.f32.gmra.mxu0 %v1928
        %v2052 = vpop.f32.mrf.mxu0
        %v2053 = vadd.f32 0.0, %v2052
        %2054 = vdwg.mxu0
        %v2055 = vadd.f32 %v1883, %v1948
        %v2056 = vadd.f32 %v1884, %v1951
        %v2057 = vadd.f32 %v1885, %v1954
        %v2058 = vadd.f32 %v1886, %v1957
        %v2059 = vadd.f32 %v1887, %v1960
        %v2060 = vadd.f32 %v1888, %v1963
        %v2061 = vadd.f32 %v1889, %v1966
        %v2062 = vadd.f32 %v1890, %v1969
        %v2063 = vadd.f32 %v1891, %v1972
        %v2064 = vadd.f32 %v1892, %v1975
        %v2065 = vadd.f32 %v1893, %v1978
        %v2066 = vadd.f32 %v1894, %v1981
        %v2067 = vadd.f32 %v1895, %v1984
        %v2068 = vadd.f32 %v1896, %v1987
        %v2069 = vadd.f32 %v1897, %v1990
        %v2070 = vadd.f32 %v1898, %v1993
        %v2071 = vadd.f32 %v1899, %v1996
        %v2072 = vadd.f32 %v1900, %v1999
        %v2073 = vadd.f32 %v1901, %v2002
        %v2074 = vadd.f32 %v1902, %v2005
        %v2075 = vadd.f32 %v1903, %v2008
        %v2076 = vadd.f32 %v1904, %v2011
        %v2077 = vadd.f32 %v1905, %v2014
        %v2078 = vadd.f32 %v1906, %v2017
        %v2079 = vadd.f32 %v1907, %v2020
        %v2080 = vadd.f32 %v1908, %v2023
        %v2081 = vadd.f32 %v1909, %v2026
        %v2082 = vadd.f32 %v1910, %v2029
        %v2083 = vadd.f32 %v1911, %v2032
        %v2084 = vadd.f32 %v1912, %v2035
        %v2085 = vadd.f32 %v1913, %v2038
        %v2086 = vadd.f32 %v1914, %v2041
        %v2087 = vadd.f32 %v1915, %v2044
        %v2088 = vadd.f32 %v1916, %v2047
        %v2089 = vadd.f32 %v1917, %v2050
        %v2090 = vadd.f32 %v1918, %v2053
        %v2091 = vld [vmem:[%s1 + $0x38] sm:$0xff]
        %vm2092 = vcmask 1042432
        %v2093 = vrot.slane %v280, 5
        %v2094 = vrot.slane %v281, 5
        %v2095 = vsel %vm2092, %v2093, %v2094
        %v2096 = vrot.slane %v282, 5
        %v2097 = vsel %vm2092, %v2094, %v2096
        %v2098 = vrot.slane %v283, 5
        %v2099 = vsel %vm2092, %v2096, %v2098
        %v2100 = vrot.slane %v284, 5
        %v2101 = vsel %vm2092, %v2098, %v2100
        %v2102 = vrot.slane %v285, 5
        %v2103 = vsel %vm2092, %v2100, %v2102
        %v2104 = vrot.slane %v286, 5
        %v2105 = vsel %vm2092, %v2102, %v2104
        %v2106 = vrot.slane %v287, 5
        %v2107 = vsel %vm2092, %v2104, %v2106
        %v2108 = vrot.slane %v288, 5
        %v2109 = vsel %vm2092, %v2106, %v2108
        %v2110 = vrot.slane %v289, 5
        %v2111 = vsel %vm2092, %v2108, %v2110
        %v2112 = vrot.slane %v290, 5
        %v2113 = vsel %vm2092, %v2110, %v2112
        %v2114 = vrot.slane %v291, 5
        %v2115 = vsel %vm2092, %v2112, %v2114
        %v2116 = vrot.slane %v292, 5
        %v2117 = vsel %vm2092, %v2114, %v2116
        %v2118 = vrot.slane %v293, 5
        %v2119 = vsel %vm2092, %v2116, %v2118
        %v2120 = vrot.slane %v294, 5
        %v2121 = vsel %vm2092, %v2118, %v2120
        %v2122 = vrot.slane %v295, 5
        %v2123 = vsel %vm2092, %v2120, %v2122
        %v2124 = vrot.slane %v296, 5
        %v2125 = vsel %vm2092, %v2122, %v2124
        %v2126 = vrot.slane %v297, 5
        %v2127 = vsel %vm2092, %v2124, %v2126
        %v2128 = vrot.slane %v298, 5
        %v2129 = vsel %vm2092, %v2126, %v2128
        %v2130 = vrot.slane %v299, 5
        %v2131 = vsel %vm2092, %v2128, %v2130
        %v2132 = vrot.slane %v300, 5
        %v2133 = vsel %vm2092, %v2130, %v2132
        %v2134 = vrot.slane %v301, 5
        %v2135 = vsel %vm2092, %v2132, %v2134
        %v2136 = vrot.slane %v302, 5
        %v2137 = vsel %vm2092, %v2134, %v2136
        %v2138 = vrot.slane %v303, 5
        %v2139 = vsel %vm2092, %v2136, %v2138
        %v2140 = vrot.slane %v304, 5
        %v2141 = vsel %vm2092, %v2138, %v2140
        %v2142 = vrot.slane %v305, 5
        %v2143 = vsel %vm2092, %v2140, %v2142
        %v2144 = vrot.slane %v306, 5
        %v2145 = vsel %vm2092, %v2142, %v2144
        %v2146 = vrot.slane %v307, 5
        %v2147 = vsel %vm2092, %v2144, %v2146
        %v2148 = vrot.slane %v308, 5
        %v2149 = vsel %vm2092, %v2146, %v2148
        %v2150 = vrot.slane %v309, 5
        %v2151 = vsel %vm2092, %v2148, %v2150
        %v2152 = vrot.slane %v310, 5
        %v2153 = vsel %vm2092, %v2150, %v2152
        %v2154 = vrot.slane %v311, 5
        %v2155 = vsel %vm2092, %v2152, %v2154
        %v2156 = vrot.slane %v312, 5
        %v2157 = vsel %vm2092, %v2154, %v2156
        %v2158 = vrot.slane %v313, 5
        %v2159 = vsel %vm2092, %v2156, %v2158
        %v2160 = vrot.slane %v314, 5
        %v2161 = vsel %vm2092, %v2158, %v2160
        %v2162 = vrot.slane %v315, 5
        %v2163 = vsel %vm2092, %v2160, %v2162
        %v2164 = vrot.slane %v316, 5
        %v2165 = vsel %vm2092, %v2162, %v2164
        %v2166 = vsel %vm427, %v2095, 0
        %v2168 = vsel %vm427, %v2097, 0
        %v2170 = vsel %vm427, %v2099, 0
        %v2172 = vsel %vm427, %v2101, 0
        %v2174 = vsel %vm427, %v2103, 0
        %v2176 = vsel %vm427, %v2105, 0
        %v2178 = vsel %vm427, %v2107, 0
        %v2180 = vsel %vm427, %v2109, 0
        %v2182 = vsel %vm427, %v2111, 0
        %v2184 = vsel %vm427, %v2113, 0
        %v2186 = vsel %vm427, %v2115, 0
        %v2188 = vsel %vm427, %v2117, 0
        %v2190 = vsel %vm427, %v2119, 0
        %v2192 = vsel %vm427, %v2121, 0
        %v2194 = vsel %vm427, %v2123, 0
        %v2196 = vsel %vm427, %v2125, 0
        %v2198 = vsel %vm427, %v2127, 0
        %v2200 = vsel %vm427, %v2129, 0
        %v2202 = vsel %vm427, %v2131, 0
        %v2204 = vsel %vm427, %v2133, 0
        %v2206 = vsel %vm427, %v2135, 0
        %v2208 = vsel %vm427, %v2137, 0
        %v2210 = vsel %vm427, %v2139, 0
        %v2212 = vsel %vm427, %v2141, 0
        %v2214 = vsel %vm427, %v2143, 0
        %v2216 = vsel %vm427, %v2145, 0
        %v2218 = vsel %vm427, %v2147, 0
        %v2220 = vsel %vm427, %v2149, 0
        %v2222 = vsel %vm427, %v2151, 0
        %v2224 = vsel %vm427, %v2153, 0
        %v2226 = vsel %vm427, %v2155, 0
        %v2228 = vsel %vm427, %v2157, 0
        %v2230 = vsel %vm427, %v2159, 0
        %v2232 = vsel %vm427, %v2161, 0
        %v2234 = vsel %vm427, %v2163, 0
        %v2236 = vsel %vm427, %v2165, 0
        %2238 = vmatpush.msra.mxu0 0.0
        %2239 = vmatpush.msra.mxu0 0.0
        %2240 = vmatpush.msra.mxu0 0.0
        %2241 = vmatpush.msra.mxu0 0.0
        %2242 = vmatpush.msra.mxu0 0.0
        %2243 = vmatpush.msra.mxu0 0.0
        %2244 = vmatpush.msra.mxu0 0.0
        %2245 = vmatpush.msra.mxu0 0.0
        %2246 = vmatpush.msra.mxu0 0.0
        %2247 = vmatpush.msra.mxu0 0.0
        %2248 = vmatpush.msra.mxu0 0.0
        %2249 = vmatpush.msra.mxu0 0.0
        %2250 = vmatpush.msra.mxu0 0.0
        %2251 = vmatpush.msra.mxu0 0.0
        %2252 = vmatpush.msra.mxu0 0.0
        %2253 = vmatpush.msra.mxu0 %v2091
        %2254 = vmatmul.f32.gmra.mxu0 %v2166
        %v2255 = vpop.f32.mrf.mxu0
        %v2256 = vadd.f32 0.0, %v2255
        %2257 = vmatmul.f32.gmra.mxu0 %v2168
        %v2258 = vpop.f32.mrf.mxu0
        %v2259 = vadd.f32 0.0, %v2258
        %2260 = vmatmul.f32.gmra.mxu0 %v2170
        %v2261 = vpop.f32.mrf.mxu0
        %v2262 = vadd.f32 0.0, %v2261
        %2263 = vmatmul.f32.gmra.mxu0 %v2172
        %v2264 = vpop.f32.mrf.mxu0
        %v2265 = vadd.f32 0.0, %v2264
        %2266 = vmatmul.f32.gmra.mxu0 %v2174
        %v2267 = vpop.f32.mrf.mxu0
        %v2268 = vadd.f32 0.0, %v2267
        %2269 = vmatmul.f32.gmra.mxu0 %v2176
        %v2270 = vpop.f32.mrf.mxu0
        %v2271 = vadd.f32 0.0, %v2270
        %2272 = vmatmul.f32.gmra.mxu0 %v2178
        %v2273 = vpop.f32.mrf.mxu0
        %v2274 = vadd.f32 0.0, %v2273
        %2275 = vmatmul.f32.gmra.mxu0 %v2180
        %v2276 = vpop.f32.mrf.mxu0
        %v2277 = vadd.f32 0.0, %v2276
        %2278 = vmatmul.f32.gmra.mxu0 %v2182
        %v2279 = vpop.f32.mrf.mxu0
        %v2280 = vadd.f32 0.0, %v2279
        %2281 = vmatmul.f32.gmra.mxu0 %v2184
        %v2282 = vpop.f32.mrf.mxu0
        %v2283 = vadd.f32 0.0, %v2282
        %2284 = vmatmul.f32.gmra.mxu0 %v2186
        %v2285 = vpop.f32.mrf.mxu0
        %v2286 = vadd.f32 0.0, %v2285
        %2287 = vmatmul.f32.gmra.mxu0 %v2188
        %v2288 = vpop.f32.mrf.mxu0
        %v2289 = vadd.f32 0.0, %v2288
        %2290 = vmatmul.f32.gmra.mxu0 %v2190
        %v2291 = vpop.f32.mrf.mxu0
        %v2292 = vadd.f32 0.0, %v2291
        %2293 = vmatmul.f32.gmra.mxu0 %v2192
        %v2294 = vpop.f32.mrf.mxu0
        %v2295 = vadd.f32 0.0, %v2294
        %2296 = vmatmul.f32.gmra.mxu0 %v2194
        %v2297 = vpop.f32.mrf.mxu0
        %v2298 = vadd.f32 0.0, %v2297
        %2299 = vmatmul.f32.gmra.mxu0 %v2196
        %v2300 = vpop.f32.mrf.mxu0
        %v2301 = vadd.f32 0.0, %v2300
        %2302 = vmatmul.f32.gmra.mxu0 %v2198
        %v2303 = vpop.f32.mrf.mxu0
        %v2304 = vadd.f32 0.0, %v2303
        %2305 = vmatmul.f32.gmra.mxu0 %v2200
        %v2306 = vpop.f32.mrf.mxu0
        %v2307 = vadd.f32 0.0, %v2306
        %2308 = vmatmul.f32.gmra.mxu0 %v2202
        %v2309 = vpop.f32.mrf.mxu0
        %v2310 = vadd.f32 0.0, %v2309
        %2311 = vmatmul.f32.gmra.mxu0 %v2204
        %v2312 = vpop.f32.mrf.mxu0
        %v2313 = vadd.f32 0.0, %v2312
        %2314 = vmatmul.f32.gmra.mxu0 %v2206
        %v2315 = vpop.f32.mrf.mxu0
        %v2316 = vadd.f32 0.0, %v2315
        %2317 = vmatmul.f32.gmra.mxu0 %v2208
        %v2318 = vpop.f32.mrf.mxu0
        %v2319 = vadd.f32 0.0, %v2318
        %2320 = vmatmul.f32.gmra.mxu0 %v2210
        %v2321 = vpop.f32.mrf.mxu0
        %v2322 = vadd.f32 0.0, %v2321
        %2323 = vmatmul.f32.gmra.mxu0 %v2212
        %v2324 = vpop.f32.mrf.mxu0
        %v2325 = vadd.f32 0.0, %v2324
        %2326 = vmatmul.f32.gmra.mxu0 %v2214
        %v2327 = vpop.f32.mrf.mxu0
        %v2328 = vadd.f32 0.0, %v2327
        %2329 = vmatmul.f32.gmra.mxu0 %v2216
        %v2330 = vpop.f32.mrf.mxu0
        %v2331 = vadd.f32 0.0, %v2330
        %2332 = vmatmul.f32.gmra.mxu0 %v2218
        %v2333 = vpop.f32.mrf.mxu0
        %v2334 = vadd.f32 0.0, %v2333
        %2335 = vmatmul.f32.gmra.mxu0 %v2220
        %v2336 = vpop.f32.mrf.mxu0
        %v2337 = vadd.f32 0.0, %v2336
        %2338 = vmatmul.f32.gmra.mxu0 %v2222
        %v2339 = vpop.f32.mrf.mxu0
        %v2340 = vadd.f32 0.0, %v2339
        %2341 = vmatmul.f32.gmra.mxu0 %v2224
        %v2342 = vpop.f32.mrf.mxu0
        %v2343 = vadd.f32 0.0, %v2342
        %2344 = vmatmul.f32.gmra.mxu0 %v2226
        %v2345 = vpop.f32.mrf.mxu0
        %v2346 = vadd.f32 0.0, %v2345
        %2347 = vmatmul.f32.gmra.mxu0 %v2228
        %v2348 = vpop.f32.mrf.mxu0
        %v2349 = vadd.f32 0.0, %v2348
        %2350 = vmatmul.f32.gmra.mxu0 %v2230
        %v2351 = vpop.f32.mrf.mxu0
        %v2352 = vadd.f32 0.0, %v2351
        %2353 = vmatmul.f32.gmra.mxu0 %v2232
        %v2354 = vpop.f32.mrf.mxu0
        %v2355 = vadd.f32 0.0, %v2354
        %2356 = vmatmul.f32.gmra.mxu0 %v2234
        %v2357 = vpop.f32.mrf.mxu0
        %v2358 = vadd.f32 0.0, %v2357
        %2359 = vmatmul.f32.gmra.mxu0 %v2236
        %v2360 = vpop.f32.mrf.mxu0
        %v2361 = vadd.f32 0.0, %v2360
        %2362 = vdwg.mxu0
        %v2363 = vadd.f32 %v2055, %v2256
        %v2364 = vadd.f32 %v2056, %v2259
        %v2365 = vadd.f32 %v2057, %v2262
        %v2366 = vadd.f32 %v2058, %v2265
        %v2367 = vadd.f32 %v2059, %v2268
        %v2368 = vadd.f32 %v2060, %v2271
        %v2369 = vadd.f32 %v2061, %v2274
        %v2370 = vadd.f32 %v2062, %v2277
        %v2371 = vadd.f32 %v2063, %v2280
        %v2372 = vadd.f32 %v2064, %v2283
        %v2373 = vadd.f32 %v2065, %v2286
        %v2374 = vadd.f32 %v2066, %v2289
        %v2375 = vadd.f32 %v2067, %v2292
        %v2376 = vadd.f32 %v2068, %v2295
        %v2377 = vadd.f32 %v2069, %v2298
        %v2378 = vadd.f32 %v2070, %v2301
        %v2379 = vadd.f32 %v2071, %v2304
        %v2380 = vadd.f32 %v2072, %v2307
        %v2381 = vadd.f32 %v2073, %v2310
        %v2382 = vadd.f32 %v2074, %v2313
        %v2383 = vadd.f32 %v2075, %v2316
        %v2384 = vadd.f32 %v2076, %v2319
        %v2385 = vadd.f32 %v2077, %v2322
        %v2386 = vadd.f32 %v2078, %v2325
        %v2387 = vadd.f32 %v2079, %v2328
        %v2388 = vadd.f32 %v2080, %v2331
        %v2389 = vadd.f32 %v2081, %v2334
        %v2390 = vadd.f32 %v2082, %v2337
        %v2391 = vadd.f32 %v2083, %v2340
        %v2392 = vadd.f32 %v2084, %v2343
        %v2393 = vadd.f32 %v2085, %v2346
        %v2394 = vadd.f32 %v2086, %v2349
        %v2395 = vadd.f32 %v2087, %v2352
        %v2396 = vadd.f32 %v2088, %v2355
        %v2397 = vadd.f32 %v2089, %v2358
        %v2398 = vadd.f32 %v2090, %v2361
        %v2399 = vld [vmem:[%s1 + $0x40] sm:$0xff]
        %vm2400 = vcmask 1041408
        %v2401 = vrot.slane %v280, 6
        %v2402 = vrot.slane %v281, 6
        %v2403 = vsel %vm2400, %v2401, %v2402
        %v2404 = vrot.slane %v282, 6
        %v2405 = vsel %vm2400, %v2402, %v2404
        %v2406 = vrot.slane %v283, 6
        %v2407 = vsel %vm2400, %v2404, %v2406
        %v2408 = vrot.slane %v284, 6
        %v2409 = vsel %vm2400, %v2406, %v2408
        %v2410 = vrot.slane %v285, 6
        %v2411 = vsel %vm2400, %v2408, %v2410
        %v2412 = vrot.slane %v286, 6
        %v2413 = vsel %vm2400, %v2410, %v2412
        %v2414 = vrot.slane %v287, 6
        %v2415 = vsel %vm2400, %v2412, %v2414
        %v2416 = vrot.slane %v288, 6
        %v2417 = vsel %vm2400, %v2414, %v2416
        %v2418 = vrot.slane %v289, 6
        %v2419 = vsel %vm2400, %v2416, %v2418
        %v2420 = vrot.slane %v290, 6
        %v2421 = vsel %vm2400, %v2418, %v2420
        %v2422 = vrot.slane %v291, 6
        %v2423 = vsel %vm2400, %v2420, %v2422
        %v2424 = vrot.slane %v292, 6
        %v2425 = vsel %vm2400, %v2422, %v2424
        %v2426 = vrot.slane %v293, 6
        %v2427 = vsel %vm2400, %v2424, %v2426
        %v2428 = vrot.slane %v294, 6
        %v2429 = vsel %vm2400, %v2426, %v2428
        %v2430 = vrot.slane %v295, 6
        %v2431 = vsel %vm2400, %v2428, %v2430
        %v2432 = vrot.slane %v296, 6
        %v2433 = vsel %vm2400, %v2430, %v2432
        %v2434 = vrot.slane %v297, 6
        %v2435 = vsel %vm2400, %v2432, %v2434
        %v2436 = vrot.slane %v298, 6
        %v2437 = vsel %vm2400, %v2434, %v2436
        %v2438 = vrot.slane %v299, 6
        %v2439 = vsel %vm2400, %v2436, %v2438
        %v2440 = vrot.slane %v300, 6
        %v2441 = vsel %vm2400, %v2438, %v2440
        %v2442 = vrot.slane %v301, 6
        %v2443 = vsel %vm2400, %v2440, %v2442
        %v2444 = vrot.slane %v302, 6
        %v2445 = vsel %vm2400, %v2442, %v2444
        %v2446 = vrot.slane %v303, 6
        %v2447 = vsel %vm2400, %v2444, %v2446
        %v2448 = vrot.slane %v304, 6
        %v2449 = vsel %vm2400, %v2446, %v2448
        %v2450 = vrot.slane %v305, 6
        %v2451 = vsel %vm2400, %v2448, %v2450
        %v2452 = vrot.slane %v306, 6
        %v2453 = vsel %vm2400, %v2450, %v2452
        %v2454 = vrot.slane %v307, 6
        %v2455 = vsel %vm2400, %v2452, %v2454
        %v2456 = vrot.slane %v308, 6
        %v2457 = vsel %vm2400, %v2454, %v2456
        %v2458 = vrot.slane %v309, 6
        %v2459 = vsel %vm2400, %v2456, %v2458
        %v2460 = vrot.slane %v310, 6
        %v2461 = vsel %vm2400, %v2458, %v2460
        %v2462 = vrot.slane %v311, 6
        %v2463 = vsel %vm2400, %v2460, %v2462
        %v2464 = vrot.slane %v312, 6
        %v2465 = vsel %vm2400, %v2462, %v2464
        %v2466 = vrot.slane %v313, 6
        %v2467 = vsel %vm2400, %v2464, %v2466
        %v2468 = vrot.slane %v314, 6
        %v2469 = vsel %vm2400, %v2466, %v2468
        %v2470 = vrot.slane %v315, 6
        %v2471 = vsel %vm2400, %v2468, %v2470
        %v2472 = vrot.slane %v316, 6
        %v2473 = vsel %vm2400, %v2470, %v2472
        %v2474 = vsel %vm427, %v2403, 0
        %v2476 = vsel %vm427, %v2405, 0
        %v2478 = vsel %vm427, %v2407, 0
        %v2480 = vsel %vm427, %v2409, 0
        %v2482 = vsel %vm427, %v2411, 0
        %v2484 = vsel %vm427, %v2413, 0
        %v2486 = vsel %vm427, %v2415, 0
        %v2488 = vsel %vm427, %v2417, 0
        %v2490 = vsel %vm427, %v2419, 0
        %v2492 = vsel %vm427, %v2421, 0
        %v2494 = vsel %vm427, %v2423, 0
        %v2496 = vsel %vm427, %v2425, 0
        %v2498 = vsel %vm427, %v2427, 0
        %v2500 = vsel %vm427, %v2429, 0
        %v2502 = vsel %vm427, %v2431, 0
        %v2504 = vsel %vm427, %v2433, 0
        %v2506 = vsel %vm427, %v2435, 0
        %v2508 = vsel %vm427, %v2437, 0
        %v2510 = vsel %vm427, %v2439, 0
        %v2512 = vsel %vm427, %v2441, 0
        %v2514 = vsel %vm427, %v2443, 0
        %v2516 = vsel %vm427, %v2445, 0
        %v2518 = vsel %vm427, %v2447, 0
        %v2520 = vsel %vm427, %v2449, 0
        %v2522 = vsel %vm427, %v2451, 0
        %v2524 = vsel %vm427, %v2453, 0
        %v2526 = vsel %vm427, %v2455, 0
        %v2528 = vsel %vm427, %v2457, 0
        %v2530 = vsel %vm427, %v2459, 0
        %v2532 = vsel %vm427, %v2461, 0
        %v2534 = vsel %vm427, %v2463, 0
        %v2536 = vsel %vm427, %v2465, 0
        %v2538 = vsel %vm427, %v2467, 0
        %v2540 = vsel %vm427, %v2469, 0
        %v2542 = vsel %vm427, %v2471, 0
        %v2544 = vsel %vm427, %v2473, 0
        %2546 = vmatpush.msra.mxu0 0.0
        %2547 = vmatpush.msra.mxu0 0.0
        %2548 = vmatpush.msra.mxu0 0.0
        %2549 = vmatpush.msra.mxu0 0.0
        %2550 = vmatpush.msra.mxu0 0.0
        %2551 = vmatpush.msra.mxu0 0.0
        %2552 = vmatpush.msra.mxu0 0.0
        %2553 = vmatpush.msra.mxu0 0.0
        %2554 = vmatpush.msra.mxu0 0.0
        %2555 = vmatpush.msra.mxu0 0.0
        %2556 = vmatpush.msra.mxu0 0.0
        %2557 = vmatpush.msra.mxu0 0.0
        %2558 = vmatpush.msra.mxu0 0.0
        %2559 = vmatpush.msra.mxu0 0.0
        %2560 = vmatpush.msra.mxu0 0.0
        %2561 = vmatpush.msra.mxu0 %v2399
        %2562 = vmatmul.f32.gmra.mxu0 %v2474
        %v2563 = vpop.f32.mrf.mxu0
        %v2564 = vadd.f32 0.0, %v2563
        %2565 = vmatmul.f32.gmra.mxu0 %v2476
        %v2566 = vpop.f32.mrf.mxu0
        %v2567 = vadd.f32 0.0, %v2566
        %2568 = vmatmul.f32.gmra.mxu0 %v2478
        %v2569 = vpop.f32.mrf.mxu0
        %v2570 = vadd.f32 0.0, %v2569
        %2571 = vmatmul.f32.gmra.mxu0 %v2480
        %v2572 = vpop.f32.mrf.mxu0
        %v2573 = vadd.f32 0.0, %v2572
        %2574 = vmatmul.f32.gmra.mxu0 %v2482
        %v2575 = vpop.f32.mrf.mxu0
        %v2576 = vadd.f32 0.0, %v2575
        %2577 = vmatmul.f32.gmra.mxu0 %v2484
        %v2578 = vpop.f32.mrf.mxu0
        %v2579 = vadd.f32 0.0, %v2578
        %2580 = vmatmul.f32.gmra.mxu0 %v2486
        %v2581 = vpop.f32.mrf.mxu0
        %v2582 = vadd.f32 0.0, %v2581
        %2583 = vmatmul.f32.gmra.mxu0 %v2488
        %v2584 = vpop.f32.mrf.mxu0
        %v2585 = vadd.f32 0.0, %v2584
        %2586 = vmatmul.f32.gmra.mxu0 %v2490
        %v2587 = vpop.f32.mrf.mxu0
        %v2588 = vadd.f32 0.0, %v2587
        %2589 = vmatmul.f32.gmra.mxu0 %v2492
        %v2590 = vpop.f32.mrf.mxu0
        %v2591 = vadd.f32 0.0, %v2590
        %2592 = vmatmul.f32.gmra.mxu0 %v2494
        %v2593 = vpop.f32.mrf.mxu0
        %v2594 = vadd.f32 0.0, %v2593
        %2595 = vmatmul.f32.gmra.mxu0 %v2496
        %v2596 = vpop.f32.mrf.mxu0
        %v2597 = vadd.f32 0.0, %v2596
        %2598 = vmatmul.f32.gmra.mxu0 %v2498
        %v2599 = vpop.f32.mrf.mxu0
        %v2600 = vadd.f32 0.0, %v2599
        %2601 = vmatmul.f32.gmra.mxu0 %v2500
        %v2602 = vpop.f32.mrf.mxu0
        %v2603 = vadd.f32 0.0, %v2602
        %2604 = vmatmul.f32.gmra.mxu0 %v2502
        %v2605 = vpop.f32.mrf.mxu0
        %v2606 = vadd.f32 0.0, %v2605
        %2607 = vmatmul.f32.gmra.mxu0 %v2504
        %v2608 = vpop.f32.mrf.mxu0
        %v2609 = vadd.f32 0.0, %v2608
        %2610 = vmatmul.f32.gmra.mxu0 %v2506
        %v2611 = vpop.f32.mrf.mxu0
        %v2612 = vadd.f32 0.0, %v2611
        %2613 = vmatmul.f32.gmra.mxu0 %v2508
        %v2614 = vpop.f32.mrf.mxu0
        %v2615 = vadd.f32 0.0, %v2614
        %2616 = vmatmul.f32.gmra.mxu0 %v2510
        %v2617 = vpop.f32.mrf.mxu0
        %v2618 = vadd.f32 0.0, %v2617
        %2619 = vmatmul.f32.gmra.mxu0 %v2512
        %v2620 = vpop.f32.mrf.mxu0
        %v2621 = vadd.f32 0.0, %v2620
        %2622 = vmatmul.f32.gmra.mxu0 %v2514
        %v2623 = vpop.f32.mrf.mxu0
        %v2624 = vadd.f32 0.0, %v2623
        %2625 = vmatmul.f32.gmra.mxu0 %v2516
        %v2626 = vpop.f32.mrf.mxu0
        %v2627 = vadd.f32 0.0, %v2626
        %2628 = vmatmul.f32.gmra.mxu0 %v2518
        %v2629 = vpop.f32.mrf.mxu0
        %v2630 = vadd.f32 0.0, %v2629
        %2631 = vmatmul.f32.gmra.mxu0 %v2520
        %v2632 = vpop.f32.mrf.mxu0
        %v2633 = vadd.f32 0.0, %v2632
        %2634 = vmatmul.f32.gmra.mxu0 %v2522
        %v2635 = vpop.f32.mrf.mxu0
        %v2636 = vadd.f32 0.0, %v2635
        %2637 = vmatmul.f32.gmra.mxu0 %v2524
        %v2638 = vpop.f32.mrf.mxu0
        %v2639 = vadd.f32 0.0, %v2638
        %2640 = vmatmul.f32.gmra.mxu0 %v2526
        %v2641 = vpop.f32.mrf.mxu0
        %v2642 = vadd.f32 0.0, %v2641
        %2643 = vmatmul.f32.gmra.mxu0 %v2528
        %v2644 = vpop.f32.mrf.mxu0
        %v2645 = vadd.f32 0.0, %v2644
        %2646 = vmatmul.f32.gmra.mxu0 %v2530
        %v2647 = vpop.f32.mrf.mxu0
        %v2648 = vadd.f32 0.0, %v2647
        %2649 = vmatmul.f32.gmra.mxu0 %v2532
        %v2650 = vpop.f32.mrf.mxu0
        %v2651 = vadd.f32 0.0, %v2650
        %2652 = vmatmul.f32.gmra.mxu0 %v2534
        %v2653 = vpop.f32.mrf.mxu0
        %v2654 = vadd.f32 0.0, %v2653
        %2655 = vmatmul.f32.gmra.mxu0 %v2536
        %v2656 = vpop.f32.mrf.mxu0
        %v2657 = vadd.f32 0.0, %v2656
        %2658 = vmatmul.f32.gmra.mxu0 %v2538
        %v2659 = vpop.f32.mrf.mxu0
        %v2660 = vadd.f32 0.0, %v2659
        %2661 = vmatmul.f32.gmra.mxu0 %v2540
        %v2662 = vpop.f32.mrf.mxu0
        %v2663 = vadd.f32 0.0, %v2662
        %2664 = vmatmul.f32.gmra.mxu0 %v2542
        %v2665 = vpop.f32.mrf.mxu0
        %v2666 = vadd.f32 0.0, %v2665
        %2667 = vmatmul.f32.gmra.mxu0 %v2544
        %v2668 = vpop.f32.mrf.mxu0
        %v2669 = vadd.f32 0.0, %v2668
        %2670 = vdwg.mxu0
        %v2671 = vadd.f32 %v2363, %v2564
        %v2672 = vadd.f32 %v2364, %v2567
        %v2673 = vadd.f32 %v2365, %v2570
        %v2674 = vadd.f32 %v2366, %v2573
        %v2675 = vadd.f32 %v2367, %v2576
        %v2676 = vadd.f32 %v2368, %v2579
        %v2677 = vadd.f32 %v2369, %v2582
        %v2678 = vadd.f32 %v2370, %v2585
        %v2679 = vadd.f32 %v2371, %v2588
        %v2680 = vadd.f32 %v2372, %v2591
        %v2681 = vadd.f32 %v2373, %v2594
        %v2682 = vadd.f32 %v2374, %v2597
        %v2683 = vadd.f32 %v2375, %v2600
        %v2684 = vadd.f32 %v2376, %v2603
        %v2685 = vadd.f32 %v2377, %v2606
        %v2686 = vadd.f32 %v2378, %v2609
        %v2687 = vadd.f32 %v2379, %v2612
        %v2688 = vadd.f32 %v2380, %v2615
        %v2689 = vadd.f32 %v2381, %v2618
        %v2690 = vadd.f32 %v2382, %v2621
        %v2691 = vadd.f32 %v2383, %v2624
        %v2692 = vadd.f32 %v2384, %v2627
        %v2693 = vadd.f32 %v2385, %v2630
        %v2694 = vadd.f32 %v2386, %v2633
        %v2695 = vadd.f32 %v2387, %v2636
        %v2696 = vadd.f32 %v2388, %v2639
        %v2697 = vadd.f32 %v2389, %v2642
        %v2698 = vadd.f32 %v2390, %v2645
        %v2699 = vadd.f32 %v2391, %v2648
        %v2700 = vadd.f32 %v2392, %v2651
        %v2701 = vadd.f32 %v2393, %v2654
        %v2702 = vadd.f32 %v2394, %v2657
        %v2703 = vadd.f32 %v2395, %v2660
        %v2704 = vadd.f32 %v2396, %v2663
        %v2705 = vadd.f32 %v2397, %v2666
        %v2706 = vadd.f32 %v2398, %v2669
        %v2707 = vld [vmem:[%s2] sm:$0x1]
        %v2709 = vperm.slane %v2707, 0
        %v2711 = vadd.f32 %v2671, %v2709
        %v2712 = vadd.f32 %v2672, %v2709
        %v2713 = vadd.f32 %v2673, %v2709
        %v2714 = vadd.f32 %v2674, %v2709
        %v2715 = vadd.f32 %v2675, %v2709
        %v2716 = vadd.f32 %v2676, %v2709
        %v2717 = vadd.f32 %v2677, %v2709
        %v2718 = vadd.f32 %v2678, %v2709
        %v2719 = vadd.f32 %v2679, %v2709
        %v2720 = vadd.f32 %v2680, %v2709
        %v2721 = vadd.f32 %v2681, %v2709
        %v2722 = vadd.f32 %v2682, %v2709
        %v2723 = vadd.f32 %v2683, %v2709
        %v2724 = vadd.f32 %v2684, %v2709
        %v2725 = vadd.f32 %v2685, %v2709
        %v2726 = vadd.f32 %v2686, %v2709
        %v2727 = vadd.f32 %v2687, %v2709
        %v2728 = vadd.f32 %v2688, %v2709
        %v2729 = vadd.f32 %v2689, %v2709
        %v2730 = vadd.f32 %v2690, %v2709
        %v2731 = vadd.f32 %v2691, %v2709
        %v2732 = vadd.f32 %v2692, %v2709
        %v2733 = vadd.f32 %v2693, %v2709
        %v2734 = vadd.f32 %v2694, %v2709
        %v2735 = vadd.f32 %v2695, %v2709
        %v2736 = vadd.f32 %v2696, %v2709
        %v2737 = vadd.f32 %v2697, %v2709
        %v2738 = vadd.f32 %v2698, %v2709
        %v2739 = vadd.f32 %v2699, %v2709
        %v2740 = vadd.f32 %v2700, %v2709
        %v2741 = vadd.f32 %v2701, %v2709
        %v2742 = vadd.f32 %v2702, %v2709
        %v2743 = vadd.f32 %v2703, %v2709
        %v2744 = vadd.f32 %v2704, %v2709
        %v2745 = vadd.f32 %v2705, %v2709
        %v2746 = vadd.f32 %v2706, %v2709
        %v2747 = vmax.f32 %v2711, 0.0
        %v2748 = vmax.f32 %v2712, 0.0
        %v2749 = vmax.f32 %v2713, 0.0
        %v2750 = vmax.f32 %v2714, 0.0
        %v2751 = vmax.f32 %v2715, 0.0
        %v2752 = vmax.f32 %v2716, 0.0
        %v2753 = vmax.f32 %v2717, 0.0
        %v2754 = vmax.f32 %v2718, 0.0
        %v2755 = vmax.f32 %v2719, 0.0
        %v2756 = vmax.f32 %v2720, 0.0
        %v2757 = vmax.f32 %v2721, 0.0
        %v2758 = vmax.f32 %v2722, 0.0
        %v2759 = vmax.f32 %v2723, 0.0
        %v2760 = vmax.f32 %v2724, 0.0
        %v2761 = vmax.f32 %v2725, 0.0
        %v2762 = vmax.f32 %v2726, 0.0
        %v2763 = vmax.f32 %v2727, 0.0
        %v2764 = vmax.f32 %v2728, 0.0
        %v2765 = vmax.f32 %v2729, 0.0
        %v2766 = vmax.f32 %v2730, 0.0
        %v2767 = vmax.f32 %v2731, 0.0
        %v2768 = vmax.f32 %v2732, 0.0
        %v2769 = vmax.f32 %v2733, 0.0
        %v2770 = vmax.f32 %v2734, 0.0
        %v2771 = vmax.f32 %v2735, 0.0
        %v2772 = vmax.f32 %v2736, 0.0
        %v2773 = vmax.f32 %v2737, 0.0
        %v2774 = vmax.f32 %v2738, 0.0
        %v2775 = vmax.f32 %v2739, 0.0
        %v2776 = vmax.f32 %v2740, 0.0
        %v2777 = vmax.f32 %v2741, 0.0
        %v2778 = vmax.f32 %v2742, 0.0
        %v2779 = vmax.f32 %v2743, 0.0
        %v2780 = vmax.f32 %v2744, 0.0
        %v2781 = vmax.f32 %v2745, 0.0
        %v2782 = vmax.f32 %v2746, 0.0
        %v2783 = vld [vmem:[%s5] sm:$0xff]
        %v2784 = vld [vmem:[%s5 + $0x8] sm:$0xff]
        %v2785 = vld [vmem:[%s5 + $0x10] sm:$0xff]
        %v2786 = vld [vmem:[%s5 + $0x18] sm:$0xff]
        %v2787 = vld [vmem:[%s5 + $0x20] sm:$0xff]
        %v2788 = vld [vmem:[%s5 + $0x28] sm:$0xff]
        %v2789 = vld [vmem:[%s5 + $0x30] sm:$0xff]
        %v2790 = vld [vmem:[%s5 + $0x38] sm:$0xff]
        %v2791 = vld [vmem:[%s5 + $0x40] sm:$0xff]
        %v2792 = vld [vmem:[%s5 + $0x48] sm:$0xff]
        %v2793 = vld [vmem:[%s5 + $0x50] sm:$0xff]
        %v2794 = vld [vmem:[%s5 + $0x58] sm:$0xff]
        %v2795 = vld [vmem:[%s5 + $0x60] sm:$0xff]
        %v2796 = vld [vmem:[%s5 + $0x68] sm:$0xff]
        %v2797 = vld [vmem:[%s5 + $0x70] sm:$0xff]
        %v2798 = vld [vmem:[%s5 + $0x78] sm:$0xff]
        %v2799 = vld [vmem:[%s5 + $0x80] sm:$0xff]
        %v2800 = vld [vmem:[%s5 + $0x88] sm:$0xff]
        %v2801 = vld [vmem:[%s5 + $0x90] sm:$0xff]
        %v2802 = vld [vmem:[%s5 + $0x98] sm:$0xff]
        %v2803 = vld [vmem:[%s5 + $0xa0] sm:$0xff]
        %v2804 = vld [vmem:[%s5 + $0xa8] sm:$0xff]
        %v2805 = vld [vmem:[%s5 + $0xb0] sm:$0xff]
        %v2806 = vld [vmem:[%s5 + $0xb8] sm:$0xff]
        %v2807 = vld [vmem:[%s5 + $0xc0] sm:$0xff]
        %v2808 = vld [vmem:[%s5 + $0xc8] sm:$0xff]
        %v2809 = vld [vmem:[%s5 + $0xd0] sm:$0xff]
        %v2810 = vld [vmem:[%s5 + $0xd8] sm:$0xff]
        %v2811 = vld [vmem:[%s5 + $0xe0] sm:$0xff]
        %v2812 = vld [vmem:[%s5 + $0xe8] sm:$0xff]
        %v2813 = vld [vmem:[%s5 + $0xf0] sm:$0xff]
        %v2814 = vld [vmem:[%s5 + $0xf8] sm:$0xff]
        %v2815 = vld [vmem:[%s5 + $0x100] sm:$0xff]
        %v2816 = vld [vmem:[%s5 + $0x108] sm:$0xff]
        %v2817 = vld [vmem:[%s5 + $0x110] sm:$0xff]
        %v2818 = vld [vmem:[%s5 + $0x118] sm:$0xff]
        %v2819 = vld [vmem:[%s5 + $0x120] sm:$0xf]
        %v2820 = vld [vmem:[%s5 + $0x128] sm:$0xf]
        %v2821 = vld [vmem:[%s5 + $0x130] sm:$0xf]
        %vm2822 = vcmask 244736
        %v2824 = vsel %vm2822, %v2785, 0
        %v2827 = vsel %vm2822, %v2788, 0
        %v2830 = vsel %vm2822, %v2791, 0
        %v2833 = vsel %vm2822, %v2794, 0
        %v2836 = vsel %vm2822, %v2797, 0
        %v2839 = vsel %vm2822, %v2800, 0
        %v2842 = vsel %vm2822, %v2803, 0
        %v2845 = vsel %vm2822, %v2806, 0
        %v2848 = vsel %vm2822, %v2809, 0
        %v2851 = vsel %vm2822, %v2812, 0
        %v2854 = vsel %vm2822, %v2815, 0
        %v2857 = vsel %vm2822, %v2818, 0
        %v2860 = vsel %vm2822, %v2821, 0
        %v2863 = vsel %vm823, %v2782, 0
        %2865 = vmatpush.msra.mxu0 %v2762
        %2866 = vmatpush.msra.mxu0 %v2761
        %2867 = vmatpush.msra.mxu0 %v2760
        %2868 = vmatpush.msra.mxu0 %v2759
        %2869 = vmatpush.msra.mxu0 %v2758
        %2870 = vmatpush.msra.mxu0 %v2757
        %2871 = vmatpush.msra.mxu0 %v2756
        %2872 = vmatpush.msra.mxu0 %v2755
        %2873 = vmatpush.msra.mxu0 %v2754
        %2874 = vmatpush.msra.mxu0 %v2753
        %2875 = vmatpush.msra.mxu0 %v2752
        %2876 = vmatpush.msra.mxu0 %v2751
        %2877 = vmatpush.msra.mxu0 %v2750
        %2878 = vmatpush.msra.mxu0 %v2749
        %2879 = vmatpush.msra.mxu0 %v2748
        %2880 = vmatpush.msra.mxu0 %v2747
        %2881 = vmatmul.f32.gmra.mxu0 %v2783
        %v2882 = vpop.f32.mrf.mxu0
        %v2883 = vadd.f32 0.0, %v2882
        %2884 = vmatmul.f32.gmra.mxu0 %v2786
        %v2885 = vpop.f32.mrf.mxu0
        %v2886 = vadd.f32 0.0, %v2885
        %2887 = vmatmul.f32.gmra.mxu0 %v2789
        %v2888 = vpop.f32.mrf.mxu0
        %v2889 = vadd.f32 0.0, %v2888
        %2890 = vmatmul.f32.gmra.mxu0 %v2792
        %v2891 = vpop.f32.mrf.mxu0
        %v2892 = vadd.f32 0.0, %v2891
        %2893 = vmatmul.f32.gmra.mxu0 %v2795
        %v2894 = vpop.f32.mrf.mxu0
        %v2895 = vadd.f32 0.0, %v2894
        %2896 = vmatmul.f32.gmra.mxu0 %v2798
        %v2897 = vpop.f32.mrf.mxu0
        %v2898 = vadd.f32 0.0, %v2897
        %2899 = vmatmul.f32.gmra.mxu0 %v2801
        %v2900 = vpop.f32.mrf.mxu0
        %v2901 = vadd.f32 0.0, %v2900
        %2902 = vmatmul.f32.gmra.mxu0 %v2804
        %v2903 = vpop.f32.mrf.mxu0
        %v2904 = vadd.f32 0.0, %v2903
        %2905 = vmatmul.f32.gmra.mxu0 %v2807
        %v2906 = vpop.f32.mrf.mxu0
        %v2907 = vadd.f32 0.0, %v2906
        %2908 = vmatmul.f32.gmra.mxu0 %v2810
        %v2909 = vpop.f32.mrf.mxu0
        %v2910 = vadd.f32 0.0, %v2909
        %2911 = vmatmul.f32.gmra.mxu0 %v2813
        %v2912 = vpop.f32.mrf.mxu0
        %v2913 = vadd.f32 0.0, %v2912
        %2914 = vmatmul.f32.gmra.mxu0 %v2816
        %v2915 = vpop.f32.mrf.mxu0
        %v2916 = vadd.f32 0.0, %v2915
        %2917 = vmatmul.f32.gmra.mxu0 %v2819
        %v2918 = vpop.f32.mrf.mxu0
        %v2919 = vadd.f32 0.0, %v2918
        %2920 = vdwg.mxu0
        %2921 = vmatpush.msra.mxu0 %v2778
        %2922 = vmatpush.msra.mxu0 %v2777
        %2923 = vmatpush.msra.mxu0 %v2776
        %2924 = vmatpush.msra.mxu0 %v2775
        %2925 = vmatpush.msra.mxu0 %v2774
        %2926 = vmatpush.msra.mxu0 %v2773
        %2927 = vmatpush.msra.mxu0 %v2772
        %2928 = vmatpush.msra.mxu0 %v2771
        %2929 = vmatpush.msra.mxu0 %v2770
        %2930 = vmatpush.msra.mxu0 %v2769
        %2931 = vmatpush.msra.mxu0 %v2768
        %2932 = vmatpush.msra.mxu0 %v2767
        %2933 = vmatpush.msra.mxu0 %v2766
        %2934 = vmatpush.msra.mxu0 %v2765
        %2935 = vmatpush.msra.mxu0 %v2764
        %2936 = vmatpush.msra.mxu0 %v2763
        %2937 = vmatmul.f32.gmra.mxu0 %v2784
        %v2938 = vpop.f32.mrf.mxu0
        %v2939 = vadd.f32 %v2883, %v2938
        %2940 = vmatmul.f32.gmra.mxu0 %v2787
        %v2941 = vpop.f32.mrf.mxu0
        %v2942 = vadd.f32 %v2886, %v2941
        %2943 = vmatmul.f32.gmra.mxu0 %v2790
        %v2944 = vpop.f32.mrf.mxu0
        %v2945 = vadd.f32 %v2889, %v2944
        %2946 = vmatmul.f32.gmra.mxu0 %v2793
        %v2947 = vpop.f32.mrf.mxu0
        %v2948 = vadd.f32 %v2892, %v2947
        %2949 = vmatmul.f32.gmra.mxu0 %v2796
        %v2950 = vpop.f32.mrf.mxu0
        %v2951 = vadd.f32 %v2895, %v2950
        %2952 = vmatmul.f32.gmra.mxu0 %v2799
        %v2953 = vpop.f32.mrf.mxu0
        %v2954 = vadd.f32 %v2898, %v2953
        %2955 = vmatmul.f32.gmra.mxu0 %v2802
        %v2956 = vpop.f32.mrf.mxu0
        %v2957 = vadd.f32 %v2901, %v2956
        %2958 = vmatmul.f32.gmra.mxu0 %v2805
        %v2959 = vpop.f32.mrf.mxu0
        %v2960 = vadd.f32 %v2904, %v2959
        %2961 = vmatmul.f32.gmra.mxu0 %v2808
        %v2962 = vpop.f32.mrf.mxu0
        %v2963 = vadd.f32 %v2907, %v2962
        %2964 = vmatmul.f32.gmra.mxu0 %v2811
        %v2965 = vpop.f32.mrf.mxu0
        %v2966 = vadd.f32 %v2910, %v2965
        %2967 = vmatmul.f32.gmra.mxu0 %v2814
        %v2968 = vpop.f32.mrf.mxu0
        %v2969 = vadd.f32 %v2913, %v2968
        %2970 = vmatmul.f32.gmra.mxu0 %v2817
        %v2971 = vpop.f32.mrf.mxu0
        %v2972 = vadd.f32 %v2916, %v2971
        %2973 = vmatmul.f32.gmra.mxu0 %v2820
        %v2974 = vpop.f32.mrf.mxu0
        %v2975 = vadd.f32 %v2919, %v2974
        %2976 = vdwg.mxu0
        %2977 = vmatpush.msra.mxu0 0.0
        %2978 = vmatpush.msra.mxu0 0.0
        %2979 = vmatpush.msra.mxu0 0.0
        %2980 = vmatpush.msra.mxu0 0.0
        %2981 = vmatpush.msra.mxu0 0.0
        %2982 = vmatpush.msra.mxu0 0.0
        %2983 = vmatpush.msra.mxu0 0.0
        %2984 = vmatpush.msra.mxu0 0.0
        %2985 = vmatpush.msra.mxu0 0.0
        %2986 = vmatpush.msra.mxu0 0.0
        %2987 = vmatpush.msra.mxu0 0.0
        %2988 = vmatpush.msra.mxu0 0.0
        %2989 = vmatpush.msra.mxu0 %v2863
        %2990 = vmatpush.msra.mxu0 %v2781
        %2991 = vmatpush.msra.mxu0 %v2780
        %2992 = vmatpush.msra.mxu0 %v2779
        %2993 = vmatmul.f32.gmra.mxu0 %v2824
        %v2994 = vpop.f32.mrf.mxu0
        %v2995 = vadd.f32 %v2939, %v2994
        %2996 = vmatmul.f32.gmra.mxu0 %v2827
        %v2997 = vpop.f32.mrf.mxu0
        %v2998 = vadd.f32 %v2942, %v2997
        %2999 = vmatmul.f32.gmra.mxu0 %v2830
        %v3000 = vpop.f32.mrf.mxu0
        %v3001 = vadd.f32 %v2945, %v3000
        %3002 = vmatmul.f32.gmra.mxu0 %v2833
        %v3003 = vpop.f32.mrf.mxu0
        %v3004 = vadd.f32 %v2948, %v3003
        %3005 = vmatmul.f32.gmra.mxu0 %v2836
        %v3006 = vpop.f32.mrf.mxu0
        %v3007 = vadd.f32 %v2951, %v3006
        %3008 = vmatmul.f32.gmra.mxu0 %v2839
        %v3009 = vpop.f32.mrf.mxu0
        %v3010 = vadd.f32 %v2954, %v3009
        %3011 = vmatmul.f32.gmra.mxu0 %v2842
        %v3012 = vpop.f32.mrf.mxu0
        %v3013 = vadd.f32 %v2957, %v3012
        %3014 = vmatmul.f32.gmra.mxu0 %v2845
        %v3015 = vpop.f32.mrf.mxu0
        %v3016 = vadd.f32 %v2960, %v3015
        %3017 = vmatmul.f32.gmra.mxu0 %v2848
        %v3018 = vpop.f32.mrf.mxu0
        %v3019 = vadd.f32 %v2963, %v3018
        %3020 = vmatmul.f32.gmra.mxu0 %v2851
        %v3021 = vpop.f32.mrf.mxu0
        %v3022 = vadd.f32 %v2966, %v3021
        %3023 = vmatmul.f32.gmra.mxu0 %v2854
        %v3024 = vpop.f32.mrf.mxu0
        %v3025 = vadd.f32 %v2969, %v3024
        %3026 = vmatmul.f32.gmra.mxu0 %v2857
        %v3027 = vpop.f32.mrf.mxu0
        %v3028 = vadd.f32 %v2972, %v3027
        %3029 = vmatmul.f32.gmra.mxu0 %v2860
        %v3030 = vpop.f32.mrf.mxu0
        %v3031 = vadd.f32 %v2975, %v3030
        %3032 = vdwg.mxu0
        %s3033 = scalar_lea.vmem %s5, 312
        %v3034 = vld [vmem:[%s3033] sm:$0xff]
        %v3035 = vld [vmem:[%s3033 + $0x8] sm:$0xff]
        %v3036 = vld [vmem:[%s3033 + $0x10] sm:$0xff]
        %v3037 = vld [vmem:[%s3033 + $0x18] sm:$0xff]
        %v3038 = vld [vmem:[%s3033 + $0x20] sm:$0xff]
        %v3039 = vld [vmem:[%s3033 + $0x28] sm:$0xff]
        %v3040 = vld [vmem:[%s3033 + $0x30] sm:$0xff]
        %v3041 = vld [vmem:[%s3033 + $0x38] sm:$0xff]
        %v3042 = vld [vmem:[%s3033 + $0x40] sm:$0xff]
        %v3043 = vld [vmem:[%s3033 + $0x48] sm:$0xff]
        %v3044 = vld [vmem:[%s3033 + $0x50] sm:$0xff]
        %v3045 = vld [vmem:[%s3033 + $0x58] sm:$0xff]
        %v3046 = vld [vmem:[%s3033 + $0x60] sm:$0xff]
        %v3047 = vld [vmem:[%s3033 + $0x68] sm:$0xff]
        %v3048 = vld [vmem:[%s3033 + $0x70] sm:$0xff]
        %v3049 = vld [vmem:[%s3033 + $0x78] sm:$0xff]
        %v3050 = vld [vmem:[%s3033 + $0x80] sm:$0xff]
        %v3051 = vld [vmem:[%s3033 + $0x88] sm:$0xff]
        %v3052 = vld [vmem:[%s3033 + $0x90] sm:$0xff]
        %v3053 = vld [vmem:[%s3033 + $0x98] sm:$0xff]
        %v3054 = vld [vmem:[%s3033 + $0xa0] sm:$0xff]
        %v3055 = vld [vmem:[%s3033 + $0xa8] sm:$0xff]
        %v3056 = vld [vmem:[%s3033 + $0xb0] sm:$0xff]
        %v3057 = vld [vmem:[%s3033 + $0xb8] sm:$0xff]
        %v3058 = vld [vmem:[%s3033 + $0xc0] sm:$0xff]
        %v3059 = vld [vmem:[%s3033 + $0xc8] sm:$0xff]
        %v3060 = vld [vmem:[%s3033 + $0xd0] sm:$0xff]
        %v3061 = vld [vmem:[%s3033 + $0xd8] sm:$0xff]
        %v3062 = vld [vmem:[%s3033 + $0xe0] sm:$0xff]
        %v3063 = vld [vmem:[%s3033 + $0xe8] sm:$0xff]
        %v3064 = vld [vmem:[%s3033 + $0xf0] sm:$0xff]
        %v3065 = vld [vmem:[%s3033 + $0xf8] sm:$0xff]
        %v3066 = vld [vmem:[%s3033 + $0x100] sm:$0xff]
        %v3067 = vld [vmem:[%s3033 + $0x108] sm:$0xff]
        %v3068 = vld [vmem:[%s3033 + $0x110] sm:$0xff]
        %v3069 = vld [vmem:[%s3033 + $0x118] sm:$0xff]
        %v3070 = vld [vmem:[%s3033 + $0x120] sm:$0xf]
        %v3071 = vld [vmem:[%s3033 + $0x128] sm:$0xf]
        %v3072 = vld [vmem:[%s3033 + $0x130] sm:$0xf]
        %v3074 = vsel %vm2822, %v3036, 0
        %v3077 = vsel %vm2822, %v3039, 0
        %v3080 = vsel %vm2822, %v3042, 0
        %v3083 = vsel %vm2822, %v3045, 0
        %v3086 = vsel %vm2822, %v3048, 0
        %v3089 = vsel %vm2822, %v3051, 0
        %v3092 = vsel %vm2822, %v3054, 0
        %v3095 = vsel %vm2822, %v3057, 0
        %v3098 = vsel %vm2822, %v3060, 0
        %v3101 = vsel %vm2822, %v3063, 0
        %v3104 = vsel %vm2822, %v3066, 0
        %v3107 = vsel %vm2822, %v3069, 0
        %v3110 = vsel %vm2822, %v3072, 0
        %3112 = vmatpush.msra.mxu0 %v2762
        %3113 = vmatpush.msra.mxu0 %v2761
        %3114 = vmatpush.msra.mxu0 %v2760
        %3115 = vmatpush.msra.mxu0 %v2759
        %3116 = vmatpush.msra.mxu0 %v2758
        %3117 = vmatpush.msra.mxu0 %v2757
        %3118 = vmatpush.msra.mxu0 %v2756
        %3119 = vmatpush.msra.mxu0 %v2755
        %3120 = vmatpush.msra.mxu0 %v2754
        %3121 = vmatpush.msra.mxu0 %v2753
        %3122 = vmatpush.msra.mxu0 %v2752
        %3123 = vmatpush.msra.mxu0 %v2751
        %3124 = vmatpush.msra.mxu0 %v2750
        %3125 = vmatpush.msra.mxu0 %v2749
        %3126 = vmatpush.msra.mxu0 %v2748
        %3127 = vmatpush.msra.mxu0 %v2747
        %3128 = vmatmul.f32.gmra.mxu0 %v3034
        %v3129 = vpop.f32.mrf.mxu0
        %v3130 = vadd.f32 0.0, %v3129
        %3131 = vmatmul.f32.gmra.mxu0 %v3037
        %v3132 = vpop.f32.mrf.mxu0
        %v3133 = vadd.f32 0.0, %v3132
        %3134 = vmatmul.f32.gmra.mxu0 %v3040
        %v3135 = vpop.f32.mrf.mxu0
        %v3136 = vadd.f32 0.0, %v3135
        %3137 = vmatmul.f32.gmra.mxu0 %v3043
        %v3138 = vpop.f32.mrf.mxu0
        %v3139 = vadd.f32 0.0, %v3138
        %3140 = vmatmul.f32.gmra.mxu0 %v3046
        %v3141 = vpop.f32.mrf.mxu0
        %v3142 = vadd.f32 0.0, %v3141
        %3143 = vmatmul.f32.gmra.mxu0 %v3049
        %v3144 = vpop.f32.mrf.mxu0
        %v3145 = vadd.f32 0.0, %v3144
        %3146 = vmatmul.f32.gmra.mxu0 %v3052
        %v3147 = vpop.f32.mrf.mxu0
        %v3148 = vadd.f32 0.0, %v3147
        %3149 = vmatmul.f32.gmra.mxu0 %v3055
        %v3150 = vpop.f32.mrf.mxu0
        %v3151 = vadd.f32 0.0, %v3150
        %3152 = vmatmul.f32.gmra.mxu0 %v3058
        %v3153 = vpop.f32.mrf.mxu0
        %v3154 = vadd.f32 0.0, %v3153
        %3155 = vmatmul.f32.gmra.mxu0 %v3061
        %v3156 = vpop.f32.mrf.mxu0
        %v3157 = vadd.f32 0.0, %v3156
        %3158 = vmatmul.f32.gmra.mxu0 %v3064
        %v3159 = vpop.f32.mrf.mxu0
        %v3160 = vadd.f32 0.0, %v3159
        %3161 = vmatmul.f32.gmra.mxu0 %v3067
        %v3162 = vpop.f32.mrf.mxu0
        %v3163 = vadd.f32 0.0, %v3162
        %3164 = vmatmul.f32.gmra.mxu0 %v3070
        %v3165 = vpop.f32.mrf.mxu0
        %v3166 = vadd.f32 0.0, %v3165
        %3167 = vdwg.mxu0
        %3168 = vmatpush.msra.mxu0 %v2778
        %3169 = vmatpush.msra.mxu0 %v2777
        %3170 = vmatpush.msra.mxu0 %v2776
        %3171 = vmatpush.msra.mxu0 %v2775
        %3172 = vmatpush.msra.mxu0 %v2774
        %3173 = vmatpush.msra.mxu0 %v2773
        %3174 = vmatpush.msra.mxu0 %v2772
        %3175 = vmatpush.msra.mxu0 %v2771
        %3176 = vmatpush.msra.mxu0 %v2770
        %3177 = vmatpush.msra.mxu0 %v2769
        %3178 = vmatpush.msra.mxu0 %v2768
        %3179 = vmatpush.msra.mxu0 %v2767
        %3180 = vmatpush.msra.mxu0 %v2766
        %3181 = vmatpush.msra.mxu0 %v2765
        %3182 = vmatpush.msra.mxu0 %v2764
        %3183 = vmatpush.msra.mxu0 %v2763
        %3184 = vmatmul.f32.gmra.mxu0 %v3035
        %v3185 = vpop.f32.mrf.mxu0
        %v3186 = vadd.f32 %v3130, %v3185
        %3187 = vmatmul.f32.gmra.mxu0 %v3038
        %v3188 = vpop.f32.mrf.mxu0
        %v3189 = vadd.f32 %v3133, %v3188
        %3190 = vmatmul.f32.gmra.mxu0 %v3041
        %v3191 = vpop.f32.mrf.mxu0
        %v3192 = vadd.f32 %v3136, %v3191
        %3193 = vmatmul.f32.gmra.mxu0 %v3044
        %v3194 = vpop.f32.mrf.mxu0
        %v3195 = vadd.f32 %v3139, %v3194
        %3196 = vmatmul.f32.gmra.mxu0 %v3047
        %v3197 = vpop.f32.mrf.mxu0
        %v3198 = vadd.f32 %v3142, %v3197
        %3199 = vmatmul.f32.gmra.mxu0 %v3050
        %v3200 = vpop.f32.mrf.mxu0
        %v3201 = vadd.f32 %v3145, %v3200
        %3202 = vmatmul.f32.gmra.mxu0 %v3053
        %v3203 = vpop.f32.mrf.mxu0
        %v3204 = vadd.f32 %v3148, %v3203
        %3205 = vmatmul.f32.gmra.mxu0 %v3056
        %v3206 = vpop.f32.mrf.mxu0
        %v3207 = vadd.f32 %v3151, %v3206
        %3208 = vmatmul.f32.gmra.mxu0 %v3059
        %v3209 = vpop.f32.mrf.mxu0
        %v3210 = vadd.f32 %v3154, %v3209
        %3211 = vmatmul.f32.gmra.mxu0 %v3062
        %v3212 = vpop.f32.mrf.mxu0
        %v3213 = vadd.f32 %v3157, %v3212
        %3214 = vmatmul.f32.gmra.mxu0 %v3065
        %v3215 = vpop.f32.mrf.mxu0
        %v3216 = vadd.f32 %v3160, %v3215
        %3217 = vmatmul.f32.gmra.mxu0 %v3068
        %v3218 = vpop.f32.mrf.mxu0
        %v3219 = vadd.f32 %v3163, %v3218
        %3220 = vmatmul.f32.gmra.mxu0 %v3071
        %v3221 = vpop.f32.mrf.mxu0
        %v3222 = vadd.f32 %v3166, %v3221
        %3223 = vdwg.mxu0
        %3224 = vmatpush.msra.mxu0 0.0
        %3225 = vmatpush.msra.mxu0 0.0
        %3226 = vmatpush.msra.mxu0 0.0
        %3227 = vmatpush.msra.mxu0 0.0
        %3228 = vmatpush.msra.mxu0 0.0
        %3229 = vmatpush.msra.mxu0 0.0
        %3230 = vmatpush.msra.mxu0 0.0
        %3231 = vmatpush.msra.mxu0 0.0
        %3232 = vmatpush.msra.mxu0 0.0
        %3233 = vmatpush.msra.mxu0 0.0
        %3234 = vmatpush.msra.mxu0 0.0
        %3235 = vmatpush.msra.mxu0 0.0
        %3236 = vmatpush.msra.mxu0 %v2863
        %3237 = vmatpush.msra.mxu0 %v2781
        %3238 = vmatpush.msra.mxu0 %v2780
        %3239 = vmatpush.msra.mxu0 %v2779
        %3240 = vmatmul.f32.gmra.mxu0 %v3074
        %v3241 = vpop.f32.mrf.mxu0
        %v3242 = vadd.f32 %v3186, %v3241
        %3243 = vmatmul.f32.gmra.mxu0 %v3077
        %v3244 = vpop.f32.mrf.mxu0
        %v3245 = vadd.f32 %v3189, %v3244
        %3246 = vmatmul.f32.gmra.mxu0 %v3080
        %v3247 = vpop.f32.mrf.mxu0
        %v3248 = vadd.f32 %v3192, %v3247
        %3249 = vmatmul.f32.gmra.mxu0 %v3083
        %v3250 = vpop.f32.mrf.mxu0
        %v3251 = vadd.f32 %v3195, %v3250
        %3252 = vmatmul.f32.gmra.mxu0 %v3086
        %v3253 = vpop.f32.mrf.mxu0
        %v3254 = vadd.f32 %v3198, %v3253
        %3255 = vmatmul.f32.gmra.mxu0 %v3089
        %v3256 = vpop.f32.mrf.mxu0
        %v3257 = vadd.f32 %v3201, %v3256
        %3258 = vmatmul.f32.gmra.mxu0 %v3092
        %v3259 = vpop.f32.mrf.mxu0
        %v3260 = vadd.f32 %v3204, %v3259
        %3261 = vmatmul.f32.gmra.mxu0 %v3095
        %v3262 = vpop.f32.mrf.mxu0
        %v3263 = vadd.f32 %v3207, %v3262
        %3264 = vmatmul.f32.gmra.mxu0 %v3098
        %v3265 = vpop.f32.mrf.mxu0
        %v3266 = vadd.f32 %v3210, %v3265
        %3267 = vmatmul.f32.gmra.mxu0 %v3101
        %v3268 = vpop.f32.mrf.mxu0
        %v3269 = vadd.f32 %v3213, %v3268
        %3270 = vmatmul.f32.gmra.mxu0 %v3104
        %v3271 = vpop.f32.mrf.mxu0
        %v3272 = vadd.f32 %v3216, %v3271
        %3273 = vmatmul.f32.gmra.mxu0 %v3107
        %v3274 = vpop.f32.mrf.mxu0
        %v3275 = vadd.f32 %v3219, %v3274
        %3276 = vmatmul.f32.gmra.mxu0 %v3110
        %v3277 = vpop.f32.mrf.mxu0
        %v3278 = vadd.f32 %v3222, %v3277
        %3279 = vdwg.mxu0
        %s3280 = scalar_lea.vmem %s5, 624
        %v3281 = vld [vmem:[%s3280] sm:$0xff]
        %v3282 = vld [vmem:[%s3280 + $0x8] sm:$0xff]
        %v3283 = vld [vmem:[%s3280 + $0x10] sm:$0xff]
        %v3284 = vld [vmem:[%s3280 + $0x18] sm:$0xff]
        %v3285 = vld [vmem:[%s3280 + $0x20] sm:$0xff]
        %v3286 = vld [vmem:[%s3280 + $0x28] sm:$0xff]
        %v3287 = vld [vmem:[%s3280 + $0x30] sm:$0xff]
        %v3288 = vld [vmem:[%s3280 + $0x38] sm:$0xff]
        %v3289 = vld [vmem:[%s3280 + $0x40] sm:$0xff]
        %v3290 = vld [vmem:[%s3280 + $0x48] sm:$0xff]
        %v3291 = vld [vmem:[%s3280 + $0x50] sm:$0xff]
        %v3292 = vld [vmem:[%s3280 + $0x58] sm:$0xff]
        %v3293 = vld [vmem:[%s3280 + $0x60] sm:$0xff]
        %v3294 = vld [vmem:[%s3280 + $0x68] sm:$0xff]
        %v3295 = vld [vmem:[%s3280 + $0x70] sm:$0xff]
        %v3296 = vld [vmem:[%s3280 + $0x78] sm:$0xff]
        %v3297 = vld [vmem:[%s3280 + $0x80] sm:$0xff]
        %v3298 = vld [vmem:[%s3280 + $0x88] sm:$0xff]
        %v3299 = vld [vmem:[%s3280 + $0x90] sm:$0xff]
        %v3300 = vld [vmem:[%s3280 + $0x98] sm:$0xff]
        %v3301 = vld [vmem:[%s3280 + $0xa0] sm:$0xff]
        %v3302 = vld [vmem:[%s3280 + $0xa8] sm:$0xff]
        %v3303 = vld [vmem:[%s3280 + $0xb0] sm:$0xff]
        %v3304 = vld [vmem:[%s3280 + $0xb8] sm:$0xff]
        %v3305 = vld [vmem:[%s3280 + $0xc0] sm:$0xff]
        %v3306 = vld [vmem:[%s3280 + $0xc8] sm:$0xff]
        %v3307 = vld [vmem:[%s3280 + $0xd0] sm:$0xff]
        %v3308 = vld [vmem:[%s3280 + $0xd8] sm:$0xff]
        %v3309 = vld [vmem:[%s3280 + $0xe0] sm:$0xff]
        %v3310 = vld [vmem:[%s3280 + $0xe8] sm:$0xff]
        %v3311 = vld [vmem:[%s3280 + $0xf0] sm:$0xff]
        %v3312 = vld [vmem:[%s3280 + $0xf8] sm:$0xff]
        %v3313 = vld [vmem:[%s3280 + $0x100] sm:$0xff]
        %v3314 = vld [vmem:[%s3280 + $0x108] sm:$0xff]
        %v3315 = vld [vmem:[%s3280 + $0x110] sm:$0xff]
        %v3316 = vld [vmem:[%s3280 + $0x118] sm:$0xff]
        %v3317 = vld [vmem:[%s3280 + $0x120] sm:$0xf]
        %v3318 = vld [vmem:[%s3280 + $0x128] sm:$0xf]
        %v3319 = vld [vmem:[%s3280 + $0x130] sm:$0xf]
        %v3321 = vsel %vm2822, %v3283, 0
        %v3324 = vsel %vm2822, %v3286, 0
        %v3327 = vsel %vm2822, %v3289, 0
        %v3330 = vsel %vm2822, %v3292, 0
        %v3333 = vsel %vm2822, %v3295, 0
        %v3336 = vsel %vm2822, %v3298, 0
        %v3339 = vsel %vm2822, %v3301, 0
        %v3342 = vsel %vm2822, %v3304, 0
        %v3345 = vsel %vm2822, %v3307, 0
        %v3348 = vsel %vm2822, %v3310, 0
        %v3351 = vsel %vm2822, %v3313, 0
        %v3354 = vsel %vm2822, %v3316, 0
        %v3357 = vsel %vm2822, %v3319, 0
        %3359 = vmatpush.msra.mxu0 %v2762
        %3360 = vmatpush.msra.mxu0 %v2761
        %3361 = vmatpush.msra.mxu0 %v2760
        %3362 = vmatpush.msra.mxu0 %v2759
        %3363 = vmatpush.msra.mxu0 %v2758
        %3364 = vmatpush.msra.mxu0 %v2757
        %3365 = vmatpush.msra.mxu0 %v2756
        %3366 = vmatpush.msra.mxu0 %v2755
        %3367 = vmatpush.msra.mxu0 %v2754
        %3368 = vmatpush.msra.mxu0 %v2753
        %3369 = vmatpush.msra.mxu0 %v2752
        %3370 = vmatpush.msra.mxu0 %v2751
        %3371 = vmatpush.msra.mxu0 %v2750
        %3372 = vmatpush.msra.mxu0 %v2749
        %3373 = vmatpush.msra.mxu0 %v2748
        %3374 = vmatpush.msra.mxu0 %v2747
        %3375 = vmatmul.f32.gmra.mxu0 %v3281
        %v3376 = vpop.f32.mrf.mxu0
        %v3377 = vadd.f32 0.0, %v3376
        %3378 = vmatmul.f32.gmra.mxu0 %v3284
        %v3379 = vpop.f32.mrf.mxu0
        %v3380 = vadd.f32 0.0, %v3379
        %3381 = vmatmul.f32.gmra.mxu0 %v3287
        %v3382 = vpop.f32.mrf.mxu0
        %v3383 = vadd.f32 0.0, %v3382
        %3384 = vmatmul.f32.gmra.mxu0 %v3290
        %v3385 = vpop.f32.mrf.mxu0
        %v3386 = vadd.f32 0.0, %v3385
        %3387 = vmatmul.f32.gmra.mxu0 %v3293
        %v3388 = vpop.f32.mrf.mxu0
        %v3389 = vadd.f32 0.0, %v3388
        %3390 = vmatmul.f32.gmra.mxu0 %v3296
        %v3391 = vpop.f32.mrf.mxu0
        %v3392 = vadd.f32 0.0, %v3391
        %3393 = vmatmul.f32.gmra.mxu0 %v3299
        %v3394 = vpop.f32.mrf.mxu0
        %v3395 = vadd.f32 0.0, %v3394
        %3396 = vmatmul.f32.gmra.mxu0 %v3302
        %v3397 = vpop.f32.mrf.mxu0
        %v3398 = vadd.f32 0.0, %v3397
        %3399 = vmatmul.f32.gmra.mxu0 %v3305
        %v3400 = vpop.f32.mrf.mxu0
        %v3401 = vadd.f32 0.0, %v3400
        %3402 = vmatmul.f32.gmra.mxu0 %v3308
        %v3403 = vpop.f32.mrf.mxu0
        %v3404 = vadd.f32 0.0, %v3403
        %3405 = vmatmul.f32.gmra.mxu0 %v3311
        %v3406 = vpop.f32.mrf.mxu0
        %v3407 = vadd.f32 0.0, %v3406
        %3408 = vmatmul.f32.gmra.mxu0 %v3314
        %v3409 = vpop.f32.mrf.mxu0
        %v3410 = vadd.f32 0.0, %v3409
        %3411 = vmatmul.f32.gmra.mxu0 %v3317
        %v3412 = vpop.f32.mrf.mxu0
        %v3413 = vadd.f32 0.0, %v3412
        %3414 = vdwg.mxu0
        %3415 = vmatpush.msra.mxu0 %v2778
        %3416 = vmatpush.msra.mxu0 %v2777
        %3417 = vmatpush.msra.mxu0 %v2776
        %3418 = vmatpush.msra.mxu0 %v2775
        %3419 = vmatpush.msra.mxu0 %v2774
        %3420 = vmatpush.msra.mxu0 %v2773
        %3421 = vmatpush.msra.mxu0 %v2772
        %3422 = vmatpush.msra.mxu0 %v2771
        %3423 = vmatpush.msra.mxu0 %v2770
        %3424 = vmatpush.msra.mxu0 %v2769
        %3425 = vmatpush.msra.mxu0 %v2768
        %3426 = vmatpush.msra.mxu0 %v2767
        %3427 = vmatpush.msra.mxu0 %v2766
        %3428 = vmatpush.msra.mxu0 %v2765
        %3429 = vmatpush.msra.mxu0 %v2764
        %3430 = vmatpush.msra.mxu0 %v2763
        %3431 = vmatmul.f32.gmra.mxu0 %v3282
        %v3432 = vpop.f32.mrf.mxu0
        %v3433 = vadd.f32 %v3377, %v3432
        %3434 = vmatmul.f32.gmra.mxu0 %v3285
        %v3435 = vpop.f32.mrf.mxu0
        %v3436 = vadd.f32 %v3380, %v3435
        %3437 = vmatmul.f32.gmra.mxu0 %v3288
        %v3438 = vpop.f32.mrf.mxu0
        %v3439 = vadd.f32 %v3383, %v3438
        %3440 = vmatmul.f32.gmra.mxu0 %v3291
        %v3441 = vpop.f32.mrf.mxu0
        %v3442 = vadd.f32 %v3386, %v3441
        %3443 = vmatmul.f32.gmra.mxu0 %v3294
        %v3444 = vpop.f32.mrf.mxu0
        %v3445 = vadd.f32 %v3389, %v3444
        %3446 = vmatmul.f32.gmra.mxu0 %v3297
        %v3447 = vpop.f32.mrf.mxu0
        %v3448 = vadd.f32 %v3392, %v3447
        %3449 = vmatmul.f32.gmra.mxu0 %v3300
        %v3450 = vpop.f32.mrf.mxu0
        %v3451 = vadd.f32 %v3395, %v3450
        %3452 = vmatmul.f32.gmra.mxu0 %v3303
        %v3453 = vpop.f32.mrf.mxu0
        %v3454 = vadd.f32 %v3398, %v3453
        %3455 = vmatmul.f32.gmra.mxu0 %v3306
        %v3456 = vpop.f32.mrf.mxu0
        %v3457 = vadd.f32 %v3401, %v3456
        %3458 = vmatmul.f32.gmra.mxu0 %v3309
        %v3459 = vpop.f32.mrf.mxu0
        %v3460 = vadd.f32 %v3404, %v3459
        %3461 = vmatmul.f32.gmra.mxu0 %v3312
        %v3462 = vpop.f32.mrf.mxu0
        %v3463 = vadd.f32 %v3407, %v3462
        %3464 = vmatmul.f32.gmra.mxu0 %v3315
        %v3465 = vpop.f32.mrf.mxu0
        %v3466 = vadd.f32 %v3410, %v3465
        %3467 = vmatmul.f32.gmra.mxu0 %v3318
        %v3468 = vpop.f32.mrf.mxu0
        %v3469 = vadd.f32 %v3413, %v3468
        %3470 = vdwg.mxu0
        %3471 = vmatpush.msra.mxu0 0.0
        %3472 = vmatpush.msra.mxu0 0.0
        %3473 = vmatpush.msra.mxu0 0.0
        %3474 = vmatpush.msra.mxu0 0.0
        %3475 = vmatpush.msra.mxu0 0.0
        %3476 = vmatpush.msra.mxu0 0.0
        %3477 = vmatpush.msra.mxu0 0.0
        %3478 = vmatpush.msra.mxu0 0.0
        %3479 = vmatpush.msra.mxu0 0.0
        %3480 = vmatpush.msra.mxu0 0.0
        %3481 = vmatpush.msra.mxu0 0.0
        %3482 = vmatpush.msra.mxu0 0.0
        %3483 = vmatpush.msra.mxu0 %v2863
        %3484 = vmatpush.msra.mxu0 %v2781
        %3485 = vmatpush.msra.mxu0 %v2780
        %3486 = vmatpush.msra.mxu0 %v2779
        %3487 = vmatmul.f32.gmra.mxu0 %v3321
        %v3488 = vpop.f32.mrf.mxu0
        %v3489 = vadd.f32 %v3433, %v3488
        %3490 = vmatmul.f32.gmra.mxu0 %v3324
        %v3491 = vpop.f32.mrf.mxu0
        %v3492 = vadd.f32 %v3436, %v3491
        %3493 = vmatmul.f32.gmra.mxu0 %v3327
        %v3494 = vpop.f32.mrf.mxu0
        %v3495 = vadd.f32 %v3439, %v3494
        %3496 = vmatmul.f32.gmra.mxu0 %v3330
        %v3497 = vpop.f32.mrf.mxu0
        %v3498 = vadd.f32 %v3442, %v3497
        %3499 = vmatmul.f32.gmra.mxu0 %v3333
        %v3500 = vpop.f32.mrf.mxu0
        %v3501 = vadd.f32 %v3445, %v3500
        %3502 = vmatmul.f32.gmra.mxu0 %v3336
        %v3503 = vpop.f32.mrf.mxu0
        %v3504 = vadd.f32 %v3448, %v3503
        %3505 = vmatmul.f32.gmra.mxu0 %v3339
        %v3506 = vpop.f32.mrf.mxu0
        %v3507 = vadd.f32 %v3451, %v3506
        %3508 = vmatmul.f32.gmra.mxu0 %v3342
        %v3509 = vpop.f32.mrf.mxu0
        %v3510 = vadd.f32 %v3454, %v3509
        %3511 = vmatmul.f32.gmra.mxu0 %v3345
        %v3512 = vpop.f32.mrf.mxu0
        %v3513 = vadd.f32 %v3457, %v3512
        %3514 = vmatmul.f32.gmra.mxu0 %v3348
        %v3515 = vpop.f32.mrf.mxu0
        %v3516 = vadd.f32 %v3460, %v3515
        %3517 = vmatmul.f32.gmra.mxu0 %v3351
        %v3518 = vpop.f32.mrf.mxu0
        %v3519 = vadd.f32 %v3463, %v3518
        %3520 = vmatmul.f32.gmra.mxu0 %v3354
        %v3521 = vpop.f32.mrf.mxu0
        %v3522 = vadd.f32 %v3466, %v3521
        %3523 = vmatmul.f32.gmra.mxu0 %v3357
        %v3524 = vpop.f32.mrf.mxu0
        %v3525 = vadd.f32 %v3469, %v3524
        %3526 = vdwg.mxu0
        %s3527 = scalar_lea.vmem %s5, 936
        %v3528 = vld [vmem:[%s3527] sm:$0xff]
        %v3529 = vld [vmem:[%s3527 + $0x8] sm:$0xff]
        %v3530 = vld [vmem:[%s3527 + $0x10] sm:$0xff]
        %v3531 = vld [vmem:[%s3527 + $0x18] sm:$0xff]
        %v3532 = vld [vmem:[%s3527 + $0x20] sm:$0xff]
        %v3533 = vld [vmem:[%s3527 + $0x28] sm:$0xff]
        %v3534 = vld [vmem:[%s3527 + $0x30] sm:$0xff]
        %v3535 = vld [vmem:[%s3527 + $0x38] sm:$0xff]
        %v3536 = vld [vmem:[%s3527 + $0x40] sm:$0xff]
        %v3537 = vld [vmem:[%s3527 + $0x48] sm:$0xff]
        %v3538 = vld [vmem:[%s3527 + $0x50] sm:$0xff]
        %v3539 = vld [vmem:[%s3527 + $0x58] sm:$0xff]
        %v3540 = vld [vmem:[%s3527 + $0x60] sm:$0xff]
        %v3541 = vld [vmem:[%s3527 + $0x68] sm:$0xff]
        %v3542 = vld [vmem:[%s3527 + $0x70] sm:$0xff]
        %v3543 = vld [vmem:[%s3527 + $0x78] sm:$0xff]
        %v3544 = vld [vmem:[%s3527 + $0x80] sm:$0xff]
        %v3545 = vld [vmem:[%s3527 + $0x88] sm:$0xff]
        %v3546 = vld [vmem:[%s3527 + $0x90] sm:$0xff]
        %v3547 = vld [vmem:[%s3527 + $0x98] sm:$0xff]
        %v3548 = vld [vmem:[%s3527 + $0xa0] sm:$0xff]
        %v3549 = vld [vmem:[%s3527 + $0xa8] sm:$0xff]
        %v3550 = vld [vmem:[%s3527 + $0xb0] sm:$0xff]
        %v3551 = vld [vmem:[%s3527 + $0xb8] sm:$0xff]
        %v3552 = vld [vmem:[%s3527 + $0xc0] sm:$0xff]
        %v3553 = vld [vmem:[%s3527 + $0xc8] sm:$0xff]
        %v3554 = vld [vmem:[%s3527 + $0xd0] sm:$0xff]
        %v3555 = vld [vmem:[%s3527 + $0xd8] sm:$0xff]
        %v3556 = vld [vmem:[%s3527 + $0xe0] sm:$0xff]
        %v3557 = vld [vmem:[%s3527 + $0xe8] sm:$0xff]
        %v3558 = vld [vmem:[%s3527 + $0xf0] sm:$0xff]
        %v3559 = vld [vmem:[%s3527 + $0xf8] sm:$0xff]
        %v3560 = vld [vmem:[%s3527 + $0x100] sm:$0xff]
        %v3561 = vld [vmem:[%s3527 + $0x108] sm:$0xff]
        %v3562 = vld [vmem:[%s3527 + $0x110] sm:$0xff]
        %v3563 = vld [vmem:[%s3527 + $0x118] sm:$0xff]
        %v3564 = vld [vmem:[%s3527 + $0x120] sm:$0xf]
        %v3565 = vld [vmem:[%s3527 + $0x128] sm:$0xf]
        %v3566 = vld [vmem:[%s3527 + $0x130] sm:$0xf]
        %v3568 = vsel %vm2822, %v3530, 0
        %v3571 = vsel %vm2822, %v3533, 0
        %v3574 = vsel %vm2822, %v3536, 0
        %v3577 = vsel %vm2822, %v3539, 0
        %v3580 = vsel %vm2822, %v3542, 0
        %v3583 = vsel %vm2822, %v3545, 0
        %v3586 = vsel %vm2822, %v3548, 0
        %v3589 = vsel %vm2822, %v3551, 0
        %v3592 = vsel %vm2822, %v3554, 0
        %v3595 = vsel %vm2822, %v3557, 0
        %v3598 = vsel %vm2822, %v3560, 0
        %v3601 = vsel %vm2822, %v3563, 0
        %v3604 = vsel %vm2822, %v3566, 0
        %3606 = vmatpush.msra.mxu0 %v2762
        %3607 = vmatpush.msra.mxu0 %v2761
        %3608 = vmatpush.msra.mxu0 %v2760
        %3609 = vmatpush.msra.mxu0 %v2759
        %3610 = vmatpush.msra.mxu0 %v2758
        %3611 = vmatpush.msra.mxu0 %v2757
        %3612 = vmatpush.msra.mxu0 %v2756
        %3613 = vmatpush.msra.mxu0 %v2755
        %3614 = vmatpush.msra.mxu0 %v2754
        %3615 = vmatpush.msra.mxu0 %v2753
        %3616 = vmatpush.msra.mxu0 %v2752
        %3617 = vmatpush.msra.mxu0 %v2751
        %3618 = vmatpush.msra.mxu0 %v2750
        %3619 = vmatpush.msra.mxu0 %v2749
        %3620 = vmatpush.msra.mxu0 %v2748
        %3621 = vmatpush.msra.mxu0 %v2747
        %3622 = vmatmul.f32.gmra.mxu0 %v3528
        %v3623 = vpop.f32.mrf.mxu0
        %v3624 = vadd.f32 0.0, %v3623
        %3625 = vmatmul.f32.gmra.mxu0 %v3531
        %v3626 = vpop.f32.mrf.mxu0
        %v3627 = vadd.f32 0.0, %v3626
        %3628 = vmatmul.f32.gmra.mxu0 %v3534
        %v3629 = vpop.f32.mrf.mxu0
        %v3630 = vadd.f32 0.0, %v3629
        %3631 = vmatmul.f32.gmra.mxu0 %v3537
        %v3632 = vpop.f32.mrf.mxu0
        %v3633 = vadd.f32 0.0, %v3632
        %3634 = vmatmul.f32.gmra.mxu0 %v3540
        %v3635 = vpop.f32.mrf.mxu0
        %v3636 = vadd.f32 0.0, %v3635
        %3637 = vmatmul.f32.gmra.mxu0 %v3543
        %v3638 = vpop.f32.mrf.mxu0
        %v3639 = vadd.f32 0.0, %v3638
        %3640 = vmatmul.f32.gmra.mxu0 %v3546
        %v3641 = vpop.f32.mrf.mxu0
        %v3642 = vadd.f32 0.0, %v3641
        %3643 = vmatmul.f32.gmra.mxu0 %v3549
        %v3644 = vpop.f32.mrf.mxu0
        %v3645 = vadd.f32 0.0, %v3644
        %3646 = vmatmul.f32.gmra.mxu0 %v3552
        %v3647 = vpop.f32.mrf.mxu0
        %v3648 = vadd.f32 0.0, %v3647
        %3649 = vmatmul.f32.gmra.mxu0 %v3555
        %v3650 = vpop.f32.mrf.mxu0
        %v3651 = vadd.f32 0.0, %v3650
        %3652 = vmatmul.f32.gmra.mxu0 %v3558
        %v3653 = vpop.f32.mrf.mxu0
        %v3654 = vadd.f32 0.0, %v3653
        %3655 = vmatmul.f32.gmra.mxu0 %v3561
        %v3656 = vpop.f32.mrf.mxu0
        %v3657 = vadd.f32 0.0, %v3656
        %3658 = vmatmul.f32.gmra.mxu0 %v3564
        %v3659 = vpop.f32.mrf.mxu0
        %v3660 = vadd.f32 0.0, %v3659
        %3661 = vdwg.mxu0
        %3662 = vmatpush.msra.mxu0 %v2778
        %3663 = vmatpush.msra.mxu0 %v2777
        %3664 = vmatpush.msra.mxu0 %v2776
        %3665 = vmatpush.msra.mxu0 %v2775
        %3666 = vmatpush.msra.mxu0 %v2774
        %3667 = vmatpush.msra.mxu0 %v2773
        %3668 = vmatpush.msra.mxu0 %v2772
        %3669 = vmatpush.msra.mxu0 %v2771
        %3670 = vmatpush.msra.mxu0 %v2770
        %3671 = vmatpush.msra.mxu0 %v2769
        %3672 = vmatpush.msra.mxu0 %v2768
        %3673 = vmatpush.msra.mxu0 %v2767
        %3674 = vmatpush.msra.mxu0 %v2766
        %3675 = vmatpush.msra.mxu0 %v2765
        %3676 = vmatpush.msra.mxu0 %v2764
        %3677 = vmatpush.msra.mxu0 %v2763
        %3678 = vmatmul.f32.gmra.mxu0 %v3529
        %v3679 = vpop.f32.mrf.mxu0
        %v3680 = vadd.f32 %v3624, %v3679
        %3681 = vmatmul.f32.gmra.mxu0 %v3532
        %v3682 = vpop.f32.mrf.mxu0
        %v3683 = vadd.f32 %v3627, %v3682
        %3684 = vmatmul.f32.gmra.mxu0 %v3535
        %v3685 = vpop.f32.mrf.mxu0
        %v3686 = vadd.f32 %v3630, %v3685
        %3687 = vmatmul.f32.gmra.mxu0 %v3538
        %v3688 = vpop.f32.mrf.mxu0
        %v3689 = vadd.f32 %v3633, %v3688
        %3690 = vmatmul.f32.gmra.mxu0 %v3541
        %v3691 = vpop.f32.mrf.mxu0
        %v3692 = vadd.f32 %v3636, %v3691
        %3693 = vmatmul.f32.gmra.mxu0 %v3544
        %v3694 = vpop.f32.mrf.mxu0
        %v3695 = vadd.f32 %v3639, %v3694
        %3696 = vmatmul.f32.gmra.mxu0 %v3547
        %v3697 = vpop.f32.mrf.mxu0
        %v3698 = vadd.f32 %v3642, %v3697
        %3699 = vmatmul.f32.gmra.mxu0 %v3550
        %v3700 = vpop.f32.mrf.mxu0
        %v3701 = vadd.f32 %v3645, %v3700
        %3702 = vmatmul.f32.gmra.mxu0 %v3553
        %v3703 = vpop.f32.mrf.mxu0
        %v3704 = vadd.f32 %v3648, %v3703
        %3705 = vmatmul.f32.gmra.mxu0 %v3556
        %v3706 = vpop.f32.mrf.mxu0
        %v3707 = vadd.f32 %v3651, %v3706
        %3708 = vmatmul.f32.gmra.mxu0 %v3559
        %v3709 = vpop.f32.mrf.mxu0
        %v3710 = vadd.f32 %v3654, %v3709
        %3711 = vmatmul.f32.gmra.mxu0 %v3562
        %v3712 = vpop.f32.mrf.mxu0
        %v3713 = vadd.f32 %v3657, %v3712
        %3714 = vmatmul.f32.gmra.mxu0 %v3565
        %v3715 = vpop.f32.mrf.mxu0
        %v3716 = vadd.f32 %v3660, %v3715
        %3717 = vdwg.mxu0
        %3718 = vmatpush.msra.mxu0 0.0
        %3719 = vmatpush.msra.mxu0 0.0
        %3720 = vmatpush.msra.mxu0 0.0
        %3721 = vmatpush.msra.mxu0 0.0
        %3722 = vmatpush.msra.mxu0 0.0
        %3723 = vmatpush.msra.mxu0 0.0
        %3724 = vmatpush.msra.mxu0 0.0
        %3725 = vmatpush.msra.mxu0 0.0
        %3726 = vmatpush.msra.mxu0 0.0
        %3727 = vmatpush.msra.mxu0 0.0
        %3728 = vmatpush.msra.mxu0 0.0
        %3729 = vmatpush.msra.mxu0 0.0
        %3730 = vmatpush.msra.mxu0 %v2863
        %3731 = vmatpush.msra.mxu0 %v2781
        %3732 = vmatpush.msra.mxu0 %v2780
        %3733 = vmatpush.msra.mxu0 %v2779
        %3734 = vmatmul.f32.gmra.mxu0 %v3568
        %v3735 = vpop.f32.mrf.mxu0
        %v3736 = vadd.f32 %v3680, %v3735
        %3737 = vmatmul.f32.gmra.mxu0 %v3571
        %v3738 = vpop.f32.mrf.mxu0
        %v3739 = vadd.f32 %v3683, %v3738
        %3740 = vmatmul.f32.gmra.mxu0 %v3574
        %v3741 = vpop.f32.mrf.mxu0
        %v3742 = vadd.f32 %v3686, %v3741
        %3743 = vmatmul.f32.gmra.mxu0 %v3577
        %v3744 = vpop.f32.mrf.mxu0
        %v3745 = vadd.f32 %v3689, %v3744
        %3746 = vmatmul.f32.gmra.mxu0 %v3580
        %v3747 = vpop.f32.mrf.mxu0
        %v3748 = vadd.f32 %v3692, %v3747
        %3749 = vmatmul.f32.gmra.mxu0 %v3583
        %v3750 = vpop.f32.mrf.mxu0
        %v3751 = vadd.f32 %v3695, %v3750
        %3752 = vmatmul.f32.gmra.mxu0 %v3586
        %v3753 = vpop.f32.mrf.mxu0
        %v3754 = vadd.f32 %v3698, %v3753
        %3755 = vmatmul.f32.gmra.mxu0 %v3589
        %v3756 = vpop.f32.mrf.mxu0
        %v3757 = vadd.f32 %v3701, %v3756
        %3758 = vmatmul.f32.gmra.mxu0 %v3592
        %v3759 = vpop.f32.mrf.mxu0
        %v3760 = vadd.f32 %v3704, %v3759
        %3761 = vmatmul.f32.gmra.mxu0 %v3595
        %v3762 = vpop.f32.mrf.mxu0
        %v3763 = vadd.f32 %v3707, %v3762
        %3764 = vmatmul.f32.gmra.mxu0 %v3598
        %v3765 = vpop.f32.mrf.mxu0
        %v3766 = vadd.f32 %v3710, %v3765
        %3767 = vmatmul.f32.gmra.mxu0 %v3601
        %v3768 = vpop.f32.mrf.mxu0
        %v3769 = vadd.f32 %v3713, %v3768
        %3770 = vmatmul.f32.gmra.mxu0 %v3604
        %v3771 = vpop.f32.mrf.mxu0
        %v3772 = vadd.f32 %v3716, %v3771
        %3773 = vdwg.mxu0
        %v3774 = vmax.f32 %v2995, %v3242
        %v3775 = vmax.f32 %v2998, %v3245
        %v3776 = vmax.f32 %v3001, %v3248
        %v3777 = vmax.f32 %v3004, %v3251
        %v3778 = vmax.f32 %v3007, %v3254
        %v3779 = vmax.f32 %v3010, %v3257
        %v3780 = vmax.f32 %v3013, %v3260
        %v3781 = vmax.f32 %v3016, %v3263
        %v3782 = vmax.f32 %v3019, %v3266
        %v3783 = vmax.f32 %v3022, %v3269
        %v3784 = vmax.f32 %v3025, %v3272
        %v3785 = vmax.f32 %v3028, %v3275
        %v3786 = vmax.f32 %v3031, %v3278
        %v3787 = vmax.f32 %v3489, %v3736
        %v3788 = vmax.f32 %v3492, %v3739
        %v3789 = vmax.f32 %v3495, %v3742
        %v3790 = vmax.f32 %v3498, %v3745
        %v3791 = vmax.f32 %v3501, %v3748
        %v3792 = vmax.f32 %v3504, %v3751
        %v3793 = vmax.f32 %v3507, %v3754
        %v3794 = vmax.f32 %v3510, %v3757
        %v3795 = vmax.f32 %v3513, %v3760
        %v3796 = vmax.f32 %v3516, %v3763
        %v3797 = vmax.f32 %v3519, %v3766
        %v3798 = vmax.f32 %v3522, %v3769
        %v3799 = vmax.f32 %v3525, %v3772
        %v3800 = vmax.f32 %v3774, %v3787
        %v3801 = vmax.f32 %v3775, %v3788
        %v3802 = vmax.f32 %v3776, %v3789
        %v3803 = vmax.f32 %v3777, %v3790
        %v3804 = vmax.f32 %v3778, %v3791
        %v3805 = vmax.f32 %v3779, %v3792
        %v3806 = vmax.f32 %v3780, %v3793
        %v3807 = vmax.f32 %v3781, %v3794
        %v3808 = vmax.f32 %v3782, %v3795
        %v3809 = vmax.f32 %v3783, %v3796
        %v3810 = vmax.f32 %v3784, %v3797
        %v3811 = vmax.f32 %v3785, %v3798
        %v3812 = vmax.f32 %v3786, %v3799
        %v3813 = vld [vmem:[%s3] sm:$0xff]
        %v3814 = vld [vmem:[%s3 + $0x8] sm:$0xff]
        %v3815 = vld [vmem:[%s3 + $0x10] sm:$0xff]
        %v3816 = vld [vmem:[%s3 + $0x18] sm:$0xff]
        %v3817 = vld [vmem:[%s3 + $0x20] sm:$0xff]
        %v3818 = vld [vmem:[%s3 + $0x28] sm:$0xff]
        %v3819 = vld [vmem:[%s3 + $0x30] sm:$0xff]
        %v3820 = vld [vmem:[%s3 + $0x38] sm:$0xff]
        %v3831 = vrot.slane %v3800, 1
        %v3832 = vrot.slane %v3801, 1
        %v3833 = vsel %vm355, %v3831, %v3832
        %v3834 = vrot.slane %v3802, 1
        %v3835 = vsel %vm355, %v3832, %v3834
        %v3836 = vrot.slane %v3803, 1
        %v3837 = vsel %vm355, %v3834, %v3836
        %v3838 = vrot.slane %v3804, 1
        %v3839 = vsel %vm355, %v3836, %v3838
        %v3840 = vrot.slane %v3805, 1
        %v3841 = vsel %vm355, %v3838, %v3840
        %v3842 = vrot.slane %v3806, 1
        %v3843 = vsel %vm355, %v3840, %v3842
        %v3844 = vrot.slane %v3807, 1
        %v3845 = vsel %vm355, %v3842, %v3844
        %v3846 = vrot.slane %v3808, 1
        %v3847 = vsel %vm355, %v3844, %v3846
        %v3848 = vrot.slane %v3809, 1
        %v3849 = vsel %vm355, %v3846, %v3848
        %vm3850 = vcmask 261120
        %v3851 = vsel %vm3850, %v3833, 0
        %v3853 = vsel %vm3850, %v3835, 0
        %v3855 = vsel %vm3850, %v3837, 0
        %v3857 = vsel %vm3850, %v3839, 0
        %v3859 = vsel %vm3850, %v3841, 0
        %v3861 = vsel %vm3850, %v3843, 0
        %v3863 = vsel %vm3850, %v3845, 0
        %v3865 = vsel %vm3850, %v3847, 0
        %v3867 = vsel %vm3850, %v3849, 0
        %v3869 = vsel %vm3850, %v3848, 0
        %3871 = vmatpush.msra.mxu0 0.0
        %3872 = vmatpush.msra.mxu0 0.0
        %3873 = vmatpush.msra.mxu0 0.0
        %3874 = vmatpush.msra.mxu0 0.0
        %3875 = vmatpush.msra.mxu0 0.0
        %3876 = vmatpush.msra.mxu0 0.0
        %3877 = vmatpush.msra.mxu0 0.0
        %3878 = vmatpush.msra.mxu0 0.0
        %3879 = vmatpush.msra.mxu0 0.0
        %3880 = vmatpush.msra.mxu0 0.0
        %3881 = vmatpush.msra.mxu0 0.0
        %3882 = vmatpush.msra.mxu0 0.0
        %3883 = vmatpush.msra.mxu0 %v3820
        %3884 = vmatpush.msra.mxu0 %v3819
        %3885 = vmatpush.msra.mxu0 %v3818
        %3886 = vmatpush.msra.mxu0 %v3817
        %3887 = vmatmul.f32.gmra.mxu0 %v3851
        %v3888 = vpop.f32.mrf.mxu0
        %v3889 = vadd.f32 0.0, %v3888
        %3890 = vmatmul.f32.gmra.mxu0 %v3853
        %v3891 = vpop.f32.mrf.mxu0
        %v3892 = vadd.f32 0.0, %v3891
        %3893 = vmatmul.f32.gmra.mxu0 %v3855
        %v3894 = vpop.f32.mrf.mxu0
        %v3895 = vadd.f32 0.0, %v3894
        %3896 = vmatmul.f32.gmra.mxu0 %v3857
        %v3897 = vpop.f32.mrf.mxu0
        %v3898 = vadd.f32 0.0, %v3897
        %3899 = vmatmul.f32.gmra.mxu0 %v3859
        %v3900 = vpop.f32.mrf.mxu0
        %v3901 = vadd.f32 0.0, %v3900
        %3902 = vmatmul.f32.gmra.mxu0 %v3861
        %v3903 = vpop.f32.mrf.mxu0
        %v3904 = vadd.f32 0.0, %v3903
        %3905 = vmatmul.f32.gmra.mxu0 %v3863
        %v3906 = vpop.f32.mrf.mxu0
        %v3907 = vadd.f32 0.0, %v3906
        %3908 = vmatmul.f32.gmra.mxu0 %v3865
        %v3909 = vpop.f32.mrf.mxu0
        %v3910 = vadd.f32 0.0, %v3909
        %3911 = vmatmul.f32.gmra.mxu0 %v3867
        %v3912 = vpop.f32.mrf.mxu0
        %v3913 = vadd.f32 0.0, %v3912
        %3914 = vmatmul.f32.gmra.mxu0 %v3869
        %v3915 = vpop.f32.mrf.mxu0
        %v3916 = vadd.f32 0.0, %v3915
        %3917 = vdwg.mxu0
        %v3918 = vsel %vm3850, %v3800, 0
        %v3920 = vsel %vm3850, %v3801, 0
        %v3922 = vsel %vm3850, %v3802, 0
        %v3924 = vsel %vm3850, %v3803, 0
        %v3926 = vsel %vm3850, %v3804, 0
        %v3928 = vsel %vm3850, %v3805, 0
        %v3930 = vsel %vm3850, %v3806, 0
        %v3932 = vsel %vm3850, %v3807, 0
        %v3934 = vsel %vm3850, %v3808, 0
        %v3936 = vsel %vm3850, %v3809, 0
        %3938 = vmatpush.msra.mxu0 0.0
        %3939 = vmatpush.msra.mxu0 0.0
        %3940 = vmatpush.msra.mxu0 0.0
        %3941 = vmatpush.msra.mxu0 0.0
        %3942 = vmatpush.msra.mxu0 0.0
        %3943 = vmatpush.msra.mxu0 0.0
        %3944 = vmatpush.msra.mxu0 0.0
        %3945 = vmatpush.msra.mxu0 0.0
        %3946 = vmatpush.msra.mxu0 0.0
        %3947 = vmatpush.msra.mxu0 0.0
        %3948 = vmatpush.msra.mxu0 0.0
        %3949 = vmatpush.msra.mxu0 0.0
        %3950 = vmatpush.msra.mxu0 %v3816
        %3951 = vmatpush.msra.mxu0 %v3815
        %3952 = vmatpush.msra.mxu0 %v3814
        %3953 = vmatpush.msra.mxu0 %v3813
        %3954 = vmatmul.f32.gmra.mxu0 %v3918
        %v3955 = vpop.f32.mrf.mxu0
        %v3956 = vadd.f32 %v3889, %v3955
        %3957 = vmatmul.f32.gmra.mxu0 %v3920
        %v3958 = vpop.f32.mrf.mxu0
        %v3959 = vadd.f32 %v3892, %v3958
        %3960 = vmatmul.f32.gmra.mxu0 %v3922
        %v3961 = vpop.f32.mrf.mxu0
        %v3962 = vadd.f32 %v3895, %v3961
        %3963 = vmatmul.f32.gmra.mxu0 %v3924
        %v3964 = vpop.f32.mrf.mxu0
        %v3965 = vadd.f32 %v3898, %v3964
        %3966 = vmatmul.f32.gmra.mxu0 %v3926
        %v3967 = vpop.f32.mrf.mxu0
        %v3968 = vadd.f32 %v3901, %v3967
        %3969 = vmatmul.f32.gmra.mxu0 %v3928
        %v3970 = vpop.f32.mrf.mxu0
        %v3971 = vadd.f32 %v3904, %v3970
        %3972 = vmatmul.f32.gmra.mxu0 %v3930
        %v3973 = vpop.f32.mrf.mxu0
        %v3974 = vadd.f32 %v3907, %v3973
        %3975 = vmatmul.f32.gmra.mxu0 %v3932
        %v3976 = vpop.f32.mrf.mxu0
        %v3977 = vadd.f32 %v3910, %v3976
        %3978 = vmatmul.f32.gmra.mxu0 %v3934
        %v3979 = vpop.f32.mrf.mxu0
        %v3980 = vadd.f32 %v3913, %v3979
        %3981 = vmatmul.f32.gmra.mxu0 %v3936
        %v3982 = vpop.f32.mrf.mxu0
        %v3983 = vadd.f32 %v3916, %v3982
        %3984 = vdwg.mxu0
        %v3985 = vld [vmem:[%s3 + $0x40] sm:$0xff]
        %v3986 = vld [vmem:[%s3 + $0x48] sm:$0xff]
        %v3987 = vld [vmem:[%s3 + $0x50] sm:$0xff]
        %v3988 = vld [vmem:[%s3 + $0x58] sm:$0xff]
        %v3989 = vrot.slane %v3800, 2
        %v3990 = vrot.slane %v3801, 2
        %v3991 = vsel %vm823, %v3989, %v3990
        %v3992 = vrot.slane %v3802, 2
        %v3993 = vsel %vm823, %v3990, %v3992
        %v3994 = vrot.slane %v3803, 2
        %v3995 = vsel %vm823, %v3992, %v3994
        %v3996 = vrot.slane %v3804, 2
        %v3997 = vsel %vm823, %v3994, %v3996
        %v3998 = vrot.slane %v3805, 2
        %v3999 = vsel %vm823, %v3996, %v3998
        %v4000 = vrot.slane %v3806, 2
        %v4001 = vsel %vm823, %v3998, %v4000
        %v4002 = vrot.slane %v3807, 2
        %v4003 = vsel %vm823, %v4000, %v4002
        %v4004 = vrot.slane %v3808, 2
        %v4005 = vsel %vm823, %v4002, %v4004
        %v4006 = vrot.slane %v3809, 2
        %v4007 = vsel %vm823, %v4004, %v4006
        %v4008 = vsel %vm3850, %v3991, 0
        %v4010 = vsel %vm3850, %v3993, 0
        %v4012 = vsel %vm3850, %v3995, 0
        %v4014 = vsel %vm3850, %v3997, 0
        %v4016 = vsel %vm3850, %v3999, 0
        %v4018 = vsel %vm3850, %v4001, 0
        %v4020 = vsel %vm3850, %v4003, 0
        %v4022 = vsel %vm3850, %v4005, 0
        %v4024 = vsel %vm3850, %v4007, 0
        %v4026 = vsel %vm3850, %v4006, 0
        %4028 = vmatpush.msra.mxu0 0.0
        %4029 = vmatpush.msra.mxu0 0.0
        %4030 = vmatpush.msra.mxu0 0.0
        %4031 = vmatpush.msra.mxu0 0.0
        %4032 = vmatpush.msra.mxu0 0.0
        %4033 = vmatpush.msra.mxu0 0.0
        %4034 = vmatpush.msra.mxu0 0.0
        %4035 = vmatpush.msra.mxu0 0.0
        %4036 = vmatpush.msra.mxu0 0.0
        %4037 = vmatpush.msra.mxu0 0.0
        %4038 = vmatpush.msra.mxu0 0.0
        %4039 = vmatpush.msra.mxu0 0.0
        %4040 = vmatpush.msra.mxu0 %v3988
        %4041 = vmatpush.msra.mxu0 %v3987
        %4042 = vmatpush.msra.mxu0 %v3986
        %4043 = vmatpush.msra.mxu0 %v3985
        %4044 = vmatmul.f32.gmra.mxu0 %v4008
        %v4045 = vpop.f32.mrf.mxu0
        %v4046 = vadd.f32 0.0, %v4045
        %4047 = vmatmul.f32.gmra.mxu0 %v4010
        %v4048 = vpop.f32.mrf.mxu0
        %v4049 = vadd.f32 0.0, %v4048
        %4050 = vmatmul.f32.gmra.mxu0 %v4012
        %v4051 = vpop.f32.mrf.mxu0
        %v4052 = vadd.f32 0.0, %v4051
        %4053 = vmatmul.f32.gmra.mxu0 %v4014
        %v4054 = vpop.f32.mrf.mxu0
        %v4055 = vadd.f32 0.0, %v4054
        %4056 = vmatmul.f32.gmra.mxu0 %v4016
        %v4057 = vpop.f32.mrf.mxu0
        %v4058 = vadd.f32 0.0, %v4057
        %4059 = vmatmul.f32.gmra.mxu0 %v4018
        %v4060 = vpop.f32.mrf.mxu0
        %v4061 = vadd.f32 0.0, %v4060
        %4062 = vmatmul.f32.gmra.mxu0 %v4020
        %v4063 = vpop.f32.mrf.mxu0
        %v4064 = vadd.f32 0.0, %v4063
        %4065 = vmatmul.f32.gmra.mxu0 %v4022
        %v4066 = vpop.f32.mrf.mxu0
        %v4067 = vadd.f32 0.0, %v4066
        %4068 = vmatmul.f32.gmra.mxu0 %v4024
        %v4069 = vpop.f32.mrf.mxu0
        %v4070 = vadd.f32 0.0, %v4069
        %4071 = vmatmul.f32.gmra.mxu0 %v4026
        %v4072 = vpop.f32.mrf.mxu0
        %v4073 = vadd.f32 0.0, %v4072
        %4074 = vdwg.mxu0
        %v4075 = vadd.f32 %v3956, %v4046
        %v4076 = vadd.f32 %v3959, %v4049
        %v4077 = vadd.f32 %v3962, %v4052
        %v4078 = vadd.f32 %v3965, %v4055
        %v4079 = vadd.f32 %v3968, %v4058
        %v4080 = vadd.f32 %v3971, %v4061
        %v4081 = vadd.f32 %v3974, %v4064
        %v4082 = vadd.f32 %v3977, %v4067
        %v4083 = vadd.f32 %v3980, %v4070
        %v4084 = vadd.f32 %v3983, %v4073
        %v4085 = vld [vmem:[%s3 + $0x60] sm:$0xff]
        %v4086 = vld [vmem:[%s3 + $0x68] sm:$0xff]
        %v4087 = vld [vmem:[%s3 + $0x70] sm:$0xff]
        %v4088 = vld [vmem:[%s3 + $0x78] sm:$0xff]
        %v4090 = vrot.slane %v3810, 2
        %v4091 = vsel %vm823, %v4006, %v4090
        %v4092 = vsel %vm3850, %v4091, 0
        %v4094 = vsel %vm3850, %v4090, 0
        %4096 = vmatpush.msra.mxu0 0.0
        %4097 = vmatpush.msra.mxu0 0.0
        %4098 = vmatpush.msra.mxu0 0.0
        %4099 = vmatpush.msra.mxu0 0.0
        %4100 = vmatpush.msra.mxu0 0.0
        %4101 = vmatpush.msra.mxu0 0.0
        %4102 = vmatpush.msra.mxu0 0.0
        %4103 = vmatpush.msra.mxu0 0.0
        %4104 = vmatpush.msra.mxu0 0.0
        %4105 = vmatpush.msra.mxu0 0.0
        %4106 = vmatpush.msra.mxu0 0.0
        %4107 = vmatpush.msra.mxu0 0.0
        %4108 = vmatpush.msra.mxu0 %v4088
        %4109 = vmatpush.msra.mxu0 %v4087
        %4110 = vmatpush.msra.mxu0 %v4086
        %4111 = vmatpush.msra.mxu0 %v4085
        %4112 = vmatmul.f32.gmra.mxu0 %v4010
        %v4113 = vpop.f32.mrf.mxu0
        %v4114 = vadd.f32 0.0, %v4113
        %4115 = vmatmul.f32.gmra.mxu0 %v4012
        %v4116 = vpop.f32.mrf.mxu0
        %v4117 = vadd.f32 0.0, %v4116
        %4118 = vmatmul.f32.gmra.mxu0 %v4014
        %v4119 = vpop.f32.mrf.mxu0
        %v4120 = vadd.f32 0.0, %v4119
        %4121 = vmatmul.f32.gmra.mxu0 %v4016
        %v4122 = vpop.f32.mrf.mxu0
        %v4123 = vadd.f32 0.0, %v4122
        %4124 = vmatmul.f32.gmra.mxu0 %v4018
        %v4125 = vpop.f32.mrf.mxu0
        %v4126 = vadd.f32 0.0, %v4125
        %4127 = vmatmul.f32.gmra.mxu0 %v4020
        %v4128 = vpop.f32.mrf.mxu0
        %v4129 = vadd.f32 0.0, %v4128
        %4130 = vmatmul.f32.gmra.mxu0 %v4022
        %v4131 = vpop.f32.mrf.mxu0
        %v4132 = vadd.f32 0.0, %v4131
        %4133 = vmatmul.f32.gmra.mxu0 %v4024
        %v4134 = vpop.f32.mrf.mxu0
        %v4135 = vadd.f32 0.0, %v4134
        %4136 = vmatmul.f32.gmra.mxu0 %v4092
        %v4137 = vpop.f32.mrf.mxu0
        %v4138 = vadd.f32 0.0, %v4137
        %4139 = vmatmul.f32.gmra.mxu0 %v4094
        %v4140 = vpop.f32.mrf.mxu0
        %v4141 = vadd.f32 0.0, %v4140
        %4142 = vdwg.mxu0
        %v4143 = vadd.f32 %v4075, %v4114
        %v4144 = vadd.f32 %v4076, %v4117
        %v4145 = vadd.f32 %v4077, %v4120
        %v4146 = vadd.f32 %v4078, %v4123
        %v4147 = vadd.f32 %v4079, %v4126
        %v4148 = vadd.f32 %v4080, %v4129
        %v4149 = vadd.f32 %v4081, %v4132
        %v4150 = vadd.f32 %v4082, %v4135
        %v4151 = vadd.f32 %v4083, %v4138
        %v4152 = vadd.f32 %v4084, %v4141
        %v4153 = vld [vmem:[%s3 + $0x80] sm:$0xff]
        %v4154 = vld [vmem:[%s3 + $0x88] sm:$0xff]
        %v4155 = vld [vmem:[%s3 + $0x90] sm:$0xff]
        %v4156 = vld [vmem:[%s3 + $0x98] sm:$0xff]
        %v4158 = vrot.slane %v3801, 3
        %v4159 = vrot.slane %v3802, 3
        %v4160 = vsel %vm1304, %v4158, %v4159
        %v4161 = vrot.slane %v3803, 3
        %v4162 = vsel %vm1304, %v4159, %v4161
        %v4163 = vrot.slane %v3804, 3
        %v4164 = vsel %vm1304, %v4161, %v4163
        %v4165 = vrot.slane %v3805, 3
        %v4166 = vsel %vm1304, %v4163, %v4165
        %v4167 = vrot.slane %v3806, 3
        %v4168 = vsel %vm1304, %v4165, %v4167
        %v4169 = vrot.slane %v3807, 3
        %v4170 = vsel %vm1304, %v4167, %v4169
        %v4171 = vrot.slane %v3808, 3
        %v4172 = vsel %vm1304, %v4169, %v4171
        %v4173 = vrot.slane %v3809, 3
        %v4174 = vsel %vm1304, %v4171, %v4173
        %v4175 = vrot.slane %v3810, 3
        %v4176 = vsel %vm1304, %v4173, %v4175
        %v4177 = vrot.slane %v3811, 3
        %v4178 = vsel %vm1304, %v4175, %v4177
        %v4179 = vsel %vm3850, %v4160, 0
        %v4181 = vsel %vm3850, %v4162, 0
        %v4183 = vsel %vm3850, %v4164, 0
        %v4185 = vsel %vm3850, %v4166, 0
        %v4187 = vsel %vm3850, %v4168, 0
        %v4189 = vsel %vm3850, %v4170, 0
        %v4191 = vsel %vm3850, %v4172, 0
        %v4193 = vsel %vm3850, %v4174, 0
        %v4195 = vsel %vm3850, %v4176, 0
        %v4197 = vsel %vm3850, %v4178, 0
        %4199 = vmatpush.msra.mxu0 0.0
        %4200 = vmatpush.msra.mxu0 0.0
        %4201 = vmatpush.msra.mxu0 0.0
        %4202 = vmatpush.msra.mxu0 0.0
        %4203 = vmatpush.msra.mxu0 0.0
        %4204 = vmatpush.msra.mxu0 0.0
        %4205 = vmatpush.msra.mxu0 0.0
        %4206 = vmatpush.msra.mxu0 0.0
        %4207 = vmatpush.msra.mxu0 0.0
        %4208 = vmatpush.msra.mxu0 0.0
        %4209 = vmatpush.msra.mxu0 0.0
        %4210 = vmatpush.msra.mxu0 0.0
        %4211 = vmatpush.msra.mxu0 %v4156
        %4212 = vmatpush.msra.mxu0 %v4155
        %4213 = vmatpush.msra.mxu0 %v4154
        %4214 = vmatpush.msra.mxu0 %v4153
        %4215 = vmatmul.f32.gmra.mxu0 %v4179
        %v4216 = vpop.f32.mrf.mxu0
        %v4217 = vadd.f32 0.0, %v4216
        %4218 = vmatmul.f32.gmra.mxu0 %v4181
        %v4219 = vpop.f32.mrf.mxu0
        %v4220 = vadd.f32 0.0, %v4219
        %4221 = vmatmul.f32.gmra.mxu0 %v4183
        %v4222 = vpop.f32.mrf.mxu0
        %v4223 = vadd.f32 0.0, %v4222
        %4224 = vmatmul.f32.gmra.mxu0 %v4185
        %v4225 = vpop.f32.mrf.mxu0
        %v4226 = vadd.f32 0.0, %v4225
        %4227 = vmatmul.f32.gmra.mxu0 %v4187
        %v4228 = vpop.f32.mrf.mxu0
        %v4229 = vadd.f32 0.0, %v4228
        %4230 = vmatmul.f32.gmra.mxu0 %v4189
        %v4231 = vpop.f32.mrf.mxu0
        %v4232 = vadd.f32 0.0, %v4231
        %4233 = vmatmul.f32.gmra.mxu0 %v4191
        %v4234 = vpop.f32.mrf.mxu0
        %v4235 = vadd.f32 0.0, %v4234
        %4236 = vmatmul.f32.gmra.mxu0 %v4193
        %v4237 = vpop.f32.mrf.mxu0
        %v4238 = vadd.f32 0.0, %v4237
        %4239 = vmatmul.f32.gmra.mxu0 %v4195
        %v4240 = vpop.f32.mrf.mxu0
        %v4241 = vadd.f32 0.0, %v4240
        %4242 = vmatmul.f32.gmra.mxu0 %v4197
        %v4243 = vpop.f32.mrf.mxu0
        %v4244 = vadd.f32 0.0, %v4243
        %4245 = vdwg.mxu0
        %v4246 = vadd.f32 %v4143, %v4217
        %v4247 = vadd.f32 %v4144, %v4220
        %v4248 = vadd.f32 %v4145, %v4223
        %v4249 = vadd.f32 %v4146, %v4226
        %v4250 = vadd.f32 %v4147, %v4229
        %v4251 = vadd.f32 %v4148, %v4232
        %v4252 = vadd.f32 %v4149, %v4235
        %v4253 = vadd.f32 %v4150, %v4238
        %v4254 = vadd.f32 %v4151, %v4241
        %v4255 = vadd.f32 %v4152, %v4244
        %v4256 = vld [vmem:[%s3 + $0xa0] sm:$0xff]
        %v4257 = vld [vmem:[%s3 + $0xa8] sm:$0xff]
        %v4258 = vld [vmem:[%s3 + $0xb0] sm:$0xff]
        %v4259 = vld [vmem:[%s3 + $0xb8] sm:$0xff]
        %v4260 = vrot.slane %v3801, 4
        %v4261 = vrot.slane %v3802, 4
        %v4262 = vsel %vm1612, %v4260, %v4261
        %v4263 = vrot.slane %v3803, 4
        %v4264 = vsel %vm1612, %v4261, %v4263
        %v4265 = vrot.slane %v3804, 4
        %v4266 = vsel %vm1612, %v4263, %v4265
        %v4267 = vrot.slane %v3805, 4
        %v4268 = vsel %vm1612, %v4265, %v4267
        %v4269 = vrot.slane %v3806, 4
        %v4270 = vsel %vm1612, %v4267, %v4269
        %v4271 = vrot.slane %v3807, 4
        %v4272 = vsel %vm1612, %v4269, %v4271
        %v4273 = vrot.slane %v3808, 4
        %v4274 = vsel %vm1612, %v4271, %v4273
        %v4275 = vrot.slane %v3809, 4
        %v4276 = vsel %vm1612, %v4273, %v4275
        %v4277 = vrot.slane %v3810, 4
        %v4278 = vsel %vm1612, %v4275, %v4277
        %v4279 = vrot.slane %v3811, 4
        %v4280 = vsel %vm1612, %v4277, %v4279
        %v4281 = vsel %vm3850, %v4262, 0
        %v4283 = vsel %vm3850, %v4264, 0
        %v4285 = vsel %vm3850, %v4266, 0
        %v4287 = vsel %vm3850, %v4268, 0
        %v4289 = vsel %vm3850, %v4270, 0
        %v4291 = vsel %vm3850, %v4272, 0
        %v4293 = vsel %vm3850, %v4274, 0
        %v4295 = vsel %vm3850, %v4276, 0
        %v4297 = vsel %vm3850, %v4278, 0
        %v4299 = vsel %vm3850, %v4280, 0
        %4301 = vmatpush.msra.mxu0 0.0
        %4302 = vmatpush.msra.mxu0 0.0
        %4303 = vmatpush.msra.mxu0 0.0
        %4304 = vmatpush.msra.mxu0 0.0
        %4305 = vmatpush.msra.mxu0 0.0
        %4306 = vmatpush.msra.mxu0 0.0
        %4307 = vmatpush.msra.mxu0 0.0
        %4308 = vmatpush.msra.mxu0 0.0
        %4309 = vmatpush.msra.mxu0 0.0
        %4310 = vmatpush.msra.mxu0 0.0
        %4311 = vmatpush.msra.mxu0 0.0
        %4312 = vmatpush.msra.mxu0 0.0
        %4313 = vmatpush.msra.mxu0 %v4259
        %4314 = vmatpush.msra.mxu0 %v4258
        %4315 = vmatpush.msra.mxu0 %v4257
        %4316 = vmatpush.msra.mxu0 %v4256
        %4317 = vmatmul.f32.gmra.mxu0 %v4281
        %v4318 = vpop.f32.mrf.mxu0
        %v4319 = vadd.f32 0.0, %v4318
        %4320 = vmatmul.f32.gmra.mxu0 %v4283
        %v4321 = vpop.f32.mrf.mxu0
        %v4322 = vadd.f32 0.0, %v4321
        %4323 = vmatmul.f32.gmra.mxu0 %v4285
        %v4324 = vpop.f32.mrf.mxu0
        %v4325 = vadd.f32 0.0, %v4324
        %4326 = vmatmul.f32.gmra.mxu0 %v4287
        %v4327 = vpop.f32.mrf.mxu0
        %v4328 = vadd.f32 0.0, %v4327
        %4329 = vmatmul.f32.gmra.mxu0 %v4289
        %v4330 = vpop.f32.mrf.mxu0
        %v4331 = vadd.f32 0.0, %v4330
        %4332 = vmatmul.f32.gmra.mxu0 %v4291
        %v4333 = vpop.f32.mrf.mxu0
        %v4334 = vadd.f32 0.0, %v4333
        %4335 = vmatmul.f32.gmra.mxu0 %v4293
        %v4336 = vpop.f32.mrf.mxu0
        %v4337 = vadd.f32 0.0, %v4336
        %4338 = vmatmul.f32.gmra.mxu0 %v4295
        %v4339 = vpop.f32.mrf.mxu0
        %v4340 = vadd.f32 0.0, %v4339
        %4341 = vmatmul.f32.gmra.mxu0 %v4297
        %v4342 = vpop.f32.mrf.mxu0
        %v4343 = vadd.f32 0.0, %v4342
        %4344 = vmatmul.f32.gmra.mxu0 %v4299
        %v4345 = vpop.f32.mrf.mxu0
        %v4346 = vadd.f32 0.0, %v4345
        %4347 = vdwg.mxu0
        %v4348 = vadd.f32 %v4246, %v4319
        %v4349 = vadd.f32 %v4247, %v4322
        %v4350 = vadd.f32 %v4248, %v4325
        %v4351 = vadd.f32 %v4249, %v4328
        %v4352 = vadd.f32 %v4250, %v4331
        %v4353 = vadd.f32 %v4251, %v4334
        %v4354 = vadd.f32 %v4252, %v4337
        %v4355 = vadd.f32 %v4253, %v4340
        %v4356 = vadd.f32 %v4254, %v4343
        %v4357 = vadd.f32 %v4255, %v4346
        %v4358 = vld [vmem:[%s3 + $0xc0] sm:$0xff]
        %v4359 = vld [vmem:[%s3 + $0xc8] sm:$0xff]
        %v4360 = vld [vmem:[%s3 + $0xd0] sm:$0xff]
        %v4361 = vld [vmem:[%s3 + $0xd8] sm:$0xff]
        %v4363 = vrot.slane %v3812, 4
        %v4364 = vsel %vm1612, %v4279, %v4363
        %v4365 = vsel %vm3850, %v4364, 0
        %4367 = vmatpush.msra.mxu0 0.0
        %4368 = vmatpush.msra.mxu0 0.0
        %4369 = vmatpush.msra.mxu0 0.0
        %4370 = vmatpush.msra.mxu0 0.0
        %4371 = vmatpush.msra.mxu0 0.0
        %4372 = vmatpush.msra.mxu0 0.0
        %4373 = vmatpush.msra.mxu0 0.0
        %4374 = vmatpush.msra.mxu0 0.0
        %4375 = vmatpush.msra.mxu0 0.0
        %4376 = vmatpush.msra.mxu0 0.0
        %4377 = vmatpush.msra.mxu0 0.0
        %4378 = vmatpush.msra.mxu0 0.0
        %4379 = vmatpush.msra.mxu0 %v4361
        %4380 = vmatpush.msra.mxu0 %v4360
        %4381 = vmatpush.msra.mxu0 %v4359
        %4382 = vmatpush.msra.mxu0 %v4358
        %4383 = vmatmul.f32.gmra.mxu0 %v4283
        %v4384 = vpop.f32.mrf.mxu0
        %v4385 = vadd.f32 0.0, %v4384
        %4386 = vmatmul.f32.gmra.mxu0 %v4285
        %v4387 = vpop.f32.mrf.mxu0
        %v4388 = vadd.f32 0.0, %v4387
        %4389 = vmatmul.f32.gmra.mxu0 %v4287
        %v4390 = vpop.f32.mrf.mxu0
        %v4391 = vadd.f32 0.0, %v4390
        %4392 = vmatmul.f32.gmra.mxu0 %v4289
        %v4393 = vpop.f32.mrf.mxu0
        %v4394 = vadd.f32 0.0, %v4393
        %4395 = vmatmul.f32.gmra.mxu0 %v4291
        %v4396 = vpop.f32.mrf.mxu0
        %v4397 = vadd.f32 0.0, %v4396
        %4398 = vmatmul.f32.gmra.mxu0 %v4293
        %v4399 = vpop.f32.mrf.mxu0
        %v4400 = vadd.f32 0.0, %v4399
        %4401 = vmatmul.f32.gmra.mxu0 %v4295
        %v4402 = vpop.f32.mrf.mxu0
        %v4403 = vadd.f32 0.0, %v4402
        %4404 = vmatmul.f32.gmra.mxu0 %v4297
        %v4405 = vpop.f32.mrf.mxu0
        %v4406 = vadd.f32 0.0, %v4405
        %4407 = vmatmul.f32.gmra.mxu0 %v4299
        %v4408 = vpop.f32.mrf.mxu0
        %v4409 = vadd.f32 0.0, %v4408
        %4410 = vmatmul.f32.gmra.mxu0 %v4365
        %v4411 = vpop.f32.mrf.mxu0
        %v4412 = vadd.f32 0.0, %v4411
        %4413 = vdwg.mxu0
        %v4414 = vadd.f32 %v4348, %v4385
        %v4415 = vadd.f32 %v4349, %v4388
        %v4416 = vadd.f32 %v4350, %v4391
        %v4417 = vadd.f32 %v4351, %v4394
        %v4418 = vadd.f32 %v4352, %v4397
        %v4419 = vadd.f32 %v4353, %v4400
        %v4420 = vadd.f32 %v4354, %v4403
        %v4421 = vadd.f32 %v4355, %v4406
        %v4422 = vadd.f32 %v4356, %v4409
        %v4423 = vadd.f32 %v4357, %v4412
        %v4424 = vld [vmem:[%s3 + $0xe0] sm:$0xff]
        %v4425 = vld [vmem:[%s3 + $0xe8] sm:$0xff]
        %v4426 = vld [vmem:[%s3 + $0xf0] sm:$0xff]
        %v4427 = vld [vmem:[%s3 + $0xf8] sm:$0xff]
        %v4428 = vrot.slane %v3802, 5
        %v4429 = vrot.slane %v3803, 5
        %v4430 = vsel %vm2092, %v4428, %v4429
        %v4431 = vrot.slane %v3804, 5
        %v4432 = vsel %vm2092, %v4429, %v4431
        %v4433 = vrot.slane %v3805, 5
        %v4434 = vsel %vm2092, %v4431, %v4433
        %v4435 = vrot.slane %v3806, 5
        %v4436 = vsel %vm2092, %v4433, %v4435
        %v4437 = vrot.slane %v3807, 5
        %v4438 = vsel %vm2092, %v4435, %v4437
        %v4439 = vrot.slane %v3808, 5
        %v4440 = vsel %vm2092, %v4437, %v4439
        %v4441 = vrot.slane %v3809, 5
        %v4442 = vsel %vm2092, %v4439, %v4441
        %v4443 = vrot.slane %v3810, 5
        %v4444 = vsel %vm2092, %v4441, %v4443
        %v4445 = vrot.slane %v3811, 5
        %v4446 = vsel %vm2092, %v4443, %v4445
        %v4447 = vrot.slane %v3812, 5
        %v4448 = vsel %vm2092, %v4445, %v4447
        %v4449 = vsel %vm3850, %v4430, 0
        %v4451 = vsel %vm3850, %v4432, 0
        %v4453 = vsel %vm3850, %v4434, 0
        %v4455 = vsel %vm3850, %v4436, 0
        %v4457 = vsel %vm3850, %v4438, 0
        %v4459 = vsel %vm3850, %v4440, 0
        %v4461 = vsel %vm3850, %v4442, 0
        %v4463 = vsel %vm3850, %v4444, 0
        %v4465 = vsel %vm3850, %v4446, 0
        %v4467 = vsel %vm3850, %v4448, 0
        %4469 = vmatpush.msra.mxu0 0.0
        %4470 = vmatpush.msra.mxu0 0.0
        %4471 = vmatpush.msra.mxu0 0.0
        %4472 = vmatpush.msra.mxu0 0.0
        %4473 = vmatpush.msra.mxu0 0.0
        %4474 = vmatpush.msra.mxu0 0.0
        %4475 = vmatpush.msra.mxu0 0.0
        %4476 = vmatpush.msra.mxu0 0.0
        %4477 = vmatpush.msra.mxu0 0.0
        %4478 = vmatpush.msra.mxu0 0.0
        %4479 = vmatpush.msra.mxu0 0.0
        %4480 = vmatpush.msra.mxu0 0.0
        %4481 = vmatpush.msra.mxu0 %v4427
        %4482 = vmatpush.msra.mxu0 %v4426
        %4483 = vmatpush.msra.mxu0 %v4425
        %4484 = vmatpush.msra.mxu0 %v4424
        %4485 = vmatmul.f32.gmra.mxu0 %v4449
        %v4486 = vpop.f32.mrf.mxu0
        %v4487 = vadd.f32 0.0, %v4486
        %4488 = vmatmul.f32.gmra.mxu0 %v4451
        %v4489 = vpop.f32.mrf.mxu0
        %v4490 = vadd.f32 0.0, %v4489
        %4491 = vmatmul.f32.gmra.mxu0 %v4453
        %v4492 = vpop.f32.mrf.mxu0
        %v4493 = vadd.f32 0.0, %v4492
        %4494 = vmatmul.f32.gmra.mxu0 %v4455
        %v4495 = vpop.f32.mrf.mxu0
        %v4496 = vadd.f32 0.0, %v4495
        %4497 = vmatmul.f32.gmra.mxu0 %v4457
        %v4498 = vpop.f32.mrf.mxu0
        %v4499 = vadd.f32 0.0, %v4498
        %4500 = vmatmul.f32.gmra.mxu0 %v4459
        %v4501 = vpop.f32.mrf.mxu0
        %v4502 = vadd.f32 0.0, %v4501
        %4503 = vmatmul.f32.gmra.mxu0 %v4461
        %v4504 = vpop.f32.mrf.mxu0
        %v4505 = vadd.f32 0.0, %v4504
        %4506 = vmatmul.f32.gmra.mxu0 %v4463
        %v4507 = vpop.f32.mrf.mxu0
        %v4508 = vadd.f32 0.0, %v4507
        %4509 = vmatmul.f32.gmra.mxu0 %v4465
        %v4510 = vpop.f32.mrf.mxu0
        %v4511 = vadd.f32 0.0, %v4510
        %4512 = vmatmul.f32.gmra.mxu0 %v4467
        %v4513 = vpop.f32.mrf.mxu0
        %v4514 = vadd.f32 0.0, %v4513
        %4515 = vdwg.mxu0
        %v4516 = vadd.f32 %v4414, %v4487
        %v4517 = vadd.f32 %v4415, %v4490
        %v4518 = vadd.f32 %v4416, %v4493
        %v4519 = vadd.f32 %v4417, %v4496
        %v4520 = vadd.f32 %v4418, %v4499
        %v4521 = vadd.f32 %v4419, %v4502
        %v4522 = vadd.f32 %v4420, %v4505
        %v4523 = vadd.f32 %v4421, %v4508
        %v4524 = vadd.f32 %v4422, %v4511
        %v4525 = vadd.f32 %v4423, %v4514
        %v4526 = vld [vmem:[%s3 + $0x100] sm:$0xff]
        %v4527 = vld [vmem:[%s3 + $0x108] sm:$0xff]
        %v4528 = vld [vmem:[%s3 + $0x110] sm:$0xff]
        %v4529 = vld [vmem:[%s3 + $0x118] sm:$0xff]
        %v4530 = vrot.slane %v3802, 6
        %v4531 = vrot.slane %v3803, 6
        %v4532 = vsel %vm2400, %v4530, %v4531
        %v4533 = vrot.slane %v3804, 6
        %v4534 = vsel %vm2400, %v4531, %v4533
        %v4535 = vrot.slane %v3805, 6
        %v4536 = vsel %vm2400, %v4533, %v4535
        %v4537 = vrot.slane %v3806, 6
        %v4538 = vsel %vm2400, %v4535, %v4537
        %v4539 = vrot.slane %v3807, 6
        %v4540 = vsel %vm2400, %v4537, %v4539
        %v4541 = vrot.slane %v3808, 6
        %v4542 = vsel %vm2400, %v4539, %v4541
        %v4543 = vrot.slane %v3809, 6
        %v4544 = vsel %vm2400, %v4541, %v4543
        %v4545 = vrot.slane %v3810, 6
        %v4546 = vsel %vm2400, %v4543, %v4545
        %v4547 = vrot.slane %v3811, 6
        %v4548 = vsel %vm2400, %v4545, %v4547
        %v4549 = vrot.slane %v3812, 6
        %v4550 = vsel %vm2400, %v4547, %v4549
        %v4551 = vsel %vm3850, %v4532, 0
        %v4553 = vsel %vm3850, %v4534, 0
        %v4555 = vsel %vm3850, %v4536, 0
        %v4557 = vsel %vm3850, %v4538, 0
        %v4559 = vsel %vm3850, %v4540, 0
        %v4561 = vsel %vm3850, %v4542, 0
        %v4563 = vsel %vm3850, %v4544, 0
        %v4565 = vsel %vm3850, %v4546, 0
        %v4567 = vsel %vm3850, %v4548, 0
        %v4569 = vsel %vm3850, %v4550, 0
        %4571 = vmatpush.msra.mxu0 0.0
        %4572 = vmatpush.msra.mxu0 0.0
        %4573 = vmatpush.msra.mxu0 0.0
        %4574 = vmatpush.msra.mxu0 0.0
        %4575 = vmatpush.msra.mxu0 0.0
        %4576 = vmatpush.msra.mxu0 0.0
        %4577 = vmatpush.msra.mxu0 0.0
        %4578 = vmatpush.msra.mxu0 0.0
        %4579 = vmatpush.msra.mxu0 0.0
        %4580 = vmatpush.msra.mxu0 0.0
        %4581 = vmatpush.msra.mxu0 0.0
        %4582 = vmatpush.msra.mxu0 0.0
        %4583 = vmatpush.msra.mxu0 %v4529
        %4584 = vmatpush.msra.mxu0 %v4528
        %4585 = vmatpush.msra.mxu0 %v4527
        %4586 = vmatpush.msra.mxu0 %v4526
        %4587 = vmatmul.f32.gmra.mxu0 %v4551
        %v4588 = vpop.f32.mrf.mxu0
        %v4589 = vadd.f32 0.0, %v4588
        %4590 = vmatmul.f32.gmra.mxu0 %v4553
        %v4591 = vpop.f32.mrf.mxu0
        %v4592 = vadd.f32 0.0, %v4591
        %4593 = vmatmul.f32.gmra.mxu0 %v4555
        %v4594 = vpop.f32.mrf.mxu0
        %v4595 = vadd.f32 0.0, %v4594
        %4596 = vmatmul.f32.gmra.mxu0 %v4557
        %v4597 = vpop.f32.mrf.mxu0
        %v4598 = vadd.f32 0.0, %v4597
        %4599 = vmatmul.f32.gmra.mxu0 %v4559
        %v4600 = vpop.f32.mrf.mxu0
        %v4601 = vadd.f32 0.0, %v4600
        %4602 = vmatmul.f32.gmra.mxu0 %v4561
        %v4603 = vpop.f32.mrf.mxu0
        %v4604 = vadd.f32 0.0, %v4603
        %4605 = vmatmul.f32.gmra.mxu0 %v4563
        %v4606 = vpop.f32.mrf.mxu0
        %v4607 = vadd.f32 0.0, %v4606
        %4608 = vmatmul.f32.gmra.mxu0 %v4565
        %v4609 = vpop.f32.mrf.mxu0
        %v4610 = vadd.f32 0.0, %v4609
        %4611 = vmatmul.f32.gmra.mxu0 %v4567
        %v4612 = vpop.f32.mrf.mxu0
        %v4613 = vadd.f32 0.0, %v4612
        %4614 = vmatmul.f32.gmra.mxu0 %v4569
        %v4615 = vpop.f32.mrf.mxu0
        %v4616 = vadd.f32 0.0, %v4615
        %4617 = vdwg.mxu0
        %v4618 = vadd.f32 %v4516, %v4589
        %v4619 = vadd.f32 %v4517, %v4592
        %v4620 = vadd.f32 %v4518, %v4595
        %v4621 = vadd.f32 %v4519, %v4598
        %v4622 = vadd.f32 %v4520, %v4601
        %v4623 = vadd.f32 %v4521, %v4604
        %v4624 = vadd.f32 %v4522, %v4607
        %v4625 = vadd.f32 %v4523, %v4610
        %v4626 = vadd.f32 %v4524, %v4613
        %v4627 = vadd.f32 %v4525, %v4616
        %v4628 = vld [vmem:[%s4] sm:$0x1]
        %v4630 = vperm.slane %v4628, 0
        %v4632 = vadd.f32 %v4618, %v4630
        %v4633 = vadd.f32 %v4619, %v4630
        %v4634 = vadd.f32 %v4620, %v4630
        %v4635 = vadd.f32 %v4621, %v4630
        %v4636 = vadd.f32 %v4622, %v4630
        %v4637 = vadd.f32 %v4623, %v4630
        %v4638 = vadd.f32 %v4624, %v4630
        %v4639 = vadd.f32 %v4625, %v4630
        %v4640 = vadd.f32 %v4626, %v4630
        %v4641 = vadd.f32 %v4627, %v4630
        %v4642 = vmax.f32 %v4632, 0.0
        %v4643 = vmax.f32 %v4633, 0.0
        %v4644 = vmax.f32 %v4634, 0.0
        %v4645 = vmax.f32 %v4635, 0.0
        %v4646 = vmax.f32 %v4636, 0.0
        %v4647 = vmax.f32 %v4637, 0.0
        %v4648 = vmax.f32 %v4638, 0.0
        %v4649 = vmax.f32 %v4639, 0.0
        %v4650 = vmax.f32 %v4640, 0.0
        %v4651 = vmax.f32 %v4641, 0.0
        %v4652 = vld [vmem:[%s6] sm:$0xff]
        %v4653 = vld [vmem:[%s6 + $0x8] sm:$0xff]
        %vm4654 = vcmask 637952
        %v4656 = vsel %vm4654, %v4652, 0
        %v4659 = vsel %vm4654, %v4653, 0
        %v4662 = vsel %vm823, %v4651, 0
        %4664 = vmatpush.msra.mxu0 0.0
        %4665 = vmatpush.msra.mxu0 0.0
        %4666 = vmatpush.msra.mxu0 0.0
        %4667 = vmatpush.msra.mxu0 0.0
        %4668 = vmatpush.msra.mxu0 0.0
        %4669 = vmatpush.msra.mxu0 0.0
        %4670 = vmatpush.msra.mxu0 %v4662
        %4671 = vmatpush.msra.mxu0 %v4650
        %4672 = vmatpush.msra.mxu0 %v4649
        %4673 = vmatpush.msra.mxu0 %v4648
        %4674 = vmatpush.msra.mxu0 %v4647
        %4675 = vmatpush.msra.mxu0 %v4646
        %4676 = vmatpush.msra.mxu0 %v4645
        %4677 = vmatpush.msra.mxu0 %v4644
        %4678 = vmatpush.msra.mxu0 %v4643
        %4679 = vmatpush.msra.mxu0 %v4642
        %4680 = vmatmul.f32.gmra.mxu0 %v4656
        %v4681 = vpop.f32.mrf.mxu0
        %v4682 = vadd.f32 0.0, %v4681
        %4683 = vmatmul.f32.gmra.mxu0 %v4659
        %v4684 = vpop.f32.mrf.mxu0
        %v4685 = vadd.f32 0.0, %v4684
        %4686 = vdwg.mxu0
        %s4687 = scalar_lea.vmem %s6, 16
        %v4688 = vld [vmem:[%s4687] sm:$0xff]
        %v4689 = vld [vmem:[%s4687 + $0x8] sm:$0xff]
        %v4691 = vsel %vm4654, %v4688, 0
        %v4694 = vsel %vm4654, %v4689, 0
        %4696 = vmatpush.msra.mxu0 0.0
        %4697 = vmatpush.msra.mxu0 0.0
        %4698 = vmatpush.msra.mxu0 0.0
        %4699 = vmatpush.msra.mxu0 0.0
        %4700 = vmatpush.msra.mxu0 0.0
        %4701 = vmatpush.msra.mxu0 0.0
        %4702 = vmatpush.msra.mxu0 %v4662
        %4703 = vmatpush.msra.mxu0 %v4650
        %4704 = vmatpush.msra.mxu0 %v4649
        %4705 = vmatpush.msra.mxu0 %v4648
        %4706 = vmatpush.msra.mxu0 %v4647
        %4707 = vmatpush.msra.mxu0 %v4646
        %4708 = vmatpush.msra.mxu0 %v4645
        %4709 = vmatpush.msra.mxu0 %v4644
        %4710 = vmatpush.msra.mxu0 %v4643
        %4711 = vmatpush.msra.mxu0 %v4642
        %4712 = vmatmul.f32.gmra.mxu0 %v4691
        %v4713 = vpop.f32.mrf.mxu0
        %v4714 = vadd.f32 0.0, %v4713
        %4715 = vmatmul.f32.gmra.mxu0 %v4694
        %v4716 = vpop.f32.mrf.mxu0
        %v4717 = vadd.f32 0.0, %v4716
        %4718 = vdwg.mxu0
        %s4719 = scalar_lea.vmem %s6, 32
        %v4720 = vld [vmem:[%s4719] sm:$0xff]
        %v4721 = vld [vmem:[%s4719 + $0x8] sm:$0xff]
        %v4723 = vsel %vm4654, %v4720, 0
        %v4726 = vsel %vm4654, %v4721, 0
        %4728 = vmatpush.msra.mxu0 0.0
        %4729 = vmatpush.msra.mxu0 0.0
        %4730 = vmatpush.msra.mxu0 0.0
        %4731 = vmatpush.msra.mxu0 0.0
        %4732 = vmatpush.msra.mxu0 0.0
        %4733 = vmatpush.msra.mxu0 0.0
        %4734 = vmatpush.msra.mxu0 %v4662
        %4735 = vmatpush.msra.mxu0 %v4650
        %4736 = vmatpush.msra.mxu0 %v4649
        %4737 = vmatpush.msra.mxu0 %v4648
        %4738 = vmatpush.msra.mxu0 %v4647
        %4739 = vmatpush.msra.mxu0 %v4646
        %4740 = vmatpush.msra.mxu0 %v4645
        %4741 = vmatpush.msra.mxu0 %v4644
        %4742 = vmatpush.msra.mxu0 %v4643
        %4743 = vmatpush.msra.mxu0 %v4642
        %4744 = vmatmul.f32.gmra.mxu0 %v4723
        %v4745 = vpop.f32.mrf.mxu0
        %v4746 = vadd.f32 0.0, %v4745
        %4747 = vmatmul.f32.gmra.mxu0 %v4726
        %v4748 = vpop.f32.mrf.mxu0
        %v4749 = vadd.f32 0.0, %v4748
        %4750 = vdwg.mxu0
        %s4751 = scalar_lea.vmem %s6, 48
        %v4752 = vld [vmem:[%s4751] sm:$0xff]
        %v4753 = vld [vmem:[%s4751 + $0x8] sm:$0xff]
        %v4755 = vsel %vm4654, %v4752, 0
        %v4758 = vsel %vm4654, %v4753, 0
        %4760 = vmatpush.msra.mxu0 0.0
        %4761 = vmatpush.msra.mxu0 0.0
        %4762 = vmatpush.msra.mxu0 0.0
        %4763 = vmatpush.msra.mxu0 0.0
        %4764 = vmatpush.msra.mxu0 0.0
        %4765 = vmatpush.msra.mxu0 0.0
        %4766 = vmatpush.msra.mxu0 %v4662
        %4767 = vmatpush.msra.mxu0 %v4650
        %4768 = vmatpush.msra.mxu0 %v4649
        %4769 = vmatpush.msra.mxu0 %v4648
        %4770 = vmatpush.msra.mxu0 %v4647
        %4771 = vmatpush.msra.mxu0 %v4646
        %4772 = vmatpush.msra.mxu0 %v4645
        %4773 = vmatpush.msra.mxu0 %v4644
        %4774 = vmatpush.msra.mxu0 %v4643
        %4775 = vmatpush.msra.mxu0 %v4642
        %4776 = vmatmul.f32.gmra.mxu0 %v4755
        %v4777 = vpop.f32.mrf.mxu0
        %v4778 = vadd.f32 0.0, %v4777
        %4779 = vmatmul.f32.gmra.mxu0 %v4758
        %v4780 = vpop.f32.mrf.mxu0
        %v4781 = vadd.f32 0.0, %v4780
        %4782 = vdwg.mxu0
        %v4783 = vmax.f32 %v4682, %v4714
        %v4784 = vmax.f32 %v4685, %v4717
        %v4785 = vmax.f32 %v4746, %v4778
        %v4786 = vmax.f32 %v4749, %v4781
        %v4787 = vmax.f32 %v4783, %v4785
        %v4788 = vmax.f32 %v4784, %v4786
        %v4789 = vadd.f32 %v4787, %v4788
        %v4790 = vrot.slane %v4789, 4
        %v4791 = vadd.f32 %v4789, %v4790
        %v4792 = vrot.slane %v4791, 2
        %v4793 = vadd.f32 %v4791, %v4792
        %v4794 = vrot.slane %v4793, 1
        %v4795 = vadd.f32 %v4793, %v4794
        %v4796 = vmul.f32 %v4795, 0.0625
        %4797 = vst [vmem:[%s270] sm:$0x1] %v4796
        %s4798 = sand.u32 %s181, 1
        %s4799 = scalar_lea.sflag [#allocation3], %s4798
        %s4800 = sand.u32 %s181, 1
        %s4801 = scalar_lea.vmem [#allocation2], %s4800
        // Predicated region
        $region49: #{backbone_forward.1} parent=47 // pred_check
          %p4802 = pneg %p191
        $region50: #{backbone_forward.1} parent=47 // pred_check_branch
          %4804 = sbr.rel (%p4802) target = $region52
        $region51: #{backbone_forward.1} parent=47 // pred_region
          %4806 = vsyncadd %s4799, 0
          %s4807 = scalar_lea.hbm %s7, %s21
          %s4809 = sshll.u32 %s4801, 4
          %s4810 = int_to_ptr.vmem [resolvable:$true] %s4809
          %s4811 = sshll.u32 %s4807, 4
          %s4812 = int_to_ptr.hbm [resolvable:$true] %s4811
          %4814 = dma.vmem_to_hbm [thread:$0]  %s4810, 16, %s4812, %s4799
        $region52: #{backbone_forward.1} parent=47 // pred_fallthru
          _
      $region48: #{backbone_forward.1} parent=5 // pred_fallthru
        _
      %p4815 = scmp.le.s32.totalorder 2, %s16
      // Predicated region
      $region53: #{backbone_forward.1} parent=5 // pred_check
        %p4816 = pneg %p4815
      $region54: #{backbone_forward.1} parent=5 // pred_check_branch
        %4818 = sbr.rel (%p4816) target = $region56
      $region55: #{backbone_forward.1} parent=5 // pred_region
        %s4819 = ssub.s32 %s16, 2
        // Predicated region
        $region57: #{backbone_forward.1} parent=55 // pred_check
          %p4820 = pneg %p197
        $region58: #{backbone_forward.1} parent=55 // pred_check_branch
          %4822 = sbr.rel (%p4820) target = $region60
        $region59: #{backbone_forward.1} parent=55 // pred_region
          %s4823 = sand.u32 %s182, 1
          %s4824 = scalar_lea.sflag [#allocation3], %s4823
          %s4825 = sand.u32 %s182, 1
          %s4826 = scalar_lea.vmem [#allocation2], %s4825
          %4828 = dma.done %s4824, 16
        $region60: #{backbone_forward.1} parent=55 // pred_fallthru
          _
      $region56: #{backbone_forward.1} parent=5 // pred_fallthru
        _
    $region6: #{backbone_forward.1} parent=1 // loop_footer
      %s20 = sadd.s32 1, %s16
    $region7: #{backbone_forward.1} parent=1 // loop_footer_branch
      %15 = sbr.rel target = $region3
    $region8: #{backbone_forward.1} parent=1 // loop_exit
      _
    %4829 = vsyncpa [#allocation3], 1
    %s4830 = scalar_lea.sflag [#allocation3], 1
    %4831 = vsyncpa %s4830, 1

</llo_original>
